<compile_context>
chip_gen: v6e
topology: v6e:2x2x1
jax: 0.10.0
libtpu: 0.0.40
codegen_flags: <defaults>
</compile_context>

<pallas_src>
import jax
import jax.numpy as jnp
import numpy as np
from jax import lax
from jax.experimental import pallas as pl
from jax.experimental.pallas import tpu as pltpu

# ---- small, module-consistent config ----
L = 32           # dimLatent
C0 = 32          # depthScale0
DIM_OUT = 3      # RGB
HW = 4           # scale-0 spatial side
P = HW * HW      # 16 pixels
PC = P * C0      # 512 packed (pixel-major) features
OUT_PAD = 128    # lane-padded output width (first DIM_OUT*P = 48 cols are real)
EPS = 1e-8       # NormalizationLayer epsilon
LEAK = 0.2       # leaky relu slope
TM = 128         # latents per grid step (matches v5e MXU M; fine on v6e/v7x)


# ------------------ fused Pallas kernel ------------------

def gnet_kernel(z_ref, wfmt_ref, bias_ref, g1_ref, g2_ref, mconv_ref, mrgb_ref, o_ref):
    """One batch tile of the whole scale-0 generator. Activations (TM, P*C0)."""
    bias = bias_ref[...]                                   # (3, PC) f32

    # pixel-norm of latent vector (over the latent dim)
    z = z_ref[...]
    z = z * lax.rsqrt(jnp.mean(z * z, axis=1, keepdims=True) + EPS)

    # equalized format linear (He constant folded into wfmt/bias) + leaky relu
    h = jnp.dot(z.astype(jnp.bfloat16), wfmt_ref[...],
                preferred_element_type=jnp.float32) + bias[0:1, :]
    h = jnp.where(h >= 0.0, h, LEAK * h)

    # pixel-norm over channels: exact rank-P factorization of the block-diag mean.
    # msq[:, p] = mean_c h[:, p*C0+c]^2 ; expansion copies rsqrt back to all C0 lanes.
    msq = jnp.dot(h * h, g1_ref[...], preferred_element_type=jnp.float32)      # (TM, P)
    h = h * jnp.dot(lax.rsqrt(msq + EPS), g2_ref[...],
                    preferred_element_type=jnp.float32)

    # 3x3 SAME equalized conv folded into one (PC, PC) bf16 matmul + leaky relu
    c = jnp.dot(h.astype(jnp.bfloat16), mconv_ref[...],
                preferred_element_type=jnp.float32) + bias[1:2, :]
    c = jnp.where(c >= 0.0, c, LEAK * c)

    # pixel-norm over channels again
    msq = jnp.dot(c * c, g1_ref[...], preferred_element_type=jnp.float32)
    c = c * jnp.dot(lax.rsqrt(msq + EPS), g2_ref[...],
                    preferred_element_type=jnp.float32)

    # 1x1 equalized toRGB conv folded into a (PC, 128) bf16 matmul that emits the
    # output directly in NCHW-flattened order (col = co*P + p), lane-padded to 128
    o_ref[...] = jnp.dot(c.astype(jnp.bfloat16), mrgb_ref[...],
                         preferred_element_type=jnp.float32) + bias[2:3, 0:OUT_PAD]


# ------------------ wrapper ------------------

def gnet_forward(z, kernel_params):
    wfmt, bias_pack, g1, g2, mconv, mrgb = kernel_params
    b = z.shape[0]
    b_pad = ((b + TM - 1) // TM) * TM
    if b_pad != b:
        z = jnp.pad(z, ((0, b_pad - b), (0, 0)))           # zero latents are harmless
    num_tiles = b_pad // TM

    flops = 2 * b_pad * (L * PC + 2 * (PC * P + P * PC) + PC * PC + PC * OUT_PAD)
    transcendentals = b_pad * (1 + 2 * P)
    bytes_accessed = (4 * b_pad * L + 2 * L * PC + 4 * 3 * PC + 4 * PC * P
                      + 4 * P * PC + 2 * PC * PC + 2 * PC * OUT_PAD
                      + 4 * b_pad * OUT_PAD)

    y = pl.pallas_call(
        gnet_kernel,
        out_shape=jax.ShapeDtypeStruct((b_pad, OUT_PAD), jnp.float32),
        grid=(num_tiles,),
        in_specs=[
            pl.BlockSpec((TM, L), lambda i: (i, 0)),          # z tile
            pl.BlockSpec((L, PC), lambda i: (0, 0)),          # wfmt (bf16, resident)
            pl.BlockSpec((3, PC), lambda i: (0, 0)),          # packed biases (f32)
            pl.BlockSpec((PC, P), lambda i: (0, 0)),          # G1 channel-mean factor
            pl.BlockSpec((P, PC), lambda i: (0, 0)),          # G2 expansion factor
            pl.BlockSpec((PC, PC), lambda i: (0, 0)),         # folded 3x3 conv (bf16)
            pl.BlockSpec((PC, OUT_PAD), lambda i: (0, 0)),    # folded toRGB (bf16)
        ],
        out_specs=pl.BlockSpec((TM, OUT_PAD), lambda i: (i, 0)),
        compiler_params=pltpu.CompilerParams(dimension_semantics=("parallel",)),
        cost_estimate=pl.CostEstimate(flops=flops, transcendentals=transcendentals,
                                      bytes_accessed=bytes_accessed),
    )(z, wfmt, bias_pack, g1, g2, mconv, mrgb)

    # first DIM_OUT*P lanes already hold the NCHW-flattened image: col = co*P + (i*HW + j)
    return y[:b, : DIM_OUT * P].reshape(b, DIM_OUT, HW, HW)


# ------------------ parameter construction ------------------

def _to_bf16_grid(x):
    """Snap f32 values to the nearest bf16 value (returned as f32)."""
    return np.asarray(jnp.asarray(x, jnp.bfloat16).astype(jnp.float32))


def init_params(key):
    k1, k2, k3 = jax.random.split(key, 3)
    # PyTorch-layout params, N(0,1) init (equalized lr), zero biases (initBiasToZero).
    # Master weights are snapped to the bf16 grid so kernel and reference share them.
    w_fmt_t = _to_bf16_grid(jax.random.normal(k1, (P * C0, L), jnp.float32))     # (out, in)
    w_conv_t = _to_bf16_grid(jax.random.normal(k2, (C0, C0, 3, 3), jnp.float32))  # (O, I, kH, kW)
    w_rgb_t = _to_bf16_grid(jax.random.normal(k3, (DIM_OUT, C0, 1, 1), jnp.float32))
    b_fmt = np.zeros((P * C0,), np.float32)
    b_conv = np.zeros((C0,), np.float32)
    b_rgb = np.zeros((DIM_OUT,), np.float32)

    # He constants (equalized lr), pre-folded into weights AND biases; the module
    # applies the constant after the bias, so scaling both is exact.
    cfmt = (2.0 / L) ** 0.5
    cconv = (2.0 / (C0 * 9)) ** 0.5
    crgb = (2.0 / C0) ** 0.5

    wf = np.asarray(w_fmt_t)                       # (P*C0, L), torch out index o = c*P + p
    wc = np.asarray(w_conv_t)                      # (co, ci, ky, kx)
    wr = np.asarray(w_rgb_t).reshape(DIM_OUT, C0)  # (co, ci)

    # Format layer: permute columns so kernel output is pixel-major (q = p*C0 + c).
    perm = np.array([c * P + p for p in range(P) for c in range(C0)], np.int32)
    wfmt = (wf.T[:, perm] * cfmt).astype(np.float32)                     # (L, P*C0)
    bfmt_row = (b_fmt[perm] * cfmt).astype(np.float32)                   # (P*C0,)

    # Rank-P factorization of the per-pixel channel-mean (exact, kept f32):
    #   G1 = I_P (x) ones(C0,1)/C0  -> (PC, P),   G2 = I_P (x) ones(1,C0) -> (P, PC)
    g1 = np.kron(np.eye(P, dtype=np.float32), np.full((C0, 1), 1.0 / C0, np.float32))
    g2 = np.kron(np.eye(P, dtype=np.float32), np.ones((1, C0), np.float32))

    # Fold 3x3 SAME conv (pixel shifts x channel mix) into one (P*C0, P*C0) matrix.
    # mconv[p_in*C0 + ci, p_out*C0 + co] = w[co, ci, ky, kx] * cconv, p_in = shifted p_out.
    mconv = np.zeros((PC, PC), np.float32)
    for i in range(HW):
        for j in range(HW):
            p_out = i * HW + j
            for ky in range(3):
                for kx in range(3):
                    ii, jj = i + ky - 1, j + kx - 1
                    if 0 <= ii < HW and 0 <= jj < HW:
                        p_in = ii * HW + jj
                        mconv[p_in * C0:(p_in + 1) * C0,
                              p_out * C0:(p_out + 1) * C0] += wc[:, :, ky, kx].T * cconv
    bconv_row = (np.tile(b_conv, P) * cconv).astype(np.float32)          # (P*C0,)

    # Fold toRGB 1x1 conv into (P*C0, 128): pixel-major in -> NCHW-flattened out
    # (col = co*P + p), padded to 128 lanes so the final store is unmasked.
    mrgb = np.zeros((PC, OUT_PAD), np.float32)
    brgb_row = np.zeros((PC,), np.float32)
    for p in range(P):
        for co in range(DIM_OUT):
            mrgb[p * C0:(p + 1) * C0, co * P + p] = wr[co, :] * crgb
            brgb_row[co * P + p] = b_rgb[co] * crgb

    # Single packed bias array (one DMA): row0 fmt, row1 conv, row2 rgb (padded).
    bias_pack = np.stack([bfmt_row, bconv_row, brgb_row], axis=0)        # (3, PC)

    torch_params = (jnp.asarray(w_fmt_t), jnp.asarray(b_fmt), jnp.asarray(w_conv_t),
                    jnp.asarray(b_conv), jnp.asarray(w_rgb_t), jnp.asarray(b_rgb))
    kernel_params = (
        jnp.asarray(wfmt).astype(jnp.bfloat16),
        jnp.asarray(bias_pack),                 # f32
        jnp.asarray(g1),                        # f32 (exact norm)
        jnp.asarray(g2),                        # f32 (exact norm)
        jnp.asarray(mconv).astype(jnp.bfloat16),
        jnp.asarray(mrgb).astype(jnp.bfloat16),
    )
    return kernel_params, torch_params


# ------------------ pure-JAX reference (PyTorch semantics, NCHW, f32) ------------------

def ref_forward(z, torch_params):
    w_fmt_t, b_fmt, w_conv_t, b_conv, w_rgb_t, b_rgb = torch_params
    b = z.shape[0]
    x = z * lax.rsqrt(jnp.mean(z * z, axis=1, keepdims=True) + EPS)
    h = (x @ w_fmt_t.T + b_fmt) * (2.0 / L) ** 0.5
    h = jnp.where(h >= 0, h, LEAK * h)
    x = h.reshape(b, C0, HW, HW)
    x = x * lax.rsqrt(jnp.mean(x * x, axis=1, keepdims=True) + EPS)
    y = lax.conv_general_dilated(x, w_conv_t, (1, 1), "SAME",
                                 dimension_numbers=("NCHW", "OIHW", "NCHW"))
    y = (y + b_conv[None, :, None, None]) * (2.0 / (C0 * 9)) ** 0.5
    y = jnp.where(y >= 0, y, LEAK * y)
    y = y * lax.rsqrt(jnp.mean(y * y, axis=1, keepdims=True) + EPS)
    out = lax.conv_general_dilated(y, w_rgb_t, (1, 1), "VALID",
                                   dimension_numbers=("NCHW", "OIHW", "NCHW"))
    out = (out + b_rgb[None, :, None, None]) * (2.0 / C0) ** 0.5
    return out
    # TODO(synk): addScale()/alpha-blending upscale path is never exercised in the
    # base-constructed GNet (scaleLayers empty, alpha=0), so it is not implemented here.


if __name__ == "__main__":
    key = jax.random.PRNGKey(0)
    kp, kz = jax.random.split(key)
    kernel_params, torch_params = init_params(kp)

    B = 256                                            # batch of latents (2 grid tiles of TM=128)
    z = jax.random.normal(kz, (B, L), jnp.float32)     # latent input, like GNet forward

    out = jax.jit(gnet_forward)(z, kernel_params)
    out = jax.block_until_ready(out)

    ref = ref_forward(z, torch_params)
    assert out.shape == (B, DIM_OUT, HW, HW), out.shape
    # Tolerance reflects bf16 storage / bf16-cast MXU inputs (f32 accumulation).
    max_err = float(jnp.max(jnp.abs(out - ref)))
    rel_err = float(jnp.linalg.norm((out - ref).ravel()) / jnp.linalg.norm(ref.ravel()))
    assert max_err < 1e-1 and rel_err < 2e-2, (max_err, rel_err)

    print("KERNEL_OK")
</pallas_src>

<mosaic_0001>
module attributes {stable_mosaic.version = 11 : i64} {
  func.func @gnet_kernel(%arg0: i32, %arg1: memref<128x32xf32, #tpu.memory_space<vmem>>, %arg2: memref<32x512xbf16, #tpu.memory_space<vmem>>, %arg3: memref<3x512xf32, #tpu.memory_space<vmem>>, %arg4: memref<512x16xf32, #tpu.memory_space<vmem>>, %arg5: memref<16x512xf32, #tpu.memory_space<vmem>>, %arg6: memref<512x512xbf16, #tpu.memory_space<vmem>>, %arg7: memref<512x128xbf16, #tpu.memory_space<vmem>>, %arg8: memref<128x128xf32, #tpu.memory_space<vmem>>) attributes {dimension_semantics = [#tpu.dimension_semantics<parallel>], iteration_bounds = array<i64: 2>, scalar_prefetch = 0 : i64, scratch_operands = 0 : i64, tpu.core_type = #tpu.core_type<tc>, window_params = [{transform_indices = @transform_0, window_bounds = array<i64: 128, 32>}, {pipeline_mode = #tpu.pipeline_mode<synchronous>, transform_indices = @transform_1, window_bounds = array<i64: 32, 512>}, {pipeline_mode = #tpu.pipeline_mode<synchronous>, transform_indices = @transform_2, window_bounds = array<i64: 3, 512>}, {pipeline_mode = #tpu.pipeline_mode<synchronous>, transform_indices = @transform_3, window_bounds = array<i64: 512, 16>}, {pipeline_mode = #tpu.pipeline_mode<synchronous>, transform_indices = @transform_4, window_bounds = array<i64: 16, 512>}, {pipeline_mode = #tpu.pipeline_mode<synchronous>, transform_indices = @transform_5, window_bounds = array<i64: 512, 512>}, {pipeline_mode = #tpu.pipeline_mode<synchronous>, transform_indices = @transform_6, window_bounds = array<i64: 512, 128>}, {transform_indices = @transform_7, window_bounds = array<i64: 128, 128>}]} {
    %c0 = arith.constant 0 : index
    %c0_0 = arith.constant 0 : index
    %0 = vector.load %arg3[%c0, %c0_0] : memref<3x512xf32, #tpu.memory_space<vmem>>, vector<3x512xf32>
    %c0_1 = arith.constant 0 : index
    %c0_2 = arith.constant 0 : index
    %1 = vector.load %arg1[%c0_1, %c0_2] : memref<128x32xf32, #tpu.memory_space<vmem>>, vector<128x32xf32>
    %2 = arith.mulf %1, %1 : vector<128x32xf32>
    %cst = arith.constant dense<0.000000e+00> : vector<128xf32>
    %3 = vector.multi_reduction <add>, %2, %cst [1] : vector<128x32xf32> to vector<128xf32>
    %4 = vector.shape_cast %3 : vector<128xf32> to vector<128x1xf32>
    %cst_3 = arith.constant 3.200000e+01 : f32
    %5 = vector.broadcast %cst_3 : f32 to vector<128x1xf32>
    %6 = arith.divf %4, %5 : vector<128x1xf32>
    %cst_4 = arith.constant 9.99999993E-9 : f32
    %7 = vector.broadcast %cst_4 : f32 to vector<128x1xf32>
    %8 = arith.addf %6, %7 : vector<128x1xf32>
    %9 = math.rsqrt %8 : vector<128x1xf32>
    %10 = vector.broadcast %9 : vector<128x1xf32> to vector<128x32xf32>
    %11 = arith.mulf %1, %10 : vector<128x32xf32>
    %12 = arith.truncf %11 : vector<128x32xf32> to vector<128x32xbf16>
    %c0_5 = arith.constant 0 : index
    %c0_6 = arith.constant 0 : index
    %13 = vector.load %arg2[%c0_5, %c0_6] : memref<32x512xbf16, #tpu.memory_space<vmem>>, vector<32x512xbf16>
    %cst_7 = arith.constant dense<0.000000e+00> : vector<128x512xf32>
    %14 = tpu.matmul %12, %13, %cst_7 {dimension_numbers = #tpu.dot_dimension_numbers<[1], [0], [0], [1], [0, 0, 1, 1], [], []>} : vector<128x32xbf16>, vector<32x512xbf16>, vector<128x512xf32> -> vector<128x512xf32>
    %15 = vector.extract_strided_slice %0 {offsets = [0, 0], sizes = [1, 512], strides = [1, 1]} : vector<3x512xf32> to vector<1x512xf32>
    %16 = vector.broadcast %15 : vector<1x512xf32> to vector<128x512xf32>
    %17 = arith.addf %14, %16 : vector<128x512xf32>
    %cst_8 = arith.constant 0.000000e+00 : f32
    %18 = vector.broadcast %cst_8 : f32 to vector<128x512xf32>
    %19 = arith.cmpf oge, %17, %18 : vector<128x512xf32>
    %cst_9 = arith.constant 2.000000e-01 : f32
    %20 = vector.broadcast %cst_9 : f32 to vector<128x512xf32>
    %21 = arith.mulf %20, %17 : vector<128x512xf32>
    %22 = arith.select %19, %17, %21 : vector<128x512xi1>, vector<128x512xf32>
    %23 = arith.mulf %22, %22 : vector<128x512xf32>
    %c0_10 = arith.constant 0 : index
    %c0_11 = arith.constant 0 : index
    %24 = vector.load %arg4[%c0_10, %c0_11] : memref<512x16xf32, #tpu.memory_space<vmem>>, vector<512x16xf32>
    %cst_12 = arith.constant dense<0.000000e+00> : vector<128x16xf32>
    %25 = tpu.matmul %23, %24, %cst_12 {dimension_numbers = #tpu.dot_dimension_numbers<[1], [0], [0], [1], [0, 0, 1, 1], [], []>} : vector<128x512xf32>, vector<512x16xf32>, vector<128x16xf32> -> vector<128x16xf32>
    %cst_13 = arith.constant 9.99999993E-9 : f32
    %26 = vector.broadcast %cst_13 : f32 to vector<128x16xf32>
    %27 = arith.addf %25, %26 : vector<128x16xf32>
    %28 = math.rsqrt %27 : vector<128x16xf32>
    %c0_14 = arith.constant 0 : index
    %c0_15 = arith.constant 0 : index
    %29 = vector.load %arg5[%c0_14, %c0_15] : memref<16x512xf32, #tpu.memory_space<vmem>>, vector<16x512xf32>
    %cst_16 = arith.constant dense<0.000000e+00> : vector<128x512xf32>
    %30 = tpu.matmul %28, %29, %cst_16 {dimension_numbers = #tpu.dot_dimension_numbers<[1], [0], [0], [1], [0, 0, 1, 1], [], []>} : vector<128x16xf32>, vector<16x512xf32>, vector<128x512xf32> -> vector<128x512xf32>
    %31 = arith.mulf %22, %30 : vector<128x512xf32>
    %32 = arith.truncf %31 : vector<128x512xf32> to vector<128x512xbf16>
    %c0_17 = arith.constant 0 : index
    %c0_18 = arith.constant 0 : index
    %33 = vector.load %arg6[%c0_17, %c0_18] : memref<512x512xbf16, #tpu.memory_space<vmem>>, vector<512x512xbf16>
    %cst_19 = arith.constant dense<0.000000e+00> : vector<128x512xf32>
    %34 = tpu.matmul %32, %33, %cst_19 {dimension_numbers = #tpu.dot_dimension_numbers<[1], [0], [0], [1], [0, 0, 1, 1], [], []>} : vector<128x512xbf16>, vector<512x512xbf16>, vector<128x512xf32> -> vector<128x512xf32>
    %35 = vector.extract_strided_slice %0 {offsets = [1, 0], sizes = [1, 512], strides = [1, 1]} : vector<3x512xf32> to vector<1x512xf32>
    %36 = vector.broadcast %35 : vector<1x512xf32> to vector<128x512xf32>
    %37 = arith.addf %34, %36 : vector<128x512xf32>
    %cst_20 = arith.constant 0.000000e+00 : f32
    %38 = vector.broadcast %cst_20 : f32 to vector<128x512xf32>
    %39 = arith.cmpf oge, %37, %38 : vector<128x512xf32>
    %cst_21 = arith.constant 2.000000e-01 : f32
    %40 = vector.broadcast %cst_21 : f32 to vector<128x512xf32>
    %41 = arith.mulf %40, %37 : vector<128x512xf32>
    %42 = arith.select %39, %37, %41 : vector<128x512xi1>, vector<128x512xf32>
    %43 = arith.mulf %42, %42 : vector<128x512xf32>
    %c0_22 = arith.constant 0 : index
    %c0_23 = arith.constant 0 : index
    %44 = vector.load %arg4[%c0_22, %c0_23] : memref<512x16xf32, #tpu.memory_space<vmem>>, vector<512x16xf32>
    %cst_24 = arith.constant dense<0.000000e+00> : vector<128x16xf32>
    %45 = tpu.matmul %43, %44, %cst_24 {dimension_numbers = #tpu.dot_dimension_numbers<[1], [0], [0], [1], [0, 0, 1, 1], [], []>} : vector<128x512xf32>, vector<512x16xf32>, vector<128x16xf32> -> vector<128x16xf32>
    %cst_25 = arith.constant 9.99999993E-9 : f32
    %46 = vector.broadcast %cst_25 : f32 to vector<128x16xf32>
    %47 = arith.addf %45, %46 : vector<128x16xf32>
    %48 = math.rsqrt %47 : vector<128x16xf32>
    %c0_26 = arith.constant 0 : index
    %c0_27 = arith.constant 0 : index
    %49 = vector.load %arg5[%c0_26, %c0_27] : memref<16x512xf32, #tpu.memory_space<vmem>>, vector<16x512xf32>
    %cst_28 = arith.constant dense<0.000000e+00> : vector<128x512xf32>
    %50 = tpu.matmul %48, %49, %cst_28 {dimension_numbers = #tpu.dot_dimension_numbers<[1], [0], [0], [1], [0, 0, 1, 1], [], []>} : vector<128x16xf32>, vector<16x512xf32>, vector<128x512xf32> -> vector<128x512xf32>
    %51 = arith.mulf %42, %50 : vector<128x512xf32>
    %52 = arith.truncf %51 : vector<128x512xf32> to vector<128x512xbf16>
    %c0_29 = arith.constant 0 : index
    %c0_30 = arith.constant 0 : index
    %53 = vector.load %arg7[%c0_29, %c0_30] : memref<512x128xbf16, #tpu.memory_space<vmem>>, vector<512x128xbf16>
    %cst_31 = arith.constant dense<0.000000e+00> : vector<128x128xf32>
    %54 = tpu.matmul %52, %53, %cst_31 {dimension_numbers = #tpu.dot_dimension_numbers<[1], [0], [0], [1], [0, 0, 1, 1], [], []>} : vector<128x512xbf16>, vector<512x128xbf16>, vector<128x128xf32> -> vector<128x128xf32>
    %55 = vector.extract_strided_slice %0 {offsets = [2, 0], sizes = [1, 128], strides = [1, 1]} : vector<3x512xf32> to vector<1x128xf32>
    %56 = vector.broadcast %55 : vector<1x128xf32> to vector<128x128xf32>
    %57 = arith.addf %54, %56 : vector<128x128xf32>
    %c0_32 = arith.constant 0 : index
    %c0_33 = arith.constant 0 : index
    %58 = vector.load %arg8[%c0_32, %c0_33] : memref<128x128xf32, #tpu.memory_space<vmem>>, vector<128x128xf32>
    tpu.vector_store %arg8[%c0_32, %c0_33], %57 {strides = array<i32>} : memref<128x128xf32, #tpu.memory_space<vmem>>, vector<128x128xf32>,
    return
  }
  func.func @transform_0(%arg0: i32) -> (i32, i32) {
    %c0_i32 = arith.constant 0 : i32
    %c0_i32_0 = arith.constant 0 : i32
    return %arg0, %c0_i32 : i32, i32
  }
  func.func @transform_1(%arg0: i32) -> (i32, i32) {
    %c0_i32 = arith.constant 0 : i32
    %c0_i32_0 = arith.constant 0 : i32
    %c0_i32_1 = arith.constant 0 : i32
    return %c0_i32, %c0_i32_0 : i32, i32
  }
  func.func @transform_2(%arg0: i32) -> (i32, i32) {
    %c0_i32 = arith.constant 0 : i32
    %c0_i32_0 = arith.constant 0 : i32
    %c0_i32_1 = arith.constant 0 : i32
    return %c0_i32, %c0_i32_0 : i32, i32
  }
  func.func @transform_3(%arg0: i32) -> (i32, i32) {
    %c0_i32 = arith.constant 0 : i32
    %c0_i32_0 = arith.constant 0 : i32
    %c0_i32_1 = arith.constant 0 : i32
    return %c0_i32, %c0_i32_0 : i32, i32
  }
  func.func @transform_4(%arg0: i32) -> (i32, i32) {
    %c0_i32 = arith.constant 0 : i32
    %c0_i32_0 = arith.constant 0 : i32
    %c0_i32_1 = arith.constant 0 : i32
    return %c0_i32, %c0_i32_0 : i32, i32
  }
  func.func @transform_5(%arg0: i32) -> (i32, i32) {
    %c0_i32 = arith.constant 0 : i32
    %c0_i32_0 = arith.constant 0 : i32
    %c0_i32_1 = arith.constant 0 : i32
    return %c0_i32, %c0_i32_0 : i32, i32
  }
  func.func @transform_6(%arg0: i32) -> (i32, i32) {
    %c0_i32 = arith.constant 0 : i32
    %c0_i32_0 = arith.constant 0 : i32
    %c0_i32_1 = arith.constant 0 : i32
    return %c0_i32, %c0_i32_0 : i32, i32
  }
  func.func @transform_7(%arg0: i32) -> (i32, i32) {
    %c0_i32 = arith.constant 0 : i32
    %c0_i32_0 = arith.constant 0 : i32
    return %arg0, %c0_i32 : i32, i32
  }
}

</mosaic_0001>

<llo_original>
// kernel: gnet_forward.1
$region0: #{gnet_forward.1}
  #allocation0 [shape = 'u32[]', space=smem, size = 0x4, offset = 0x4, fixed_abs, tag = 'smem constant byte address 0x4 - core index']
  #allocation1 [shape = 'u32[144,128]{1,0:T(1,128)}', space=vmem, size = 0x12000, scoped, tag = 'internal scratch']
  %s0 = inlined_call_operand.vmem [shape: f32[256,32], index: 0, kind: input, shape index: {}]
  %s1 = inlined_call_operand.vmem [shape: bf16[32,512], index: 1, kind: input, shape index: {}]
  %s2 = inlined_call_operand.vmem [shape: f32[3,512], index: 2, kind: input, shape index: {}]
  %s3 = inlined_call_operand.vmem [shape: f32[512,16], index: 3, kind: input, shape index: {}]
  %s4 = inlined_call_operand.vmem [shape: f32[16,512], index: 4, kind: input, shape index: {}]
  %s5 = inlined_call_operand.hbm [shape: bf16[512,512], index: 5, kind: input, shape index: {}]
  %s6 = inlined_call_operand.vmem [shape: bf16[512,128], index: 6, kind: input, shape index: {}]
  %s7 = inlined_call_operand.vmem [shape: f32[256,128], index: 7, kind: output, shape index: {}]
  %s8 = sld [smem:[#allocation0]]
  $region65: #{gnet_forward.1} parent=0
    _
  %s10 = ssub.s32 1, %s8
  %s11 = scalar_select 0, %s10, %s8
  $region1: #{gnet_forward.1} parent=0
    #allocation2 [shape = 'u8[524288]{0}', space=vmem, size = 0x80000, scoped, tag = 'input window, operand 5, single buffered']
    #allocation3 [shape = 's32[2]{0}', space=sflag, size = 0x8, scoped, tag = 'scoped memory for gnet_forward.1']
    %12 = vsyncpa [#allocation3], 0
    loop: start=0, step=1, limit=4
    $region2: #{gnet_forward.1} parent=1 // loop_pre_header
      _
    $region3: #{gnet_forward.1} parent=1 // loop_header
      %s14 = sphi 0, %s18
      %p15 = scmp.ge.s32.totalorder %s14, 4
      %s24 = sphi 0, %s26
      %s27 = sphi 0, %s24
      %s28 = sphi 0, %s27
      %s44 = sphi 0, %s28
      %s48 = sphi 0, %s48
      %s50 = sphi 0, %s48
      %s51 = sphi 0, %s50
      %s65 = sphi 0, %s51
      %s69 = sphi 0, %s69
      %s71 = sphi 0, %s69
      %s72 = sphi 0, %s71
      %s86 = sphi 0, %s72
      %s90 = sphi 0, %s90
      %s92 = sphi 0, %s90
      %s93 = sphi 0, %s92
      %s107 = sphi 0, %s93
      %s111 = sphi 0, %s111
      %s113 = sphi 0, %s111
      %s114 = sphi 0, %s113
      %s128 = sphi 0, %s114
      %s132 = sphi 0, %s132
      %s134 = sphi 0, %s132
      %s135 = sphi 0, %s134
      %s149 = sphi 0, %s135
      %s153 = sphi 0, %s153
      %s155 = sphi 0, %s153
      %s156 = sphi 0, %s155
      %s170 = sphi 0, %s156
      %s176 = sphi 0, %s178
      %s179 = sphi 0, %s176
      %s180 = sphi 0, %s179
      %s196 = sphi 0, %s180
    $region4: #{gnet_forward.1} parent=1 // loop_header_branch
      %17 = sbr.rel (%p15) target = $region8
    $region5: #{gnet_forward.1} parent=1 // loop_body
      %s19 = ssub.s32 %s14, 1
      %s20 = ssub.s32 %s14, 2
      %s21 = sadd.s32 %s14, 1
      %s22 = ssub.s32 %s14, %s21
      %p23 = scmp.eq.s32.totalorder %s22, 0
      %s25 = sadd.s32 %s24, 1
      %s26 = scalar_select %p23, %s24, %s25
      %p29 = pneg %p23
      %p30 = scmp.eq.s32.totalorder %s14, 1
      %p31 = por %p29, %p30
      %p32 = scmp.ne.s32.totalorder %s24, %s27
      %p33 = scmp.eq.s32.totalorder %s14, 0
      %p34 = por %p32, %p33
      %p35 = scmp.ne.s32.totalorder %s24, %s27
      %p36 = scmp.eq.s32.totalorder %s19, 1
      %p37 = por %p35, %p36
      %p38 = scmp.ne.s32.totalorder %s27, %s28
      %p39 = scmp.eq.s32.totalorder %s19, 0
      %p40 = por %p38, %p39
      %p41 = scmp.ne.s32.totalorder %s27, %s28
      %p42 = scmp.eq.s32.totalorder %s20, 1
      %p43 = por %p41, %p42
      %p45 = scmp.ne.s32.totalorder %s28, %s44
      %p46 = scmp.eq.s32.totalorder %s20, 0
      %p47 = por %p45, %p46
      %s49 = sadd.s32 %s48, 1
      %p52 = scmp.eq.s32.totalorder %s14, 1
      %p53 = scmp.ne.s32.totalorder %s48, %s50
      %p54 = scmp.eq.s32.totalorder %s14, 0
      %p55 = por %p53, %p54
      %p56 = scmp.ne.s32.totalorder %s48, %s50
      %p57 = scmp.eq.s32.totalorder %s19, 1
      %p58 = por %p56, %p57
      %p59 = scmp.ne.s32.totalorder %s50, %s51
      %p60 = scmp.eq.s32.totalorder %s19, 0
      %p61 = por %p59, %p60
      %p62 = scmp.ne.s32.totalorder %s50, %s51
      %p63 = scmp.eq.s32.totalorder %s20, 1
      %p64 = por %p62, %p63
      %p66 = scmp.ne.s32.totalorder %s51, %s65
      %p67 = scmp.eq.s32.totalorder %s20, 0
      %p68 = por %p66, %p67
      %s70 = sadd.s32 %s69, 1
      %p73 = scmp.eq.s32.totalorder %s14, 1
      %p74 = scmp.ne.s32.totalorder %s69, %s71
      %p75 = scmp.eq.s32.totalorder %s14, 0
      %p76 = por %p74, %p75
      %p77 = scmp.ne.s32.totalorder %s69, %s71
      %p78 = scmp.eq.s32.totalorder %s19, 1
      %p79 = por %p77, %p78
      %p80 = scmp.ne.s32.totalorder %s71, %s72
      %p81 = scmp.eq.s32.totalorder %s19, 0
      %p82 = por %p80, %p81
      %p83 = scmp.ne.s32.totalorder %s71, %s72
      %p84 = scmp.eq.s32.totalorder %s20, 1
      %p85 = por %p83, %p84
      %p87 = scmp.ne.s32.totalorder %s72, %s86
      %p88 = scmp.eq.s32.totalorder %s20, 0
      %p89 = por %p87, %p88
      %s91 = sadd.s32 %s90, 1
      %p94 = scmp.eq.s32.totalorder %s14, 1
      %p95 = scmp.ne.s32.totalorder %s90, %s92
      %p96 = scmp.eq.s32.totalorder %s14, 0
      %p97 = por %p95, %p96
      %p98 = scmp.ne.s32.totalorder %s90, %s92
      %p99 = scmp.eq.s32.totalorder %s19, 1
      %p100 = por %p98, %p99
      %p101 = scmp.ne.s32.totalorder %s92, %s93
      %p102 = scmp.eq.s32.totalorder %s19, 0
      %p103 = por %p101, %p102
      %p104 = scmp.ne.s32.totalorder %s92, %s93
      %p105 = scmp.eq.s32.totalorder %s20, 1
      %p106 = por %p104, %p105
      %p108 = scmp.ne.s32.totalorder %s93, %s107
      %p109 = scmp.eq.s32.totalorder %s20, 0
      %p110 = por %p108, %p109
      %s112 = sadd.s32 %s111, 1
      %p115 = scmp.eq.s32.totalorder %s14, 1
      %p116 = scmp.ne.s32.totalorder %s111, %s113
      %p117 = scmp.eq.s32.totalorder %s14, 0
      %p118 = por %p116, %p117
      %p119 = scmp.ne.s32.totalorder %s111, %s113
      %p120 = scmp.eq.s32.totalorder %s19, 1
      %p121 = por %p119, %p120
      %p122 = scmp.ne.s32.totalorder %s113, %s114
      %p123 = scmp.eq.s32.totalorder %s19, 0
      %p124 = por %p122, %p123
      %p125 = scmp.ne.s32.totalorder %s113, %s114
      %p126 = scmp.eq.s32.totalorder %s20, 1
      %p127 = por %p125, %p126
      %p129 = scmp.ne.s32.totalorder %s114, %s128
      %p130 = scmp.eq.s32.totalorder %s20, 0
      %p131 = por %p129, %p130
      %s133 = sadd.s32 %s132, 1
      %p136 = scmp.eq.s32.totalorder %s14, 1
      %p137 = scmp.ne.s32.totalorder %s132, %s134
      %p138 = scmp.eq.s32.totalorder %s14, 0
      %p139 = por %p137, %p138
      %p140 = scmp.ne.s32.totalorder %s132, %s134
      %p141 = scmp.eq.s32.totalorder %s19, 1
      %p142 = por %p140, %p141
      %p143 = scmp.ne.s32.totalorder %s134, %s135
      %p144 = scmp.eq.s32.totalorder %s19, 0
      %p145 = por %p143, %p144
      %p146 = scmp.ne.s32.totalorder %s134, %s135
      %p147 = scmp.eq.s32.totalorder %s20, 1
      %p148 = por %p146, %p147
      %p150 = scmp.ne.s32.totalorder %s135, %s149
      %p151 = scmp.eq.s32.totalorder %s20, 0
      %p152 = por %p150, %p151
      %s154 = sadd.s32 %s153, 1
      %p157 = scmp.eq.s32.totalorder %s14, 1
      %p158 = scmp.ne.s32.totalorder %s153, %s155
      %p159 = scmp.eq.s32.totalorder %s14, 0
      %p160 = por %p158, %p159
      %p161 = scmp.ne.s32.totalorder %s153, %s155
      %p162 = scmp.eq.s32.totalorder %s19, 1
      %p163 = por %p161, %p162
      %p164 = scmp.ne.s32.totalorder %s155, %s156
      %p165 = scmp.eq.s32.totalorder %s19, 0
      %p166 = por %p164, %p165
      %p167 = scmp.ne.s32.totalorder %s155, %s156
      %p168 = scmp.eq.s32.totalorder %s20, 1
      %p169 = por %p167, %p168
      %p171 = scmp.ne.s32.totalorder %s156, %s170
      %p172 = scmp.eq.s32.totalorder %s20, 0
      %p173 = por %p171, %p172
      %s174 = ssub.s32 %s14, %s21
      %p175 = scmp.eq.s32.totalorder %s174, 0
      %s177 = sadd.s32 %s176, 1
      %s178 = scalar_select %p175, %s176, %s177
      %p181 = pneg %p175
      %p182 = scmp.eq.s32.totalorder %s14, 1
      %p183 = por %p181, %p182
      %p184 = scmp.ne.s32.totalorder %s176, %s179
      %p185 = scmp.eq.s32.totalorder %s14, 0
      %p186 = por %p184, %p185
      %p187 = scmp.ne.s32.totalorder %s176, %s179
      %p188 = scmp.eq.s32.totalorder %s19, 1
      %p189 = por %p187, %p188
      %p190 = scmp.ne.s32.totalorder %s179, %s180
      %p191 = scmp.eq.s32.totalorder %s19, 0
      %p192 = por %p190, %p191
      %p193 = scmp.ne.s32.totalorder %s179, %s180
      %p194 = scmp.eq.s32.totalorder %s20, 1
      %p195 = por %p193, %p194
      %p197 = scmp.ne.s32.totalorder %s180, %s196
      %p198 = scmp.eq.s32.totalorder %s20, 0
      %p199 = por %p197, %p198
      %p200 = scmp.le.s32.totalorder 1, %s14
      %p201 = scmp.lt.s32.totalorder %s14, 3
      %p202 = pnand %p200, %p201
      %p203 = pneg %p202
      // Predicated region
      $region9: #{gnet_forward.1} parent=5 // pred_check
        _
      $region10: #{gnet_forward.1} parent=5 // pred_check_branch
        %205 = sbr.rel (%p202) target = $region12
      $region11: #{gnet_forward.1} parent=5 // pred_region
        %s206 = ssub.s32 %s14, 1
        // Predicated region
        $region13: #{gnet_forward.1} parent=11 // pred_check
          %p207 = pneg %p61
        $region14: #{gnet_forward.1} parent=11 // pred_check_branch
          %209 = sbr.rel (%p207) target = $region16
        $region15: #{gnet_forward.1} parent=11 // pred_region
          _
        $region16: #{gnet_forward.1} parent=11 // pred_fallthru
          _
        // Predicated region
        $region17: #{gnet_forward.1} parent=11 // pred_check
          %p210 = pneg %p82
        $region18: #{gnet_forward.1} parent=11 // pred_check_branch
          %212 = sbr.rel (%p210) target = $region20
        $region19: #{gnet_forward.1} parent=11 // pred_region
          _
        $region20: #{gnet_forward.1} parent=11 // pred_fallthru
          _
        // Predicated region
        $region21: #{gnet_forward.1} parent=11 // pred_check
          %p213 = pneg %p103
        $region22: #{gnet_forward.1} parent=11 // pred_check_branch
          %215 = sbr.rel (%p213) target = $region24
        $region23: #{gnet_forward.1} parent=11 // pred_region
          _
        $region24: #{gnet_forward.1} parent=11 // pred_fallthru
          _
        // Predicated region
        $region25: #{gnet_forward.1} parent=11 // pred_check
          %p216 = pneg %p124
        $region26: #{gnet_forward.1} parent=11 // pred_check_branch
          %218 = sbr.rel (%p216) target = $region28
        $region27: #{gnet_forward.1} parent=11 // pred_region
          _
        $region28: #{gnet_forward.1} parent=11 // pred_fallthru
          _
        // Predicated region
        $region29: #{gnet_forward.1} parent=11 // pred_check
          %p219 = pneg %p145
        $region30: #{gnet_forward.1} parent=11 // pred_check_branch
          %221 = sbr.rel (%p219) target = $region32
        $region31: #{gnet_forward.1} parent=11 // pred_region
          %s223 = ssub.s32 16384, 16384
          %224 = vsyncadd [#allocation3], %s223
          %s225 = sshll.u32 [#allocation2], 4
          %s226 = int_to_ptr.vmem [resolvable:$true] %s225
          %231 = dma.hbm_to_vmem [thread:$0]  %s5, 16384, %s226, [#allocation3], 256, 256, 16
        $region32: #{gnet_forward.1} parent=11 // pred_fallthru
          _
        // Predicated region
        $region33: #{gnet_forward.1} parent=11 // pred_check
          %p232 = pneg %p166
        $region34: #{gnet_forward.1} parent=11 // pred_check_branch
          %234 = sbr.rel (%p232) target = $region36
        $region35: #{gnet_forward.1} parent=11 // pred_region
          _
        $region36: #{gnet_forward.1} parent=11 // pred_fallthru
          _
      $region12: #{gnet_forward.1} parent=5 // pred_fallthru
        _
      %p235 = scmp.lt.s32.totalorder %s14, 2
      // Predicated region
      $region37: #{gnet_forward.1} parent=5 // pred_check
        %p236 = pneg %p235
      $region38: #{gnet_forward.1} parent=5 // pred_check_branch
        %238 = sbr.rel (%p236) target = $region40
      $region39: #{gnet_forward.1} parent=5 // pred_region
        // Predicated region
        $region41: #{gnet_forward.1} parent=39 // pred_check
          %p239 = pneg %p34
        $region42: #{gnet_forward.1} parent=39 // pred_check_branch
          %241 = sbr.rel (%p239) target = $region44
        $region43: #{gnet_forward.1} parent=39 // pred_region
          %s242 = smul.u32 16, %s14
          %p243 = scmp.lt.s32.totalorder %s242, 31
          %s244 = scalar_select %p243, %s242, 31
          %s245 = smul.addr %s244, 8
          %s246 = scalar_lea.vmem %s0, %s245
          %s247 = smul.u32 16, %s14
        $region44: #{gnet_forward.1} parent=39 // pred_fallthru
          _
      $region40: #{gnet_forward.1} parent=5 // pred_fallthru
        _
      %p248 = scmp.le.s32.totalorder 1, %s14
      %p249 = scmp.lt.s32.totalorder %s14, 3
      %p250 = pnand %p248, %p249
      %p251 = pneg %p250
      // Predicated region
      $region45: #{gnet_forward.1} parent=5 // pred_check
        _
      $region46: #{gnet_forward.1} parent=5 // pred_check_branch
        %253 = sbr.rel (%p250) target = $region48
      $region47: #{gnet_forward.1} parent=5 // pred_region
        %s254 = ssub.s32 %s14, 1
        // Predicated region
        $region49: #{gnet_forward.1} parent=47 // pred_check
          %p255 = pneg %p145
        $region50: #{gnet_forward.1} parent=47 // pred_check_branch
          %257 = sbr.rel (%p255) target = $region52
        $region51: #{gnet_forward.1} parent=47 // pred_region
          %258 = dma.done [#allocation3], 16384
        $region52: #{gnet_forward.1} parent=47 // pred_fallthru
          _
        %s259 = smul.u32 16, %s19
        %p260 = scmp.lt.s32.totalorder %s259, 31
        %s261 = scalar_select %p260, %s259, 31
        %s262 = smul.addr %s261, 8
        %s263 = scalar_lea.vmem %s0, %s262
        %p264 = pneg %p40
        %p265 = pneg %p37
        %p266 = pneg %p61
        %p267 = pneg %p58
        %p268 = pneg %p82
        %p269 = pneg %p79
        %p270 = pneg %p103
        %p271 = pneg %p100
        %p272 = pneg %p124
        %p273 = pneg %p121
        %p274 = pneg %p145
        %p275 = pneg %p142
        %p276 = pneg %p166
        %p277 = pneg %p163
        %p278 = pneg %p192
        %p279 = pneg %p189
        %s280 = smul.u32 16, %s19
        %p281 = scmp.lt.s32.totalorder %s280, 31
        %s282 = scalar_select %p281, %s280, 31
        %s283 = smul.addr %s282, 8
        %s284 = scalar_lea.vmem %s7, %s283
        %s285 = smul.u32 16, %s19
        %p286 = scmp.lt.s32.totalorder %s285, 31
        %s287 = scalar_select %p286, %s285, 31
        %s288 = smul.addr %s287, 8
        %s289 = scalar_lea.vmem %s0, %s288
        %s290 = smul.u32 16, %s19
        %s291 = smul.u32 16, %s19
        %p292 = scmp.lt.s32.totalorder %s291, 31
        %s293 = scalar_select %p292, %s291, 31
        %s294 = smul.addr %s293, 8
        %s295 = scalar_lea.vmem %s7, %s294
        %s296 = smul.u32 16, %s19
        %v298 = vld [vmem:[%s2] sm:$0x77]
        %v299 = vld [vmem:[%s2 + $0x8] sm:$0x77]
        %v300 = vld [vmem:[%s289] sm:$0xff]
        %v301 = vld [vmem:[%s289 + $0x8] sm:$0xff]
        %v302 = vld [vmem:[%s289 + $0x10] sm:$0xff]
        %v303 = vld [vmem:[%s289 + $0x18] sm:$0xff]
        %v304 = vld [vmem:[%s289 + $0x20] sm:$0xff]
        %v305 = vld [vmem:[%s289 + $0x28] sm:$0xff]
        %v306 = vld [vmem:[%s289 + $0x30] sm:$0xff]
        %v307 = vld [vmem:[%s289 + $0x38] sm:$0xff]
        %v308 = vld [vmem:[%s289 + $0x40] sm:$0xff]
        %v309 = vld [vmem:[%s289 + $0x48] sm:$0xff]
        %v310 = vld [vmem:[%s289 + $0x50] sm:$0xff]
        %v311 = vld [vmem:[%s289 + $0x58] sm:$0xff]
        %v312 = vld [vmem:[%s289 + $0x60] sm:$0xff]
        %v313 = vld [vmem:[%s289 + $0x68] sm:$0xff]
        %v314 = vld [vmem:[%s289 + $0x70] sm:$0xff]
        %v315 = vld [vmem:[%s289 + $0x78] sm:$0xff]
        %v316 = vmul.f32 %v300, %v300
        %v317 = vmul.f32 %v301, %v301
        %v318 = vmul.f32 %v302, %v302
        %v319 = vmul.f32 %v303, %v303
        %v320 = vmul.f32 %v304, %v304
        %v321 = vmul.f32 %v305, %v305
        %v322 = vmul.f32 %v306, %v306
        %v323 = vmul.f32 %v307, %v307
        %v324 = vmul.f32 %v308, %v308
        %v325 = vmul.f32 %v309, %v309
        %v326 = vmul.f32 %v310, %v310
        %v327 = vmul.f32 %v311, %v311
        %v328 = vmul.f32 %v312, %v312
        %v329 = vmul.f32 %v313, %v313
        %v330 = vmul.f32 %v314, %v314
        %v331 = vmul.f32 %v315, %v315
        %vm332 = vcmask 261120
        %v333 = vsel %vm332, %v316, 0.0
        %334 = vadd.xlane.f32.xlu0 %v333
        %v335 = vpop.xlane.xlu0 %334
        %v336 = vsel %vm332, %v317, 0.0
        %337 = vadd.xlane.f32.xlu0 %v336
        %v338 = vpop.xlane.xlu0 %337
        %v339 = vsel %vm332, %v318, 0.0
        %340 = vadd.xlane.f32.xlu0 %v339
        %v341 = vpop.xlane.xlu0 %340
        %v342 = vsel %vm332, %v319, 0.0
        %343 = vadd.xlane.f32.xlu0 %v342
        %v344 = vpop.xlane.xlu0 %343
        %v345 = vsel %vm332, %v320, 0.0
        %346 = vadd.xlane.f32.xlu0 %v345
        %v347 = vpop.xlane.xlu0 %346
        %v348 = vsel %vm332, %v321, 0.0
        %349 = vadd.xlane.f32.xlu0 %v348
        %v350 = vpop.xlane.xlu0 %349
        %v351 = vsel %vm332, %v322, 0.0
        %352 = vadd.xlane.f32.xlu0 %v351
        %v353 = vpop.xlane.xlu0 %352
        %v354 = vsel %vm332, %v323, 0.0
        %355 = vadd.xlane.f32.xlu0 %v354
        %v356 = vpop.xlane.xlu0 %355
        %v357 = vsel %vm332, %v324, 0.0
        %358 = vadd.xlane.f32.xlu0 %v357
        %v359 = vpop.xlane.xlu0 %358
        %v360 = vsel %vm332, %v325, 0.0
        %361 = vadd.xlane.f32.xlu0 %v360
        %v362 = vpop.xlane.xlu0 %361
        %v363 = vsel %vm332, %v326, 0.0
        %364 = vadd.xlane.f32.xlu0 %v363
        %v365 = vpop.xlane.xlu0 %364
        %v366 = vsel %vm332, %v327, 0.0
        %367 = vadd.xlane.f32.xlu0 %v366
        %v368 = vpop.xlane.xlu0 %367
        %v369 = vsel %vm332, %v328, 0.0
        %370 = vadd.xlane.f32.xlu0 %v369
        %v371 = vpop.xlane.xlu0 %370
        %v372 = vsel %vm332, %v329, 0.0
        %373 = vadd.xlane.f32.xlu0 %v372
        %v374 = vpop.xlane.xlu0 %373
        %v375 = vsel %vm332, %v330, 0.0
        %376 = vadd.xlane.f32.xlu0 %v375
        %v377 = vpop.xlane.xlu0 %376
        %v378 = vsel %vm332, %v331, 0.0
        %379 = vadd.xlane.f32.xlu0 %v378
        %v380 = vpop.xlane.xlu0 %379
        %v381 = vrcp.pop 32.0
        %v382 = vmul.f32 %v335, %v381
        %v383 = vmul.f32 %v338, %v381
        %v384 = vmul.f32 %v341, %v381
        %v385 = vmul.f32 %v344, %v381
        %v386 = vmul.f32 %v347, %v381
        %v387 = vmul.f32 %v350, %v381
        %v388 = vmul.f32 %v353, %v381
        %v389 = vmul.f32 %v356, %v381
        %v390 = vmul.f32 %v359, %v381
        %v391 = vmul.f32 %v362, %v381
        %v392 = vmul.f32 %v365, %v381
        %v393 = vmul.f32 %v368, %v381
        %v394 = vmul.f32 %v371, %v381
        %v395 = vmul.f32 %v374, %v381
        %v396 = vmul.f32 %v377, %v381
        %v397 = vmul.f32 %v380, %v381
        %v398 = vadd.f32 %v382, 1e-08
        %v399 = vadd.f32 %v383, 1e-08
        %v400 = vadd.f32 %v384, 1e-08
        %v401 = vadd.f32 %v385, 1e-08
        %v402 = vadd.f32 %v386, 1e-08
        %v403 = vadd.f32 %v387, 1e-08
        %v404 = vadd.f32 %v388, 1e-08
        %v405 = vadd.f32 %v389, 1e-08
        %v406 = vadd.f32 %v390, 1e-08
        %v407 = vadd.f32 %v391, 1e-08
        %v408 = vadd.f32 %v392, 1e-08
        %v409 = vadd.f32 %v393, 1e-08
        %v410 = vadd.f32 %v394, 1e-08
        %v411 = vadd.f32 %v395, 1e-08
        %v412 = vadd.f32 %v396, 1e-08
        %v413 = vadd.f32 %v397, 1e-08
        %v414 = vrsqrt.pop %v398
        %v415 = vrsqrt.pop %v399
        %v416 = vrsqrt.pop %v400
        %v417 = vrsqrt.pop %v401
        %v418 = vrsqrt.pop %v402
        %v419 = vrsqrt.pop %v403
        %v420 = vrsqrt.pop %v404
        %v421 = vrsqrt.pop %v405
        %v422 = vrsqrt.pop %v406
        %v423 = vrsqrt.pop %v407
        %v424 = vrsqrt.pop %v408
        %v425 = vrsqrt.pop %v409
        %v426 = vrsqrt.pop %v410
        %v427 = vrsqrt.pop %v411
        %v428 = vrsqrt.pop %v412
        %v429 = vrsqrt.pop %v413
        %v430 = vmul.f32 %v300, %v414
        %v431 = vmul.f32 %v301, %v415
        %v432 = vmul.f32 %v302, %v416
        %v433 = vmul.f32 %v303, %v417
        %v434 = vmul.f32 %v304, %v418
        %v435 = vmul.f32 %v305, %v419
        %v436 = vmul.f32 %v306, %v420
        %v437 = vmul.f32 %v307, %v421
        %v438 = vmul.f32 %v308, %v422
        %v439 = vmul.f32 %v309, %v423
        %v440 = vmul.f32 %v310, %v424
        %v441 = vmul.f32 %v311, %v425
        %v442 = vmul.f32 %v312, %v426
        %v443 = vmul.f32 %v313, %v427
        %v444 = vmul.f32 %v314, %v428
        %v445 = vmul.f32 %v315, %v429
        %v446 = vpack.c.bf16 %v431, %v430
        %v447 = vpack.c.bf16 %v433, %v432
        %v448 = vpack.c.bf16 %v435, %v434
        %v449 = vpack.c.bf16 %v437, %v436
        %v450 = vpack.c.bf16 %v439, %v438
        %v451 = vpack.c.bf16 %v441, %v440
        %v452 = vpack.c.bf16 %v443, %v442
        %v453 = vpack.c.bf16 %v445, %v444
        %v454 = vld [vmem:[%s1] sm:$0xff]
        %v455 = vld [vmem:[%s1 + $0x8] sm:$0xff]
        %v456 = vld [vmem:[%s1 + $0x10] sm:$0xff]
        %v457 = vld [vmem:[%s1 + $0x18] sm:$0xff]
        %v458 = vld [vmem:[%s1 + $0x20] sm:$0xff]
        %v459 = vld [vmem:[%s1 + $0x28] sm:$0xff]
        %v460 = vld [vmem:[%s1 + $0x30] sm:$0xff]
        %v461 = vld [vmem:[%s1 + $0x38] sm:$0xff]
        %v464 = vlaneseq
        %v465 = vshrl.u32 %v464, 7
        %v466 = vsub.s32 0, %v465
        %v467 = vrot.slane %v298, %v466
        %v468 = vlaneseq
        %v469 = vshrl.u32 %v468, 7
        %v470 = vsub.s32 4, %v469
        %v471 = vrot.slane %v298, %v470
        %v472 = vlaneseq
        %v473 = vshrl.u32 %v472, 7
        %v474 = vsub.s32 0, %v473
        %v475 = vrot.slane %v299, %v474
        %v476 = vlaneseq
        %v477 = vshrl.u32 %v476, 7
        %v478 = vsub.s32 4, %v477
        %v479 = vrot.slane %v299, %v478
        %v484 = vlaneseq
        %v485 = vshrl.u32 %v484, 7
        %v486 = vsub.s32 0, %v485
        %v487 = vrot.slane %v467, %v486
        %v488 = vlaneseq
        %v489 = vshrl.u32 %v488, 7
        %v490 = vsub.s32 0, %v489
        %v491 = vrot.slane %v471, %v490
        %v492 = vlaneseq
        %v493 = vshrl.u32 %v492, 7
        %v494 = vsub.s32 0, %v493
        %v495 = vrot.slane %v475, %v494
        %v496 = vlaneseq
        %v497 = vshrl.u32 %v496, 7
        %v498 = vsub.s32 0, %v497
        %v499 = vrot.slane %v479, %v498
        %v508 = vunpack.c.l.b16 %v454
        %v509 = vunpack.c.h.b16 %v454
        %v510 = vunpack.c.l.b16 %v455
        %v511 = vunpack.c.h.b16 %v455
        %v512 = vunpack.c.l.b16 %v456
        %v513 = vunpack.c.h.b16 %v456
        %v514 = vunpack.c.l.b16 %v457
        %v515 = vunpack.c.h.b16 %v457
        %v516 = vunpack.c.l.b16 %v458
        %v517 = vunpack.c.h.b16 %v458
        %v518 = vunpack.c.l.b16 %v459
        %v519 = vunpack.c.h.b16 %v459
        %v520 = vunpack.c.l.b16 %v460
        %v521 = vunpack.c.h.b16 %v460
        %v522 = vunpack.c.l.b16 %v461
        %v523 = vunpack.c.h.b16 %v461
        %v524 = vpack.c.b16 %v512, %v508
        %v525 = vpack.c.b16 %v513, %v509
        %v526 = vpack.c.b16 %v514, %v510
        %v527 = vpack.c.b16 %v515, %v511
        %v528 = vpack.c.b16 %v520, %v516
        %v529 = vpack.c.b16 %v521, %v517
        %v530 = vpack.c.b16 %v522, %v518
        %v531 = vpack.c.b16 %v523, %v519
        %v541 = vsel %vm332, %v446, 0
        %v544 = vsel %vm332, %v447, 0
        %v547 = vsel %vm332, %v448, 0
        %v550 = vsel %vm332, %v449, 0
        %v553 = vsel %vm332, %v450, 0
        %v556 = vsel %vm332, %v451, 0
        %v559 = vsel %vm332, %v452, 0
        %v562 = vsel %vm332, %v453, 0
        %564 = vmatprep.subr.bf16.mxu0 0
        %565 = vmatpush1.bf16.msra.mxu0 0
        %566 = vmatprep.subr.bf16.mxu0 0
        %567 = vmatpush1.bf16.msra.mxu0 0
        %568 = vmatprep.subr.bf16.mxu0 0
        %569 = vmatpush1.bf16.msra.mxu0 0
        %570 = vmatprep.subr.bf16.mxu0 0
        %571 = vmatpush1.bf16.msra.mxu0 0
        %572 = vmatprep.subr.bf16.mxu0 0
        %573 = vmatpush1.bf16.msra.mxu0 0
        %574 = vmatprep.subr.bf16.mxu0 0
        %575 = vmatpush1.bf16.msra.mxu0 0
        %576 = vmatprep.subr.bf16.mxu0 %v529
        %577 = vmatpush1.bf16.msra.mxu0 %v528
        %578 = vmatprep.subr.bf16.mxu0 %v525
        %579 = vmatpush1.bf16.msra.mxu0 %v524
        %580 = vmatprep.subr.bf16.mxu0 0
        %581 = vmatpush2.bf16.msra.mxu0 0
        %582 = vmatprep.subr.bf16.mxu0 0
        %583 = vmatpush2.bf16.msra.mxu0 0
        %584 = vmatprep.subr.bf16.mxu0 0
        %585 = vmatpush2.bf16.msra.mxu0 0
        %586 = vmatprep.subr.bf16.mxu0 0
        %587 = vmatpush2.bf16.msra.mxu0 0
        %588 = vmatprep.subr.bf16.mxu0 0
        %589 = vmatpush2.bf16.msra.mxu0 0
        %590 = vmatprep.subr.bf16.mxu0 0
        %591 = vmatpush2.bf16.msra.mxu0 0
        %592 = vmatprep.subr.bf16.mxu0 0
        %593 = vmatpush2.bf16.msra.mxu0 0
        %594 = vmatprep.subr.bf16.mxu0 0
        %595 = vmatpush2.bf16.msra.mxu0 0
        %596 = vmatprep.mubr.bf16.mxu0 0
        %597 = vmatmul.mubr.bf16.gmra.mxu0 %v541
        %v598 = vpop.f32.mrf.mxu0
        %v599 = vadd.f32 %v487, %v598
        %v600 = vpop.f32.mrf.mxu0
        %v601 = vadd.f32 %v491, %v600
        %v602 = vpop.f32.mrf.mxu0
        %v603 = vadd.f32 %v487, %v602
        %v604 = vpop.f32.mrf.mxu0
        %v605 = vadd.f32 %v491, %v604
        %606 = vmatprep.mubr.bf16.mxu0 0
        %607 = vmatmul.mubr.bf16.gmra.mxu0 %v544
        %v608 = vpop.f32.mrf.mxu0
        %v609 = vadd.f32 %v487, %v608
        %v610 = vpop.f32.mrf.mxu0
        %v611 = vadd.f32 %v491, %v610
        %v612 = vpop.f32.mrf.mxu0
        %v613 = vadd.f32 %v487, %v612
        %v614 = vpop.f32.mrf.mxu0
        %v615 = vadd.f32 %v491, %v614
        %616 = vmatprep.mubr.bf16.mxu0 0
        %617 = vmatmul.mubr.bf16.gmra.mxu0 %v547
        %v618 = vpop.f32.mrf.mxu0
        %v619 = vadd.f32 %v487, %v618
        %v620 = vpop.f32.mrf.mxu0
        %v621 = vadd.f32 %v491, %v620
        %v622 = vpop.f32.mrf.mxu0
        %v623 = vadd.f32 %v487, %v622
        %v624 = vpop.f32.mrf.mxu0
        %v625 = vadd.f32 %v491, %v624
        %626 = vmatprep.mubr.bf16.mxu0 0
        %627 = vmatmul.mubr.bf16.gmra.mxu0 %v550
        %v628 = vpop.f32.mrf.mxu0
        %v629 = vadd.f32 %v487, %v628
        %v630 = vpop.f32.mrf.mxu0
        %v631 = vadd.f32 %v491, %v630
        %v632 = vpop.f32.mrf.mxu0
        %v633 = vadd.f32 %v487, %v632
        %v634 = vpop.f32.mrf.mxu0
        %v635 = vadd.f32 %v491, %v634
        %636 = vmatprep.mubr.bf16.mxu0 0
        %637 = vmatmul.mubr.bf16.gmra.mxu0 %v553
        %v638 = vpop.f32.mrf.mxu0
        %v639 = vadd.f32 %v487, %v638
        %v640 = vpop.f32.mrf.mxu0
        %v641 = vadd.f32 %v491, %v640
        %v642 = vpop.f32.mrf.mxu0
        %v643 = vadd.f32 %v487, %v642
        %v644 = vpop.f32.mrf.mxu0
        %v645 = vadd.f32 %v491, %v644
        %646 = vmatprep.mubr.bf16.mxu0 0
        %647 = vmatmul.mubr.bf16.gmra.mxu0 %v556
        %v648 = vpop.f32.mrf.mxu0
        %v649 = vadd.f32 %v487, %v648
        %v650 = vpop.f32.mrf.mxu0
        %v651 = vadd.f32 %v491, %v650
        %v652 = vpop.f32.mrf.mxu0
        %v653 = vadd.f32 %v487, %v652
        %v654 = vpop.f32.mrf.mxu0
        %v655 = vadd.f32 %v491, %v654
        %656 = vmatprep.mubr.bf16.mxu0 0
        %657 = vmatmul.mubr.bf16.gmra.mxu0 %v559
        %v658 = vpop.f32.mrf.mxu0
        %v659 = vadd.f32 %v487, %v658
        %v660 = vpop.f32.mrf.mxu0
        %v661 = vadd.f32 %v491, %v660
        %v662 = vpop.f32.mrf.mxu0
        %v663 = vadd.f32 %v487, %v662
        %v664 = vpop.f32.mrf.mxu0
        %v665 = vadd.f32 %v491, %v664
        %666 = vmatprep.mubr.bf16.mxu0 0
        %667 = vmatmul.mubr.bf16.gmra.mxu0 %v562
        %v668 = vpop.f32.mrf.mxu0
        %v669 = vadd.f32 %v487, %v668
        %v670 = vpop.f32.mrf.mxu0
        %v671 = vadd.f32 %v491, %v670
        %v672 = vpop.f32.mrf.mxu0
        %v673 = vadd.f32 %v487, %v672
        %v674 = vpop.f32.mrf.mxu0
        %v675 = vadd.f32 %v491, %v674
        %676 = vdwg.mxu0
        %677 = vmatprep.subr.bf16.mxu0 0
        %678 = vmatpush1.bf16.msra.mxu0 0
        %679 = vmatprep.subr.bf16.mxu0 0
        %680 = vmatpush1.bf16.msra.mxu0 0
        %681 = vmatprep.subr.bf16.mxu0 0
        %682 = vmatpush1.bf16.msra.mxu0 0
        %683 = vmatprep.subr.bf16.mxu0 0
        %684 = vmatpush1.bf16.msra.mxu0 0
        %685 = vmatprep.subr.bf16.mxu0 0
        %686 = vmatpush1.bf16.msra.mxu0 0
        %687 = vmatprep.subr.bf16.mxu0 0
        %688 = vmatpush1.bf16.msra.mxu0 0
        %689 = vmatprep.subr.bf16.mxu0 %v531
        %690 = vmatpush1.bf16.msra.mxu0 %v530
        %691 = vmatprep.subr.bf16.mxu0 %v527
        %692 = vmatpush1.bf16.msra.mxu0 %v526
        %693 = vmatprep.subr.bf16.mxu0 0
        %694 = vmatpush2.bf16.msra.mxu0 0
        %695 = vmatprep.subr.bf16.mxu0 0
        %696 = vmatpush2.bf16.msra.mxu0 0
        %697 = vmatprep.subr.bf16.mxu0 0
        %698 = vmatpush2.bf16.msra.mxu0 0
        %699 = vmatprep.subr.bf16.mxu0 0
        %700 = vmatpush2.bf16.msra.mxu0 0
        %701 = vmatprep.subr.bf16.mxu0 0
        %702 = vmatpush2.bf16.msra.mxu0 0
        %703 = vmatprep.subr.bf16.mxu0 0
        %704 = vmatpush2.bf16.msra.mxu0 0
        %705 = vmatprep.subr.bf16.mxu0 0
        %706 = vmatpush2.bf16.msra.mxu0 0
        %707 = vmatprep.subr.bf16.mxu0 0
        %708 = vmatpush2.bf16.msra.mxu0 0
        %709 = vmatprep.mubr.bf16.mxu0 0
        %710 = vmatmul.mubr.bf16.gmra.mxu0 %v541
        %v711 = vpop.f32.mrf.mxu0
        %v712 = vadd.f32 %v495, %v711
        %v713 = vpop.f32.mrf.mxu0
        %v714 = vadd.f32 %v499, %v713
        %v715 = vpop.f32.mrf.mxu0
        %v716 = vadd.f32 %v495, %v715
        %v717 = vpop.f32.mrf.mxu0
        %v718 = vadd.f32 %v499, %v717
        %719 = vmatprep.mubr.bf16.mxu0 0
        %720 = vmatmul.mubr.bf16.gmra.mxu0 %v544
        %v721 = vpop.f32.mrf.mxu0
        %v722 = vadd.f32 %v495, %v721
        %v723 = vpop.f32.mrf.mxu0
        %v724 = vadd.f32 %v499, %v723
        %v725 = vpop.f32.mrf.mxu0
        %v726 = vadd.f32 %v495, %v725
        %v727 = vpop.f32.mrf.mxu0
        %v728 = vadd.f32 %v499, %v727
        %729 = vmatprep.mubr.bf16.mxu0 0
        %730 = vmatmul.mubr.bf16.gmra.mxu0 %v547
        %v731 = vpop.f32.mrf.mxu0
        %v732 = vadd.f32 %v495, %v731
        %v733 = vpop.f32.mrf.mxu0
        %v734 = vadd.f32 %v499, %v733
        %v735 = vpop.f32.mrf.mxu0
        %v736 = vadd.f32 %v495, %v735
        %v737 = vpop.f32.mrf.mxu0
        %v738 = vadd.f32 %v499, %v737
        %739 = vmatprep.mubr.bf16.mxu0 0
        %740 = vmatmul.mubr.bf16.gmra.mxu0 %v550
        %v741 = vpop.f32.mrf.mxu0
        %v742 = vadd.f32 %v495, %v741
        %v743 = vpop.f32.mrf.mxu0
        %v744 = vadd.f32 %v499, %v743
        %v745 = vpop.f32.mrf.mxu0
        %v746 = vadd.f32 %v495, %v745
        %v747 = vpop.f32.mrf.mxu0
        %v748 = vadd.f32 %v499, %v747
        %749 = vmatprep.mubr.bf16.mxu0 0
        %750 = vmatmul.mubr.bf16.gmra.mxu0 %v553
        %v751 = vpop.f32.mrf.mxu0
        %v752 = vadd.f32 %v495, %v751
        %v753 = vpop.f32.mrf.mxu0
        %v754 = vadd.f32 %v499, %v753
        %v755 = vpop.f32.mrf.mxu0
        %v756 = vadd.f32 %v495, %v755
        %v757 = vpop.f32.mrf.mxu0
        %v758 = vadd.f32 %v499, %v757
        %759 = vmatprep.mubr.bf16.mxu0 0
        %760 = vmatmul.mubr.bf16.gmra.mxu0 %v556
        %v761 = vpop.f32.mrf.mxu0
        %v762 = vadd.f32 %v495, %v761
        %v763 = vpop.f32.mrf.mxu0
        %v764 = vadd.f32 %v499, %v763
        %v765 = vpop.f32.mrf.mxu0
        %v766 = vadd.f32 %v495, %v765
        %v767 = vpop.f32.mrf.mxu0
        %v768 = vadd.f32 %v499, %v767
        %769 = vmatprep.mubr.bf16.mxu0 0
        %770 = vmatmul.mubr.bf16.gmra.mxu0 %v559
        %v771 = vpop.f32.mrf.mxu0
        %v772 = vadd.f32 %v495, %v771
        %v773 = vpop.f32.mrf.mxu0
        %v774 = vadd.f32 %v499, %v773
        %v775 = vpop.f32.mrf.mxu0
        %v776 = vadd.f32 %v495, %v775
        %v777 = vpop.f32.mrf.mxu0
        %v778 = vadd.f32 %v499, %v777
        %779 = vmatprep.mubr.bf16.mxu0 0
        %780 = vmatmul.mubr.bf16.gmra.mxu0 %v562
        %v781 = vpop.f32.mrf.mxu0
        %v782 = vadd.f32 %v495, %v781
        %v783 = vpop.f32.mrf.mxu0
        %v784 = vadd.f32 %v499, %v783
        %v785 = vpop.f32.mrf.mxu0
        %v786 = vadd.f32 %v495, %v785
        %v787 = vpop.f32.mrf.mxu0
        %v788 = vadd.f32 %v499, %v787
        %789 = vdwg.mxu0
        %vm790 = vcmp.ge.f32.partialorder %v599, 0.0
        %vm791 = vcmp.ge.f32.partialorder %v601, 0.0
        %vm792 = vcmp.ge.f32.partialorder %v712, 0.0
        %vm793 = vcmp.ge.f32.partialorder %v714, 0.0
        %vm794 = vcmp.ge.f32.partialorder %v603, 0.0
        %vm795 = vcmp.ge.f32.partialorder %v605, 0.0
        %vm796 = vcmp.ge.f32.partialorder %v716, 0.0
        %vm797 = vcmp.ge.f32.partialorder %v718, 0.0
        %vm798 = vcmp.ge.f32.partialorder %v609, 0.0
        %vm799 = vcmp.ge.f32.partialorder %v611, 0.0
        %vm800 = vcmp.ge.f32.partialorder %v722, 0.0
        %vm801 = vcmp.ge.f32.partialorder %v724, 0.0
        %vm802 = vcmp.ge.f32.partialorder %v613, 0.0
        %vm803 = vcmp.ge.f32.partialorder %v615, 0.0
        %vm804 = vcmp.ge.f32.partialorder %v726, 0.0
        %vm805 = vcmp.ge.f32.partialorder %v728, 0.0
        %vm806 = vcmp.ge.f32.partialorder %v619, 0.0
        %vm807 = vcmp.ge.f32.partialorder %v621, 0.0
        %vm808 = vcmp.ge.f32.partialorder %v732, 0.0
        %vm809 = vcmp.ge.f32.partialorder %v734, 0.0
        %vm810 = vcmp.ge.f32.partialorder %v623, 0.0
        %vm811 = vcmp.ge.f32.partialorder %v625, 0.0
        %vm812 = vcmp.ge.f32.partialorder %v736, 0.0
        %vm813 = vcmp.ge.f32.partialorder %v738, 0.0
        %vm814 = vcmp.ge.f32.partialorder %v629, 0.0
        %vm815 = vcmp.ge.f32.partialorder %v631, 0.0
        %vm816 = vcmp.ge.f32.partialorder %v742, 0.0
        %vm817 = vcmp.ge.f32.partialorder %v744, 0.0
        %vm818 = vcmp.ge.f32.partialorder %v633, 0.0
        %vm819 = vcmp.ge.f32.partialorder %v635, 0.0
        %vm820 = vcmp.ge.f32.partialorder %v746, 0.0
        %vm821 = vcmp.ge.f32.partialorder %v748, 0.0
        %vm822 = vcmp.ge.f32.partialorder %v639, 0.0
        %vm823 = vcmp.ge.f32.partialorder %v641, 0.0
        %vm824 = vcmp.ge.f32.partialorder %v752, 0.0
        %vm825 = vcmp.ge.f32.partialorder %v754, 0.0
        %vm826 = vcmp.ge.f32.partialorder %v643, 0.0
        %vm827 = vcmp.ge.f32.partialorder %v645, 0.0
        %vm828 = vcmp.ge.f32.partialorder %v756, 0.0
        %vm829 = vcmp.ge.f32.partialorder %v758, 0.0
        %vm830 = vcmp.ge.f32.partialorder %v649, 0.0
        %vm831 = vcmp.ge.f32.partialorder %v651, 0.0
        %vm832 = vcmp.ge.f32.partialorder %v762, 0.0
        %vm833 = vcmp.ge.f32.partialorder %v764, 0.0
        %vm834 = vcmp.ge.f32.partialorder %v653, 0.0
        %vm835 = vcmp.ge.f32.partialorder %v655, 0.0
        %vm836 = vcmp.ge.f32.partialorder %v766, 0.0
        %vm837 = vcmp.ge.f32.partialorder %v768, 0.0
        %vm838 = vcmp.ge.f32.partialorder %v659, 0.0
        %vm839 = vcmp.ge.f32.partialorder %v661, 0.0
        %vm840 = vcmp.ge.f32.partialorder %v772, 0.0
        %vm841 = vcmp.ge.f32.partialorder %v774, 0.0
        %vm842 = vcmp.ge.f32.partialorder %v663, 0.0
        %vm843 = vcmp.ge.f32.partialorder %v665, 0.0
        %vm844 = vcmp.ge.f32.partialorder %v776, 0.0
        %vm845 = vcmp.ge.f32.partialorder %v778, 0.0
        %vm846 = vcmp.ge.f32.partialorder %v669, 0.0
        %vm847 = vcmp.ge.f32.partialorder %v671, 0.0
        %vm848 = vcmp.ge.f32.partialorder %v782, 0.0
        %vm849 = vcmp.ge.f32.partialorder %v784, 0.0
        %vm850 = vcmp.ge.f32.partialorder %v673, 0.0
        %vm851 = vcmp.ge.f32.partialorder %v675, 0.0
        %vm852 = vcmp.ge.f32.partialorder %v786, 0.0
        %vm853 = vcmp.ge.f32.partialorder %v788, 0.0
        %v854 = vmul.f32 %v599, 0.2
        %v855 = vmul.f32 %v601, 0.2
        %v856 = vmul.f32 %v712, 0.2
        %v857 = vmul.f32 %v714, 0.2
        %v858 = vmul.f32 %v603, 0.2
        %v859 = vmul.f32 %v605, 0.2
        %v860 = vmul.f32 %v716, 0.2
        %v861 = vmul.f32 %v718, 0.2
        %v862 = vmul.f32 %v609, 0.2
        %v863 = vmul.f32 %v611, 0.2
        %v864 = vmul.f32 %v722, 0.2
        %v865 = vmul.f32 %v724, 0.2
        %v866 = vmul.f32 %v613, 0.2
        %v867 = vmul.f32 %v615, 0.2
        %v868 = vmul.f32 %v726, 0.2
        %v869 = vmul.f32 %v728, 0.2
        %v870 = vmul.f32 %v619, 0.2
        %v871 = vmul.f32 %v621, 0.2
        %v872 = vmul.f32 %v732, 0.2
        %v873 = vmul.f32 %v734, 0.2
        %v874 = vmul.f32 %v623, 0.2
        %v875 = vmul.f32 %v625, 0.2
        %v876 = vmul.f32 %v736, 0.2
        %v877 = vmul.f32 %v738, 0.2
        %v878 = vmul.f32 %v629, 0.2
        %v879 = vmul.f32 %v631, 0.2
        %v880 = vmul.f32 %v742, 0.2
        %v881 = vmul.f32 %v744, 0.2
        %v882 = vmul.f32 %v633, 0.2
        %v883 = vmul.f32 %v635, 0.2
        %v884 = vmul.f32 %v746, 0.2
        %v885 = vmul.f32 %v748, 0.2
        %v886 = vmul.f32 %v639, 0.2
        %v887 = vmul.f32 %v641, 0.2
        %v888 = vmul.f32 %v752, 0.2
        %v889 = vmul.f32 %v754, 0.2
        %v890 = vmul.f32 %v643, 0.2
        %v891 = vmul.f32 %v645, 0.2
        %v892 = vmul.f32 %v756, 0.2
        %v893 = vmul.f32 %v758, 0.2
        %v894 = vmul.f32 %v649, 0.2
        %v895 = vmul.f32 %v651, 0.2
        %v896 = vmul.f32 %v762, 0.2
        %v897 = vmul.f32 %v764, 0.2
        %v898 = vmul.f32 %v653, 0.2
        %v899 = vmul.f32 %v655, 0.2
        %v900 = vmul.f32 %v766, 0.2
        %v901 = vmul.f32 %v768, 0.2
        %v902 = vmul.f32 %v659, 0.2
        %v903 = vmul.f32 %v661, 0.2
        %v904 = vmul.f32 %v772, 0.2
        %v905 = vmul.f32 %v774, 0.2
        %v906 = vmul.f32 %v663, 0.2
        %v907 = vmul.f32 %v665, 0.2
        %v908 = vmul.f32 %v776, 0.2
        %v909 = vmul.f32 %v778, 0.2
        %v910 = vmul.f32 %v669, 0.2
        %v911 = vmul.f32 %v671, 0.2
        %v912 = vmul.f32 %v782, 0.2
        %v913 = vmul.f32 %v784, 0.2
        %v914 = vmul.f32 %v673, 0.2
        %v915 = vmul.f32 %v675, 0.2
        %v916 = vmul.f32 %v786, 0.2
        %v917 = vmul.f32 %v788, 0.2
        %v918 = vsel %vm790, %v599, %v854
        %v919 = vsel %vm791, %v601, %v855
        %v920 = vsel %vm792, %v712, %v856
        %v921 = vsel %vm793, %v714, %v857
        %v922 = vsel %vm794, %v603, %v858
        %v923 = vsel %vm795, %v605, %v859
        %v924 = vsel %vm796, %v716, %v860
        %v925 = vsel %vm797, %v718, %v861
        %v926 = vsel %vm798, %v609, %v862
        %v927 = vsel %vm799, %v611, %v863
        %v928 = vsel %vm800, %v722, %v864
        %v929 = vsel %vm801, %v724, %v865
        %v930 = vsel %vm802, %v613, %v866
        %v931 = vsel %vm803, %v615, %v867
        %v932 = vsel %vm804, %v726, %v868
        %v933 = vsel %vm805, %v728, %v869
        %v934 = vsel %vm806, %v619, %v870
        %v935 = vsel %vm807, %v621, %v871
        %v936 = vsel %vm808, %v732, %v872
        %v937 = vsel %vm809, %v734, %v873
        %v938 = vsel %vm810, %v623, %v874
        %v939 = vsel %vm811, %v625, %v875
        %v940 = vsel %vm812, %v736, %v876
        %v941 = vsel %vm813, %v738, %v877
        %v942 = vsel %vm814, %v629, %v878
        %v943 = vsel %vm815, %v631, %v879
        %v944 = vsel %vm816, %v742, %v880
        %v945 = vsel %vm817, %v744, %v881
        %v946 = vsel %vm818, %v633, %v882
        %v947 = vsel %vm819, %v635, %v883
        %v948 = vsel %vm820, %v746, %v884
        %v949 = vsel %vm821, %v748, %v885
        %v950 = vsel %vm822, %v639, %v886
        %v951 = vsel %vm823, %v641, %v887
        %v952 = vsel %vm824, %v752, %v888
        %v953 = vsel %vm825, %v754, %v889
        %v954 = vsel %vm826, %v643, %v890
        %v955 = vsel %vm827, %v645, %v891
        %v956 = vsel %vm828, %v756, %v892
        %v957 = vsel %vm829, %v758, %v893
        %v958 = vsel %vm830, %v649, %v894
        %v959 = vsel %vm831, %v651, %v895
        %v960 = vsel %vm832, %v762, %v896
        %v961 = vsel %vm833, %v764, %v897
        %v962 = vsel %vm834, %v653, %v898
        %v963 = vsel %vm835, %v655, %v899
        %v964 = vsel %vm836, %v766, %v900
        %v965 = vsel %vm837, %v768, %v901
        %v966 = vsel %vm838, %v659, %v902
        %v967 = vsel %vm839, %v661, %v903
        %v968 = vsel %vm840, %v772, %v904
        %v969 = vsel %vm841, %v774, %v905
        %v970 = vsel %vm842, %v663, %v906
        %v971 = vsel %vm843, %v665, %v907
        %v972 = vsel %vm844, %v776, %v908
        %v973 = vsel %vm845, %v778, %v909
        %v974 = vsel %vm846, %v669, %v910
        %v975 = vsel %vm847, %v671, %v911
        %v976 = vsel %vm848, %v782, %v912
        %v977 = vsel %vm849, %v784, %v913
        %v978 = vsel %vm850, %v673, %v914
        %v979 = vsel %vm851, %v675, %v915
        %v980 = vsel %vm852, %v786, %v916
        %v981 = vsel %vm853, %v788, %v917
        %v982 = vmul.f32 %v918, %v918
        %v983 = vmul.f32 %v919, %v919
        %v984 = vmul.f32 %v920, %v920
        %v985 = vmul.f32 %v921, %v921
        %v986 = vmul.f32 %v922, %v922
        %v987 = vmul.f32 %v923, %v923
        %v988 = vmul.f32 %v924, %v924
        %v989 = vmul.f32 %v925, %v925
        %v990 = vmul.f32 %v926, %v926
        %v991 = vmul.f32 %v927, %v927
        %v992 = vmul.f32 %v928, %v928
        %v993 = vmul.f32 %v929, %v929
        %v994 = vmul.f32 %v930, %v930
        %v995 = vmul.f32 %v931, %v931
        %v996 = vmul.f32 %v932, %v932
        %v997 = vmul.f32 %v933, %v933
        %v998 = vmul.f32 %v934, %v934
        %v999 = vmul.f32 %v935, %v935
        %v1000 = vmul.f32 %v936, %v936
        %v1001 = vmul.f32 %v937, %v937
        %v1002 = vmul.f32 %v938, %v938
        %v1003 = vmul.f32 %v939, %v939
        %v1004 = vmul.f32 %v940, %v940
        %v1005 = vmul.f32 %v941, %v941
        %v1006 = vmul.f32 %v942, %v942
        %v1007 = vmul.f32 %v943, %v943
        %v1008 = vmul.f32 %v944, %v944
        %v1009 = vmul.f32 %v945, %v945
        %v1010 = vmul.f32 %v946, %v946
        %v1011 = vmul.f32 %v947, %v947
        %v1012 = vmul.f32 %v948, %v948
        %v1013 = vmul.f32 %v949, %v949
        %v1014 = vmul.f32 %v950, %v950
        %v1015 = vmul.f32 %v951, %v951
        %v1016 = vmul.f32 %v952, %v952
        %v1017 = vmul.f32 %v953, %v953
        %v1018 = vmul.f32 %v954, %v954
        %v1019 = vmul.f32 %v955, %v955
        %v1020 = vmul.f32 %v956, %v956
        %v1021 = vmul.f32 %v957, %v957
        %v1022 = vmul.f32 %v958, %v958
        %v1023 = vmul.f32 %v959, %v959
        %v1024 = vmul.f32 %v960, %v960
        %v1025 = vmul.f32 %v961, %v961
        %v1026 = vmul.f32 %v962, %v962
        %v1027 = vmul.f32 %v963, %v963
        %v1028 = vmul.f32 %v964, %v964
        %v1029 = vmul.f32 %v965, %v965
        %v1030 = vmul.f32 %v966, %v966
        %v1031 = vmul.f32 %v967, %v967
        %v1032 = vmul.f32 %v968, %v968
        %v1033 = vmul.f32 %v969, %v969
        %v1034 = vmul.f32 %v970, %v970
        %v1035 = vmul.f32 %v971, %v971
        %v1036 = vmul.f32 %v972, %v972
        %v1037 = vmul.f32 %v973, %v973
        %v1038 = vmul.f32 %v974, %v974
        %v1039 = vmul.f32 %v975, %v975
        %v1040 = vmul.f32 %v976, %v976
        %v1041 = vmul.f32 %v977, %v977
        %v1042 = vmul.f32 %v978, %v978
        %v1043 = vmul.f32 %v979, %v979
        %v1044 = vmul.f32 %v980, %v980
        %v1045 = vmul.f32 %v981, %v981
        %v1046 = vld [vmem:[%s3] sm:$0xff]
        %v1047 = vld [vmem:[%s3 + $0x8] sm:$0xff]
        %v1048 = vld [vmem:[%s3 + $0x10] sm:$0xff]
        %v1049 = vld [vmem:[%s3 + $0x18] sm:$0xff]
        %v1050 = vld [vmem:[%s3 + $0x20] sm:$0xff]
        %v1051 = vld [vmem:[%s3 + $0x28] sm:$0xff]
        %v1052 = vld [vmem:[%s3 + $0x30] sm:$0xff]
        %v1053 = vld [vmem:[%s3 + $0x38] sm:$0xff]
        %v1054 = vld [vmem:[%s3 + $0x40] sm:$0xff]
        %v1055 = vld [vmem:[%s3 + $0x48] sm:$0xff]
        %v1056 = vld [vmem:[%s3 + $0x50] sm:$0xff]
        %v1057 = vld [vmem:[%s3 + $0x58] sm:$0xff]
        %v1058 = vld [vmem:[%s3 + $0x60] sm:$0xff]
        %v1059 = vld [vmem:[%s3 + $0x68] sm:$0xff]
        %v1060 = vld [vmem:[%s3 + $0x70] sm:$0xff]
        %v1061 = vld [vmem:[%s3 + $0x78] sm:$0xff]
        %v1062 = vld [vmem:[%s3 + $0x80] sm:$0xff]
        %v1063 = vld [vmem:[%s3 + $0x88] sm:$0xff]
        %v1064 = vld [vmem:[%s3 + $0x90] sm:$0xff]
        %v1065 = vld [vmem:[%s3 + $0x98] sm:$0xff]
        %v1066 = vld [vmem:[%s3 + $0xa0] sm:$0xff]
        %v1067 = vld [vmem:[%s3 + $0xa8] sm:$0xff]
        %v1068 = vld [vmem:[%s3 + $0xb0] sm:$0xff]
        %v1069 = vld [vmem:[%s3 + $0xb8] sm:$0xff]
        %v1070 = vld [vmem:[%s3 + $0xc0] sm:$0xff]
        %v1071 = vld [vmem:[%s3 + $0xc8] sm:$0xff]
        %v1072 = vld [vmem:[%s3 + $0xd0] sm:$0xff]
        %v1073 = vld [vmem:[%s3 + $0xd8] sm:$0xff]
        %v1074 = vld [vmem:[%s3 + $0xe0] sm:$0xff]
        %v1075 = vld [vmem:[%s3 + $0xe8] sm:$0xff]
        %v1076 = vld [vmem:[%s3 + $0xf0] sm:$0xff]
        %v1077 = vld [vmem:[%s3 + $0xf8] sm:$0xff]
        %v1078 = vld [vmem:[%s3 + $0x100] sm:$0xff]
        %v1079 = vld [vmem:[%s3 + $0x108] sm:$0xff]
        %v1080 = vld [vmem:[%s3 + $0x110] sm:$0xff]
        %v1081 = vld [vmem:[%s3 + $0x118] sm:$0xff]
        %v1082 = vld [vmem:[%s3 + $0x120] sm:$0xff]
        %v1083 = vld [vmem:[%s3 + $0x128] sm:$0xff]
        %v1084 = vld [vmem:[%s3 + $0x130] sm:$0xff]
        %v1085 = vld [vmem:[%s3 + $0x138] sm:$0xff]
        %v1086 = vld [vmem:[%s3 + $0x140] sm:$0xff]
        %v1087 = vld [vmem:[%s3 + $0x148] sm:$0xff]
        %v1088 = vld [vmem:[%s3 + $0x150] sm:$0xff]
        %v1089 = vld [vmem:[%s3 + $0x158] sm:$0xff]
        %v1090 = vld [vmem:[%s3 + $0x160] sm:$0xff]
        %v1091 = vld [vmem:[%s3 + $0x168] sm:$0xff]
        %v1092 = vld [vmem:[%s3 + $0x170] sm:$0xff]
        %v1093 = vld [vmem:[%s3 + $0x178] sm:$0xff]
        %v1094 = vld [vmem:[%s3 + $0x180] sm:$0xff]
        %v1095 = vld [vmem:[%s3 + $0x188] sm:$0xff]
        %v1096 = vld [vmem:[%s3 + $0x190] sm:$0xff]
        %v1097 = vld [vmem:[%s3 + $0x198] sm:$0xff]
        %v1098 = vld [vmem:[%s3 + $0x1a0] sm:$0xff]
        %v1099 = vld [vmem:[%s3 + $0x1a8] sm:$0xff]
        %v1100 = vld [vmem:[%s3 + $0x1b0] sm:$0xff]
        %v1101 = vld [vmem:[%s3 + $0x1b8] sm:$0xff]
        %v1102 = vld [vmem:[%s3 + $0x1c0] sm:$0xff]
        %v1103 = vld [vmem:[%s3 + $0x1c8] sm:$0xff]
        %v1104 = vld [vmem:[%s3 + $0x1d0] sm:$0xff]
        %v1105 = vld [vmem:[%s3 + $0x1d8] sm:$0xff]
        %v1106 = vld [vmem:[%s3 + $0x1e0] sm:$0xff]
        %v1107 = vld [vmem:[%s3 + $0x1e8] sm:$0xff]
        %v1108 = vld [vmem:[%s3 + $0x1f0] sm:$0xff]
        %v1109 = vld [vmem:[%s3 + $0x1f8] sm:$0xff]
        %1110 = vmatprep.subr.mxu0 0.0
        %1111 = vmatpush1.msra.mxu0 %v1061
        %1112 = vmatprep.subr.mxu0 0.0
        %1113 = vmatpush1.msra.mxu0 %v1060
        %1114 = vmatprep.subr.mxu0 0.0
        %1115 = vmatpush1.msra.mxu0 %v1059
        %1116 = vmatprep.subr.mxu0 0.0
        %1117 = vmatpush1.msra.mxu0 %v1058
        %1118 = vmatprep.subr.mxu0 0.0
        %1119 = vmatpush1.msra.mxu0 %v1057
        %1120 = vmatprep.subr.mxu0 0.0
        %1121 = vmatpush1.msra.mxu0 %v1056
        %1122 = vmatprep.subr.mxu0 0.0
        %1123 = vmatpush1.msra.mxu0 %v1055
        %1124 = vmatprep.subr.mxu0 0.0
        %1125 = vmatpush1.msra.mxu0 %v1054
        %1126 = vmatprep.subr.mxu0 0.0
        %1127 = vmatpush1.msra.mxu0 %v1053
        %1128 = vmatprep.subr.mxu0 0.0
        %1129 = vmatpush1.msra.mxu0 %v1052
        %1130 = vmatprep.subr.mxu0 0.0
        %1131 = vmatpush1.msra.mxu0 %v1051
        %1132 = vmatprep.subr.mxu0 0.0
        %1133 = vmatpush1.msra.mxu0 %v1050
        %1134 = vmatprep.subr.mxu0 0.0
        %1135 = vmatpush1.msra.mxu0 %v1049
        %1136 = vmatprep.subr.mxu0 0.0
        %1137 = vmatpush1.msra.mxu0 %v1048
        %1138 = vmatprep.subr.mxu0 0.0
        %1139 = vmatpush1.msra.mxu0 %v1047
        %1140 = vmatprep.subr.mxu0 0.0
        %1141 = vmatpush1.msra.mxu0 %v1046
        %1142 = vmatprep.subr.mxu0 0.0
        %1143 = vmatpush2.msra.mxu0 %v1077
        %1144 = vmatprep.subr.mxu0 0.0
        %1145 = vmatpush2.msra.mxu0 %v1076
        %1146 = vmatprep.subr.mxu0 0.0
        %1147 = vmatpush2.msra.mxu0 %v1075
        %1148 = vmatprep.subr.mxu0 0.0
        %1149 = vmatpush2.msra.mxu0 %v1074
        %1150 = vmatprep.subr.mxu0 0.0
        %1151 = vmatpush2.msra.mxu0 %v1073
        %1152 = vmatprep.subr.mxu0 0.0
        %1153 = vmatpush2.msra.mxu0 %v1072
        %1154 = vmatprep.subr.mxu0 0.0
        %1155 = vmatpush2.msra.mxu0 %v1071
        %1156 = vmatprep.subr.mxu0 0.0
        %1157 = vmatpush2.msra.mxu0 %v1070
        %1158 = vmatprep.subr.mxu0 0.0
        %1159 = vmatpush2.msra.mxu0 %v1069
        %1160 = vmatprep.subr.mxu0 0.0
        %1161 = vmatpush2.msra.mxu0 %v1068
        %1162 = vmatprep.subr.mxu0 0.0
        %1163 = vmatpush2.msra.mxu0 %v1067
        %1164 = vmatprep.subr.mxu0 0.0
        %1165 = vmatpush2.msra.mxu0 %v1066
        %1166 = vmatprep.subr.mxu0 0.0
        %1167 = vmatpush2.msra.mxu0 %v1065
        %1168 = vmatprep.subr.mxu0 0.0
        %1169 = vmatpush2.msra.mxu0 %v1064
        %1170 = vmatprep.subr.mxu0 0.0
        %1171 = vmatpush2.msra.mxu0 %v1063
        %1172 = vmatprep.subr.mxu0 0.0
        %1173 = vmatpush2.msra.mxu0 %v1062
        %1174 = vmatprep.mubr.f32.mxu0 %v983
        %1175 = vmatmul.mubr.f32.gmra.mxu0 %v982
        %v1176 = vpop.f32.mrf.mxu0
        %v1177 = vadd.f32 1e-08, %v1176
        %v1178 = vpop.f32.mrf.mxu0
        %1179 = vmatprep.mubr.f32.mxu0 %v987
        %1180 = vmatmul.mubr.f32.gmra.mxu0 %v986
        %v1181 = vpop.f32.mrf.mxu0
        %v1182 = vadd.f32 1e-08, %v1181
        %v1183 = vpop.f32.mrf.mxu0
        %1184 = vmatprep.mubr.f32.mxu0 %v991
        %1185 = vmatmul.mubr.f32.gmra.mxu0 %v990
        %v1186 = vpop.f32.mrf.mxu0
        %v1187 = vadd.f32 1e-08, %v1186
        %v1188 = vpop.f32.mrf.mxu0
        %1189 = vmatprep.mubr.f32.mxu0 %v995
        %1190 = vmatmul.mubr.f32.gmra.mxu0 %v994
        %v1191 = vpop.f32.mrf.mxu0
        %v1192 = vadd.f32 1e-08, %v1191
        %v1193 = vpop.f32.mrf.mxu0
        %1194 = vmatprep.mubr.f32.mxu0 %v999
        %1195 = vmatmul.mubr.f32.gmra.mxu0 %v998
        %v1196 = vpop.f32.mrf.mxu0
        %v1197 = vadd.f32 1e-08, %v1196
        %v1198 = vpop.f32.mrf.mxu0
        %1199 = vmatprep.mubr.f32.mxu0 %v1003
        %1200 = vmatmul.mubr.f32.gmra.mxu0 %v1002
        %v1201 = vpop.f32.mrf.mxu0
        %v1202 = vadd.f32 1e-08, %v1201
        %v1203 = vpop.f32.mrf.mxu0
        %1204 = vmatprep.mubr.f32.mxu0 %v1007
        %1205 = vmatmul.mubr.f32.gmra.mxu0 %v1006
        %v1206 = vpop.f32.mrf.mxu0
        %v1207 = vadd.f32 1e-08, %v1206
        %v1208 = vpop.f32.mrf.mxu0
        %1209 = vmatprep.mubr.f32.mxu0 %v1011
        %1210 = vmatmul.mubr.f32.gmra.mxu0 %v1010
        %v1211 = vpop.f32.mrf.mxu0
        %v1212 = vadd.f32 1e-08, %v1211
        %v1213 = vpop.f32.mrf.mxu0
        %1214 = vmatprep.mubr.f32.mxu0 %v1015
        %1215 = vmatmul.mubr.f32.gmra.mxu0 %v1014
        %v1216 = vpop.f32.mrf.mxu0
        %v1217 = vadd.f32 1e-08, %v1216
        %v1218 = vpop.f32.mrf.mxu0
        %1219 = vmatprep.mubr.f32.mxu0 %v1019
        %1220 = vmatmul.mubr.f32.gmra.mxu0 %v1018
        %v1221 = vpop.f32.mrf.mxu0
        %v1222 = vadd.f32 1e-08, %v1221
        %v1223 = vpop.f32.mrf.mxu0
        %1224 = vmatprep.mubr.f32.mxu0 %v1023
        %1225 = vmatmul.mubr.f32.gmra.mxu0 %v1022
        %v1226 = vpop.f32.mrf.mxu0
        %v1227 = vadd.f32 1e-08, %v1226
        %v1228 = vpop.f32.mrf.mxu0
        %1229 = vmatprep.mubr.f32.mxu0 %v1027
        %1230 = vmatmul.mubr.f32.gmra.mxu0 %v1026
        %v1231 = vpop.f32.mrf.mxu0
        %v1232 = vadd.f32 1e-08, %v1231
        %v1233 = vpop.f32.mrf.mxu0
        %1234 = vmatprep.mubr.f32.mxu0 %v1031
        %1235 = vmatmul.mubr.f32.gmra.mxu0 %v1030
        %v1236 = vpop.f32.mrf.mxu0
        %v1237 = vadd.f32 1e-08, %v1236
        %v1238 = vpop.f32.mrf.mxu0
        %1239 = vmatprep.mubr.f32.mxu0 %v1035
        %1240 = vmatmul.mubr.f32.gmra.mxu0 %v1034
        %v1241 = vpop.f32.mrf.mxu0
        %v1242 = vadd.f32 1e-08, %v1241
        %v1243 = vpop.f32.mrf.mxu0
        %1244 = vmatprep.mubr.f32.mxu0 %v1039
        %1245 = vmatmul.mubr.f32.gmra.mxu0 %v1038
        %v1246 = vpop.f32.mrf.mxu0
        %v1247 = vadd.f32 1e-08, %v1246
        %v1248 = vpop.f32.mrf.mxu0
        %1249 = vmatprep.mubr.f32.mxu0 %v1043
        %1250 = vmatmul.mubr.f32.gmra.mxu0 %v1042
        %v1251 = vpop.f32.mrf.mxu0
        %v1252 = vadd.f32 1e-08, %v1251
        %v1253 = vpop.f32.mrf.mxu0
        %1254 = vdwg.mxu0
        %1255 = vmatprep.subr.mxu0 0.0
        %1256 = vmatpush1.msra.mxu0 %v1093
        %1257 = vmatprep.subr.mxu0 0.0
        %1258 = vmatpush1.msra.mxu0 %v1092
        %1259 = vmatprep.subr.mxu0 0.0
        %1260 = vmatpush1.msra.mxu0 %v1091
        %1261 = vmatprep.subr.mxu0 0.0
        %1262 = vmatpush1.msra.mxu0 %v1090
        %1263 = vmatprep.subr.mxu0 0.0
        %1264 = vmatpush1.msra.mxu0 %v1089
        %1265 = vmatprep.subr.mxu0 0.0
        %1266 = vmatpush1.msra.mxu0 %v1088
        %1267 = vmatprep.subr.mxu0 0.0
        %1268 = vmatpush1.msra.mxu0 %v1087
        %1269 = vmatprep.subr.mxu0 0.0
        %1270 = vmatpush1.msra.mxu0 %v1086
        %1271 = vmatprep.subr.mxu0 0.0
        %1272 = vmatpush1.msra.mxu0 %v1085
        %1273 = vmatprep.subr.mxu0 0.0
        %1274 = vmatpush1.msra.mxu0 %v1084
        %1275 = vmatprep.subr.mxu0 0.0
        %1276 = vmatpush1.msra.mxu0 %v1083
        %1277 = vmatprep.subr.mxu0 0.0
        %1278 = vmatpush1.msra.mxu0 %v1082
        %1279 = vmatprep.subr.mxu0 0.0
        %1280 = vmatpush1.msra.mxu0 %v1081
        %1281 = vmatprep.subr.mxu0 0.0
        %1282 = vmatpush1.msra.mxu0 %v1080
        %1283 = vmatprep.subr.mxu0 0.0
        %1284 = vmatpush1.msra.mxu0 %v1079
        %1285 = vmatprep.subr.mxu0 0.0
        %1286 = vmatpush1.msra.mxu0 %v1078
        %1287 = vmatprep.subr.mxu0 0.0
        %1288 = vmatpush2.msra.mxu0 %v1109
        %1289 = vmatprep.subr.mxu0 0.0
        %1290 = vmatpush2.msra.mxu0 %v1108
        %1291 = vmatprep.subr.mxu0 0.0
        %1292 = vmatpush2.msra.mxu0 %v1107
        %1293 = vmatprep.subr.mxu0 0.0
        %1294 = vmatpush2.msra.mxu0 %v1106
        %1295 = vmatprep.subr.mxu0 0.0
        %1296 = vmatpush2.msra.mxu0 %v1105
        %1297 = vmatprep.subr.mxu0 0.0
        %1298 = vmatpush2.msra.mxu0 %v1104
        %1299 = vmatprep.subr.mxu0 0.0
        %1300 = vmatpush2.msra.mxu0 %v1103
        %1301 = vmatprep.subr.mxu0 0.0
        %1302 = vmatpush2.msra.mxu0 %v1102
        %1303 = vmatprep.subr.mxu0 0.0
        %1304 = vmatpush2.msra.mxu0 %v1101
        %1305 = vmatprep.subr.mxu0 0.0
        %1306 = vmatpush2.msra.mxu0 %v1100
        %1307 = vmatprep.subr.mxu0 0.0
        %1308 = vmatpush2.msra.mxu0 %v1099
        %1309 = vmatprep.subr.mxu0 0.0
        %1310 = vmatpush2.msra.mxu0 %v1098
        %1311 = vmatprep.subr.mxu0 0.0
        %1312 = vmatpush2.msra.mxu0 %v1097
        %1313 = vmatprep.subr.mxu0 0.0
        %1314 = vmatpush2.msra.mxu0 %v1096
        %1315 = vmatprep.subr.mxu0 0.0
        %1316 = vmatpush2.msra.mxu0 %v1095
        %1317 = vmatprep.subr.mxu0 0.0
        %1318 = vmatpush2.msra.mxu0 %v1094
        %1319 = vmatprep.mubr.f32.mxu0 %v985
        %1320 = vmatmul.mubr.f32.gmra.mxu0 %v984
        %v1321 = vpop.f32.mrf.mxu0
        %v1322 = vadd.f32 %v1177, %v1321
        %v1323 = vpop.f32.mrf.mxu0
        %1324 = vmatprep.mubr.f32.mxu0 %v989
        %1325 = vmatmul.mubr.f32.gmra.mxu0 %v988
        %v1326 = vpop.f32.mrf.mxu0
        %v1327 = vadd.f32 %v1182, %v1326
        %v1328 = vpop.f32.mrf.mxu0
        %1329 = vmatprep.mubr.f32.mxu0 %v993
        %1330 = vmatmul.mubr.f32.gmra.mxu0 %v992
        %v1331 = vpop.f32.mrf.mxu0
        %v1332 = vadd.f32 %v1187, %v1331
        %v1333 = vpop.f32.mrf.mxu0
        %1334 = vmatprep.mubr.f32.mxu0 %v997
        %1335 = vmatmul.mubr.f32.gmra.mxu0 %v996
        %v1336 = vpop.f32.mrf.mxu0
        %v1337 = vadd.f32 %v1192, %v1336
        %v1338 = vpop.f32.mrf.mxu0
        %1339 = vmatprep.mubr.f32.mxu0 %v1001
        %1340 = vmatmul.mubr.f32.gmra.mxu0 %v1000
        %v1341 = vpop.f32.mrf.mxu0
        %v1342 = vadd.f32 %v1197, %v1341
        %v1343 = vpop.f32.mrf.mxu0
        %1344 = vmatprep.mubr.f32.mxu0 %v1005
        %1345 = vmatmul.mubr.f32.gmra.mxu0 %v1004
        %v1346 = vpop.f32.mrf.mxu0
        %v1347 = vadd.f32 %v1202, %v1346
        %v1348 = vpop.f32.mrf.mxu0
        %1349 = vmatprep.mubr.f32.mxu0 %v1009
        %1350 = vmatmul.mubr.f32.gmra.mxu0 %v1008
        %v1351 = vpop.f32.mrf.mxu0
        %v1352 = vadd.f32 %v1207, %v1351
        %v1353 = vpop.f32.mrf.mxu0
        %1354 = vmatprep.mubr.f32.mxu0 %v1013
        %1355 = vmatmul.mubr.f32.gmra.mxu0 %v1012
        %v1356 = vpop.f32.mrf.mxu0
        %v1357 = vadd.f32 %v1212, %v1356
        %v1358 = vpop.f32.mrf.mxu0
        %1359 = vmatprep.mubr.f32.mxu0 %v1017
        %1360 = vmatmul.mubr.f32.gmra.mxu0 %v1016
        %v1361 = vpop.f32.mrf.mxu0
        %v1362 = vadd.f32 %v1217, %v1361
        %v1363 = vpop.f32.mrf.mxu0
        %1364 = vmatprep.mubr.f32.mxu0 %v1021
        %1365 = vmatmul.mubr.f32.gmra.mxu0 %v1020
        %v1366 = vpop.f32.mrf.mxu0
        %v1367 = vadd.f32 %v1222, %v1366
        %v1368 = vpop.f32.mrf.mxu0
        %1369 = vmatprep.mubr.f32.mxu0 %v1025
        %1370 = vmatmul.mubr.f32.gmra.mxu0 %v1024
        %v1371 = vpop.f32.mrf.mxu0
        %v1372 = vadd.f32 %v1227, %v1371
        %v1373 = vpop.f32.mrf.mxu0
        %1374 = vmatprep.mubr.f32.mxu0 %v1029
        %1375 = vmatmul.mubr.f32.gmra.mxu0 %v1028
        %v1376 = vpop.f32.mrf.mxu0
        %v1377 = vadd.f32 %v1232, %v1376
        %v1378 = vpop.f32.mrf.mxu0
        %1379 = vmatprep.mubr.f32.mxu0 %v1033
        %1380 = vmatmul.mubr.f32.gmra.mxu0 %v1032
        %v1381 = vpop.f32.mrf.mxu0
        %v1382 = vadd.f32 %v1237, %v1381
        %v1383 = vpop.f32.mrf.mxu0
        %1384 = vmatprep.mubr.f32.mxu0 %v1037
        %1385 = vmatmul.mubr.f32.gmra.mxu0 %v1036
        %v1386 = vpop.f32.mrf.mxu0
        %v1387 = vadd.f32 %v1242, %v1386
        %v1388 = vpop.f32.mrf.mxu0
        %1389 = vmatprep.mubr.f32.mxu0 %v1041
        %1390 = vmatmul.mubr.f32.gmra.mxu0 %v1040
        %v1391 = vpop.f32.mrf.mxu0
        %v1392 = vadd.f32 %v1247, %v1391
        %v1393 = vpop.f32.mrf.mxu0
        %1394 = vmatprep.mubr.f32.mxu0 %v1045
        %1395 = vmatmul.mubr.f32.gmra.mxu0 %v1044
        %v1396 = vpop.f32.mrf.mxu0
        %v1397 = vadd.f32 %v1252, %v1396
        %v1398 = vpop.f32.mrf.mxu0
        %1399 = vdwg.mxu0
        %v1400 = vrsqrt.pop %v1322
        %v1401 = vrsqrt.pop %v1327
        %v1402 = vrsqrt.pop %v1332
        %v1403 = vrsqrt.pop %v1337
        %v1404 = vrsqrt.pop %v1342
        %v1405 = vrsqrt.pop %v1347
        %v1406 = vrsqrt.pop %v1352
        %v1407 = vrsqrt.pop %v1357
        %v1408 = vrsqrt.pop %v1362
        %v1409 = vrsqrt.pop %v1367
        %v1410 = vrsqrt.pop %v1372
        %v1411 = vrsqrt.pop %v1377
        %v1412 = vrsqrt.pop %v1382
        %v1413 = vrsqrt.pop %v1387
        %v1414 = vrsqrt.pop %v1392
        %v1415 = vrsqrt.pop %v1397
        %v1416 = vld [vmem:[%s4] sm:$0xff]
        %v1417 = vld [vmem:[%s4 + $0x8] sm:$0xff]
        %v1418 = vld [vmem:[%s4 + $0x10] sm:$0xff]
        %v1419 = vld [vmem:[%s4 + $0x18] sm:$0xff]
        %v1420 = vld [vmem:[%s4 + $0x20] sm:$0xff]
        %v1421 = vld [vmem:[%s4 + $0x28] sm:$0xff]
        %v1422 = vld [vmem:[%s4 + $0x30] sm:$0xff]
        %v1423 = vld [vmem:[%s4 + $0x38] sm:$0xff]
        %vm1424 = vcmask 130048
        %v1426 = vsel %vm1424, %v1400, 0
        %v1429 = vsel %vm1424, %v1401, 0
        %v1432 = vsel %vm1424, %v1402, 0
        %v1435 = vsel %vm1424, %v1403, 0
        %v1438 = vsel %vm1424, %v1404, 0
        %v1441 = vsel %vm1424, %v1405, 0
        %v1444 = vsel %vm1424, %v1406, 0
        %v1447 = vsel %vm1424, %v1407, 0
        %v1450 = vsel %vm1424, %v1408, 0
        %v1453 = vsel %vm1424, %v1409, 0
        %v1456 = vsel %vm1424, %v1410, 0
        %v1459 = vsel %vm1424, %v1411, 0
        %v1462 = vsel %vm1424, %v1412, 0
        %v1465 = vsel %vm1424, %v1413, 0
        %v1468 = vsel %vm1424, %v1414, 0
        %v1471 = vsel %vm1424, %v1415, 0
        %1473 = vmatprep.subr.mxu0 0.0
        %1474 = vmatpush1.msra.mxu0 0.0
        %1475 = vmatprep.subr.mxu0 0.0
        %1476 = vmatpush1.msra.mxu0 0.0
        %1477 = vmatprep.subr.mxu0 0.0
        %1478 = vmatpush1.msra.mxu0 0.0
        %1479 = vmatprep.subr.mxu0 0.0
        %1480 = vmatpush1.msra.mxu0 0.0
        %1481 = vmatprep.subr.mxu0 0.0
        %1482 = vmatpush1.msra.mxu0 0.0
        %1483 = vmatprep.subr.mxu0 0.0
        %1484 = vmatpush1.msra.mxu0 0.0
        %1485 = vmatprep.subr.mxu0 0.0
        %1486 = vmatpush1.msra.mxu0 0.0
        %1487 = vmatprep.subr.mxu0 0.0
        %1488 = vmatpush1.msra.mxu0 0.0
        %1489 = vmatprep.subr.mxu0 0.0
        %1490 = vmatpush1.msra.mxu0 0.0
        %1491 = vmatprep.subr.mxu0 0.0
        %1492 = vmatpush1.msra.mxu0 0.0
        %1493 = vmatprep.subr.mxu0 0.0
        %1494 = vmatpush1.msra.mxu0 0.0
        %1495 = vmatprep.subr.mxu0 0.0
        %1496 = vmatpush1.msra.mxu0 0.0
        %1497 = vmatprep.subr.mxu0 0.0
        %1498 = vmatpush1.msra.mxu0 0.0
        %1499 = vmatprep.subr.mxu0 0.0
        %1500 = vmatpush1.msra.mxu0 0.0
        %1501 = vmatprep.subr.mxu0 %v1421
        %1502 = vmatpush1.msra.mxu0 %v1420
        %1503 = vmatprep.subr.mxu0 %v1417
        %1504 = vmatpush1.msra.mxu0 %v1416
        %1505 = vmatprep.subr.mxu0 0.0
        %1506 = vmatpush2.msra.mxu0 0.0
        %1507 = vmatprep.subr.mxu0 0.0
        %1508 = vmatpush2.msra.mxu0 0.0
        %1509 = vmatprep.subr.mxu0 0.0
        %1510 = vmatpush2.msra.mxu0 0.0
        %1511 = vmatprep.subr.mxu0 0.0
        %1512 = vmatpush2.msra.mxu0 0.0
        %1513 = vmatprep.subr.mxu0 0.0
        %1514 = vmatpush2.msra.mxu0 0.0
        %1515 = vmatprep.subr.mxu0 0.0
        %1516 = vmatpush2.msra.mxu0 0.0
        %1517 = vmatprep.subr.mxu0 0.0
        %1518 = vmatpush2.msra.mxu0 0.0
        %1519 = vmatprep.subr.mxu0 0.0
        %1520 = vmatpush2.msra.mxu0 0.0
        %1521 = vmatprep.subr.mxu0 0.0
        %1522 = vmatpush2.msra.mxu0 0.0
        %1523 = vmatprep.subr.mxu0 0.0
        %1524 = vmatpush2.msra.mxu0 0.0
        %1525 = vmatprep.subr.mxu0 0.0
        %1526 = vmatpush2.msra.mxu0 0.0
        %1527 = vmatprep.subr.mxu0 0.0
        %1528 = vmatpush2.msra.mxu0 0.0
        %1529 = vmatprep.subr.mxu0 0.0
        %1530 = vmatpush2.msra.mxu0 0.0
        %1531 = vmatprep.subr.mxu0 0.0
        %1532 = vmatpush2.msra.mxu0 0.0
        %1533 = vmatprep.subr.mxu0 0.0
        %1534 = vmatpush2.msra.mxu0 0.0
        %1535 = vmatprep.subr.mxu0 0.0
        %1536 = vmatpush2.msra.mxu0 0.0
        %1537 = vmatprep.mubr.f32.mxu0 0.0
        %1538 = vmatmul.mubr.f32.gmra.mxu0 %v1426
        %v1539 = vpop.f32.mrf.mxu0
        %v1540 = vadd.f32 0.0, %v1539
        %v1541 = vpop.f32.mrf.mxu0
        %v1542 = vadd.f32 0.0, %v1541
        %1543 = vmatprep.mubr.f32.mxu0 0.0
        %1544 = vmatmul.mubr.f32.gmra.mxu0 %v1429
        %v1545 = vpop.f32.mrf.mxu0
        %v1546 = vadd.f32 0.0, %v1545
        %v1547 = vpop.f32.mrf.mxu0
        %v1548 = vadd.f32 0.0, %v1547
        %1549 = vmatprep.mubr.f32.mxu0 0.0
        %1550 = vmatmul.mubr.f32.gmra.mxu0 %v1432
        %v1551 = vpop.f32.mrf.mxu0
        %v1552 = vadd.f32 0.0, %v1551
        %v1553 = vpop.f32.mrf.mxu0
        %v1554 = vadd.f32 0.0, %v1553
        %1555 = vmatprep.mubr.f32.mxu0 0.0
        %1556 = vmatmul.mubr.f32.gmra.mxu0 %v1435
        %v1557 = vpop.f32.mrf.mxu0
        %v1558 = vadd.f32 0.0, %v1557
        %v1559 = vpop.f32.mrf.mxu0
        %v1560 = vadd.f32 0.0, %v1559
        %1561 = vmatprep.mubr.f32.mxu0 0.0
        %1562 = vmatmul.mubr.f32.gmra.mxu0 %v1438
        %v1563 = vpop.f32.mrf.mxu0
        %v1564 = vadd.f32 0.0, %v1563
        %v1565 = vpop.f32.mrf.mxu0
        %v1566 = vadd.f32 0.0, %v1565
        %1567 = vmatprep.mubr.f32.mxu0 0.0
        %1568 = vmatmul.mubr.f32.gmra.mxu0 %v1441
        %v1569 = vpop.f32.mrf.mxu0
        %v1570 = vadd.f32 0.0, %v1569
        %v1571 = vpop.f32.mrf.mxu0
        %v1572 = vadd.f32 0.0, %v1571
        %1573 = vmatprep.mubr.f32.mxu0 0.0
        %1574 = vmatmul.mubr.f32.gmra.mxu0 %v1444
        %v1575 = vpop.f32.mrf.mxu0
        %v1576 = vadd.f32 0.0, %v1575
        %v1577 = vpop.f32.mrf.mxu0
        %v1578 = vadd.f32 0.0, %v1577
        %1579 = vmatprep.mubr.f32.mxu0 0.0
        %1580 = vmatmul.mubr.f32.gmra.mxu0 %v1447
        %v1581 = vpop.f32.mrf.mxu0
        %v1582 = vadd.f32 0.0, %v1581
        %v1583 = vpop.f32.mrf.mxu0
        %v1584 = vadd.f32 0.0, %v1583
        %1585 = vmatprep.mubr.f32.mxu0 0.0
        %1586 = vmatmul.mubr.f32.gmra.mxu0 %v1450
        %v1587 = vpop.f32.mrf.mxu0
        %v1588 = vadd.f32 0.0, %v1587
        %v1589 = vpop.f32.mrf.mxu0
        %v1590 = vadd.f32 0.0, %v1589
        %1591 = vmatprep.mubr.f32.mxu0 0.0
        %1592 = vmatmul.mubr.f32.gmra.mxu0 %v1453
        %v1593 = vpop.f32.mrf.mxu0
        %v1594 = vadd.f32 0.0, %v1593
        %v1595 = vpop.f32.mrf.mxu0
        %v1596 = vadd.f32 0.0, %v1595
        %1597 = vmatprep.mubr.f32.mxu0 0.0
        %1598 = vmatmul.mubr.f32.gmra.mxu0 %v1456
        %v1599 = vpop.f32.mrf.mxu0
        %v1600 = vadd.f32 0.0, %v1599
        %v1601 = vpop.f32.mrf.mxu0
        %v1602 = vadd.f32 0.0, %v1601
        %1603 = vmatprep.mubr.f32.mxu0 0.0
        %1604 = vmatmul.mubr.f32.gmra.mxu0 %v1459
        %v1605 = vpop.f32.mrf.mxu0
        %v1606 = vadd.f32 0.0, %v1605
        %v1607 = vpop.f32.mrf.mxu0
        %v1608 = vadd.f32 0.0, %v1607
        %1609 = vmatprep.mubr.f32.mxu0 0.0
        %1610 = vmatmul.mubr.f32.gmra.mxu0 %v1462
        %v1611 = vpop.f32.mrf.mxu0
        %v1612 = vadd.f32 0.0, %v1611
        %v1613 = vpop.f32.mrf.mxu0
        %v1614 = vadd.f32 0.0, %v1613
        %1615 = vmatprep.mubr.f32.mxu0 0.0
        %1616 = vmatmul.mubr.f32.gmra.mxu0 %v1465
        %v1617 = vpop.f32.mrf.mxu0
        %v1618 = vadd.f32 0.0, %v1617
        %v1619 = vpop.f32.mrf.mxu0
        %v1620 = vadd.f32 0.0, %v1619
        %1621 = vmatprep.mubr.f32.mxu0 0.0
        %1622 = vmatmul.mubr.f32.gmra.mxu0 %v1468
        %v1623 = vpop.f32.mrf.mxu0
        %v1624 = vadd.f32 0.0, %v1623
        %v1625 = vpop.f32.mrf.mxu0
        %v1626 = vadd.f32 0.0, %v1625
        %1627 = vmatprep.mubr.f32.mxu0 0.0
        %1628 = vmatmul.mubr.f32.gmra.mxu0 %v1471
        %v1629 = vpop.f32.mrf.mxu0
        %v1630 = vadd.f32 0.0, %v1629
        %v1631 = vpop.f32.mrf.mxu0
        %v1632 = vadd.f32 0.0, %v1631
        %1633 = vdwg.mxu0
        %1634 = vmatprep.subr.mxu0 0.0
        %1635 = vmatpush1.msra.mxu0 0.0
        %1636 = vmatprep.subr.mxu0 0.0
        %1637 = vmatpush1.msra.mxu0 0.0
        %1638 = vmatprep.subr.mxu0 0.0
        %1639 = vmatpush1.msra.mxu0 0.0
        %1640 = vmatprep.subr.mxu0 0.0
        %1641 = vmatpush1.msra.mxu0 0.0
        %1642 = vmatprep.subr.mxu0 0.0
        %1643 = vmatpush1.msra.mxu0 0.0
        %1644 = vmatprep.subr.mxu0 0.0
        %1645 = vmatpush1.msra.mxu0 0.0
        %1646 = vmatprep.subr.mxu0 0.0
        %1647 = vmatpush1.msra.mxu0 0.0
        %1648 = vmatprep.subr.mxu0 0.0
        %1649 = vmatpush1.msra.mxu0 0.0
        %1650 = vmatprep.subr.mxu0 0.0
        %1651 = vmatpush1.msra.mxu0 0.0
        %1652 = vmatprep.subr.mxu0 0.0
        %1653 = vmatpush1.msra.mxu0 0.0
        %1654 = vmatprep.subr.mxu0 0.0
        %1655 = vmatpush1.msra.mxu0 0.0
        %1656 = vmatprep.subr.mxu0 0.0
        %1657 = vmatpush1.msra.mxu0 0.0
        %1658 = vmatprep.subr.mxu0 0.0
        %1659 = vmatpush1.msra.mxu0 0.0
        %1660 = vmatprep.subr.mxu0 0.0
        %1661 = vmatpush1.msra.mxu0 0.0
        %1662 = vmatprep.subr.mxu0 %v1423
        %1663 = vmatpush1.msra.mxu0 %v1422
        %1664 = vmatprep.subr.mxu0 %v1419
        %1665 = vmatpush1.msra.mxu0 %v1418
        %1666 = vmatprep.subr.mxu0 0.0
        %1667 = vmatpush2.msra.mxu0 0.0
        %1668 = vmatprep.subr.mxu0 0.0
        %1669 = vmatpush2.msra.mxu0 0.0
        %1670 = vmatprep.subr.mxu0 0.0
        %1671 = vmatpush2.msra.mxu0 0.0
        %1672 = vmatprep.subr.mxu0 0.0
        %1673 = vmatpush2.msra.mxu0 0.0
        %1674 = vmatprep.subr.mxu0 0.0
        %1675 = vmatpush2.msra.mxu0 0.0
        %1676 = vmatprep.subr.mxu0 0.0
        %1677 = vmatpush2.msra.mxu0 0.0
        %1678 = vmatprep.subr.mxu0 0.0
        %1679 = vmatpush2.msra.mxu0 0.0
        %1680 = vmatprep.subr.mxu0 0.0
        %1681 = vmatpush2.msra.mxu0 0.0
        %1682 = vmatprep.subr.mxu0 0.0
        %1683 = vmatpush2.msra.mxu0 0.0
        %1684 = vmatprep.subr.mxu0 0.0
        %1685 = vmatpush2.msra.mxu0 0.0
        %1686 = vmatprep.subr.mxu0 0.0
        %1687 = vmatpush2.msra.mxu0 0.0
        %1688 = vmatprep.subr.mxu0 0.0
        %1689 = vmatpush2.msra.mxu0 0.0
        %1690 = vmatprep.subr.mxu0 0.0
        %1691 = vmatpush2.msra.mxu0 0.0
        %1692 = vmatprep.subr.mxu0 0.0
        %1693 = vmatpush2.msra.mxu0 0.0
        %1694 = vmatprep.subr.mxu0 0.0
        %1695 = vmatpush2.msra.mxu0 0.0
        %1696 = vmatprep.subr.mxu0 0.0
        %1697 = vmatpush2.msra.mxu0 0.0
        %1698 = vmatprep.mubr.f32.mxu0 0.0
        %1699 = vmatmul.mubr.f32.gmra.mxu0 %v1426
        %v1700 = vpop.f32.mrf.mxu0
        %v1701 = vadd.f32 0.0, %v1700
        %v1702 = vpop.f32.mrf.mxu0
        %v1703 = vadd.f32 0.0, %v1702
        %1704 = vmatprep.mubr.f32.mxu0 0.0
        %1705 = vmatmul.mubr.f32.gmra.mxu0 %v1429
        %v1706 = vpop.f32.mrf.mxu0
        %v1707 = vadd.f32 0.0, %v1706
        %v1708 = vpop.f32.mrf.mxu0
        %v1709 = vadd.f32 0.0, %v1708
        %1710 = vmatprep.mubr.f32.mxu0 0.0
        %1711 = vmatmul.mubr.f32.gmra.mxu0 %v1432
        %v1712 = vpop.f32.mrf.mxu0
        %v1713 = vadd.f32 0.0, %v1712
        %v1714 = vpop.f32.mrf.mxu0
        %v1715 = vadd.f32 0.0, %v1714
        %1716 = vmatprep.mubr.f32.mxu0 0.0
        %1717 = vmatmul.mubr.f32.gmra.mxu0 %v1435
        %v1718 = vpop.f32.mrf.mxu0
        %v1719 = vadd.f32 0.0, %v1718
        %v1720 = vpop.f32.mrf.mxu0
        %v1721 = vadd.f32 0.0, %v1720
        %1722 = vmatprep.mubr.f32.mxu0 0.0
        %1723 = vmatmul.mubr.f32.gmra.mxu0 %v1438
        %v1724 = vpop.f32.mrf.mxu0
        %v1725 = vadd.f32 0.0, %v1724
        %v1726 = vpop.f32.mrf.mxu0
        %v1727 = vadd.f32 0.0, %v1726
        %1728 = vmatprep.mubr.f32.mxu0 0.0
        %1729 = vmatmul.mubr.f32.gmra.mxu0 %v1441
        %v1730 = vpop.f32.mrf.mxu0
        %v1731 = vadd.f32 0.0, %v1730
        %v1732 = vpop.f32.mrf.mxu0
        %v1733 = vadd.f32 0.0, %v1732
        %1734 = vmatprep.mubr.f32.mxu0 0.0
        %1735 = vmatmul.mubr.f32.gmra.mxu0 %v1444
        %v1736 = vpop.f32.mrf.mxu0
        %v1737 = vadd.f32 0.0, %v1736
        %v1738 = vpop.f32.mrf.mxu0
        %v1739 = vadd.f32 0.0, %v1738
        %1740 = vmatprep.mubr.f32.mxu0 0.0
        %1741 = vmatmul.mubr.f32.gmra.mxu0 %v1447
        %v1742 = vpop.f32.mrf.mxu0
        %v1743 = vadd.f32 0.0, %v1742
        %v1744 = vpop.f32.mrf.mxu0
        %v1745 = vadd.f32 0.0, %v1744
        %1746 = vmatprep.mubr.f32.mxu0 0.0
        %1747 = vmatmul.mubr.f32.gmra.mxu0 %v1450
        %v1748 = vpop.f32.mrf.mxu0
        %v1749 = vadd.f32 0.0, %v1748
        %v1750 = vpop.f32.mrf.mxu0
        %v1751 = vadd.f32 0.0, %v1750
        %1752 = vmatprep.mubr.f32.mxu0 0.0
        %1753 = vmatmul.mubr.f32.gmra.mxu0 %v1453
        %v1754 = vpop.f32.mrf.mxu0
        %v1755 = vadd.f32 0.0, %v1754
        %v1756 = vpop.f32.mrf.mxu0
        %v1757 = vadd.f32 0.0, %v1756
        %1758 = vmatprep.mubr.f32.mxu0 0.0
        %1759 = vmatmul.mubr.f32.gmra.mxu0 %v1456
        %v1760 = vpop.f32.mrf.mxu0
        %v1761 = vadd.f32 0.0, %v1760
        %v1762 = vpop.f32.mrf.mxu0
        %v1763 = vadd.f32 0.0, %v1762
        %1764 = vmatprep.mubr.f32.mxu0 0.0
        %1765 = vmatmul.mubr.f32.gmra.mxu0 %v1459
        %v1766 = vpop.f32.mrf.mxu0
        %v1767 = vadd.f32 0.0, %v1766
        %v1768 = vpop.f32.mrf.mxu0
        %v1769 = vadd.f32 0.0, %v1768
        %1770 = vmatprep.mubr.f32.mxu0 0.0
        %1771 = vmatmul.mubr.f32.gmra.mxu0 %v1462
        %v1772 = vpop.f32.mrf.mxu0
        %v1773 = vadd.f32 0.0, %v1772
        %v1774 = vpop.f32.mrf.mxu0
        %v1775 = vadd.f32 0.0, %v1774
        %1776 = vmatprep.mubr.f32.mxu0 0.0
        %1777 = vmatmul.mubr.f32.gmra.mxu0 %v1465
        %v1778 = vpop.f32.mrf.mxu0
        %v1779 = vadd.f32 0.0, %v1778
        %v1780 = vpop.f32.mrf.mxu0
        %v1781 = vadd.f32 0.0, %v1780
        %1782 = vmatprep.mubr.f32.mxu0 0.0
        %1783 = vmatmul.mubr.f32.gmra.mxu0 %v1468
        %v1784 = vpop.f32.mrf.mxu0
        %v1785 = vadd.f32 0.0, %v1784
        %v1786 = vpop.f32.mrf.mxu0
        %v1787 = vadd.f32 0.0, %v1786
        %1788 = vmatprep.mubr.f32.mxu0 0.0
        %1789 = vmatmul.mubr.f32.gmra.mxu0 %v1471
        %v1790 = vpop.f32.mrf.mxu0
        %v1791 = vadd.f32 0.0, %v1790
        %v1792 = vpop.f32.mrf.mxu0
        %v1793 = vadd.f32 0.0, %v1792
        %1794 = vdwg.mxu0
        %v1795 = vmul.f32 %v918, %v1540
        %v1796 = vmul.f32 %v919, %v1542
        %v1797 = vmul.f32 %v920, %v1701
        %v1798 = vmul.f32 %v921, %v1703
        %v1799 = vmul.f32 %v922, %v1546
        %v1800 = vmul.f32 %v923, %v1548
        %v1801 = vmul.f32 %v924, %v1707
        %v1802 = vmul.f32 %v925, %v1709
        %v1803 = vmul.f32 %v926, %v1552
        %v1804 = vmul.f32 %v927, %v1554
        %v1805 = vmul.f32 %v928, %v1713
        %v1806 = vmul.f32 %v929, %v1715
        %v1807 = vmul.f32 %v930, %v1558
        %v1808 = vmul.f32 %v931, %v1560
        %v1809 = vmul.f32 %v932, %v1719
        %v1810 = vmul.f32 %v933, %v1721
        %v1811 = vmul.f32 %v934, %v1564
        %v1812 = vmul.f32 %v935, %v1566
        %v1813 = vmul.f32 %v936, %v1725
        %v1814 = vmul.f32 %v937, %v1727
        %v1815 = vmul.f32 %v938, %v1570
        %v1816 = vmul.f32 %v939, %v1572
        %v1817 = vmul.f32 %v940, %v1731
        %v1818 = vmul.f32 %v941, %v1733
        %v1819 = vmul.f32 %v942, %v1576
        %v1820 = vmul.f32 %v943, %v1578
        %v1821 = vmul.f32 %v944, %v1737
        %v1822 = vmul.f32 %v945, %v1739
        %v1823 = vmul.f32 %v946, %v1582
        %v1824 = vmul.f32 %v947, %v1584
        %v1825 = vmul.f32 %v948, %v1743
        %v1826 = vmul.f32 %v949, %v1745
        %v1827 = vmul.f32 %v950, %v1588
        %v1828 = vmul.f32 %v951, %v1590
        %v1829 = vmul.f32 %v952, %v1749
        %v1830 = vmul.f32 %v953, %v1751
        %v1831 = vmul.f32 %v954, %v1594
        %v1832 = vmul.f32 %v955, %v1596
        %v1833 = vmul.f32 %v956, %v1755
        %v1834 = vmul.f32 %v957, %v1757
        %v1835 = vmul.f32 %v958, %v1600
        %v1836 = vmul.f32 %v959, %v1602
        %v1837 = vmul.f32 %v960, %v1761
        %v1838 = vmul.f32 %v961, %v1763
        %v1839 = vmul.f32 %v962, %v1606
        %v1840 = vmul.f32 %v963, %v1608
        %v1841 = vmul.f32 %v964, %v1767
        %v1842 = vmul.f32 %v965, %v1769
        %v1843 = vmul.f32 %v966, %v1612
        %v1844 = vmul.f32 %v967, %v1614
        %v1845 = vmul.f32 %v968, %v1773
        %v1846 = vmul.f32 %v969, %v1775
        %v1847 = vmul.f32 %v970, %v1618
        %v1848 = vmul.f32 %v971, %v1620
        %v1849 = vmul.f32 %v972, %v1779
        %v1850 = vmul.f32 %v973, %v1781
        %v1851 = vmul.f32 %v974, %v1624
        %v1852 = vmul.f32 %v975, %v1626
        %v1853 = vmul.f32 %v976, %v1785
        %v1854 = vmul.f32 %v977, %v1787
        %v1855 = vmul.f32 %v978, %v1630
        %v1856 = vmul.f32 %v979, %v1632
        %v1857 = vmul.f32 %v980, %v1791
        %v1858 = vmul.f32 %v981, %v1793
        %v1859 = vpack.c.bf16 %v1799, %v1795
        %v1860 = vpack.c.bf16 %v1800, %v1796
        %v1861 = vpack.c.bf16 %v1801, %v1797
        %v1862 = vpack.c.bf16 %v1802, %v1798
        %v1863 = vpack.c.bf16 %v1807, %v1803
        %v1864 = vpack.c.bf16 %v1808, %v1804
        %v1865 = vpack.c.bf16 %v1809, %v1805
        %v1866 = vpack.c.bf16 %v1810, %v1806
        %v1867 = vpack.c.bf16 %v1815, %v1811
        %v1868 = vpack.c.bf16 %v1816, %v1812
        %v1869 = vpack.c.bf16 %v1817, %v1813
        %v1870 = vpack.c.bf16 %v1818, %v1814
        %v1871 = vpack.c.bf16 %v1823, %v1819
        %v1872 = vpack.c.bf16 %v1824, %v1820
        %v1873 = vpack.c.bf16 %v1825, %v1821
        %v1874 = vpack.c.bf16 %v1826, %v1822
        %v1875 = vpack.c.bf16 %v1831, %v1827
        %v1876 = vpack.c.bf16 %v1832, %v1828
        %v1877 = vpack.c.bf16 %v1833, %v1829
        %v1878 = vpack.c.bf16 %v1834, %v1830
        %v1879 = vpack.c.bf16 %v1839, %v1835
        %v1880 = vpack.c.bf16 %v1840, %v1836
        %v1881 = vpack.c.bf16 %v1841, %v1837
        %v1882 = vpack.c.bf16 %v1842, %v1838
        %v1883 = vpack.c.bf16 %v1847, %v1843
        %v1884 = vpack.c.bf16 %v1848, %v1844
        %v1885 = vpack.c.bf16 %v1849, %v1845
        %v1886 = vpack.c.bf16 %v1850, %v1846
        %v1887 = vpack.c.bf16 %v1855, %v1851
        %v1888 = vpack.c.bf16 %v1856, %v1852
        %v1889 = vpack.c.bf16 %v1857, %v1853
        %v1890 = vpack.c.bf16 %v1858, %v1854
        %v1891 = vld [vmem:[#allocation2] sm:$0xff]
        %v1892 = vld [vmem:[#allocation2 + $0x8] sm:$0xff]
        %v1893 = vld [vmem:[#allocation2 + $0x10] sm:$0xff]
        %v1894 = vld [vmem:[#allocation2 + $0x18] sm:$0xff]
        %v1895 = vld [vmem:[#allocation2 + $0x20] sm:$0xff]
        %v1896 = vld [vmem:[#allocation2 + $0x28] sm:$0xff]
        %v1897 = vld [vmem:[#allocation2 + $0x30] sm:$0xff]
        %v1898 = vld [vmem:[#allocation2 + $0x38] sm:$0xff]
        %v1899 = vld [vmem:[#allocation2 + $0x40] sm:$0xff]
        %v1900 = vld [vmem:[#allocation2 + $0x48] sm:$0xff]
        %v1901 = vld [vmem:[#allocation2 + $0x50] sm:$0xff]
        %v1902 = vld [vmem:[#allocation2 + $0x58] sm:$0xff]
        %v1903 = vld [vmem:[#allocation2 + $0x60] sm:$0xff]
        %v1904 = vld [vmem:[#allocation2 + $0x68] sm:$0xff]
        %v1905 = vld [vmem:[#allocation2 + $0x70] sm:$0xff]
        %v1906 = vld [vmem:[#allocation2 + $0x78] sm:$0xff]
        %v1907 = vld [vmem:[#allocation2 + $0x80] sm:$0xff]
        %v1908 = vld [vmem:[#allocation2 + $0x88] sm:$0xff]
        %v1909 = vld [vmem:[#allocation2 + $0x90] sm:$0xff]
        %v1910 = vld [vmem:[#allocation2 + $0x98] sm:$0xff]
        %v1911 = vld [vmem:[#allocation2 + $0xa0] sm:$0xff]
        %v1912 = vld [vmem:[#allocation2 + $0xa8] sm:$0xff]
        %v1913 = vld [vmem:[#allocation2 + $0xb0] sm:$0xff]
        %v1914 = vld [vmem:[#allocation2 + $0xb8] sm:$0xff]
        %v1915 = vld [vmem:[#allocation2 + $0xc0] sm:$0xff]
        %v1916 = vld [vmem:[#allocation2 + $0xc8] sm:$0xff]
        %v1917 = vld [vmem:[#allocation2 + $0xd0] sm:$0xff]
        %v1918 = vld [vmem:[#allocation2 + $0xd8] sm:$0xff]
        %v1919 = vld [vmem:[#allocation2 + $0xe0] sm:$0xff]
        %v1920 = vld [vmem:[#allocation2 + $0xe8] sm:$0xff]
        %v1921 = vld [vmem:[#allocation2 + $0xf0] sm:$0xff]
        %v1922 = vld [vmem:[#allocation2 + $0xf8] sm:$0xff]
        %v1923 = vld [vmem:[#allocation2 + $0x100] sm:$0xff]
        %v1924 = vld [vmem:[#allocation2 + $0x108] sm:$0xff]
        %v1925 = vld [vmem:[#allocation2 + $0x110] sm:$0xff]
        %v1926 = vld [vmem:[#allocation2 + $0x118] sm:$0xff]
        %v1927 = vld [vmem:[#allocation2 + $0x120] sm:$0xff]
        %v1928 = vld [vmem:[#allocation2 + $0x128] sm:$0xff]
        %v1929 = vld [vmem:[#allocation2 + $0x130] sm:$0xff]
        %v1930 = vld [vmem:[#allocation2 + $0x138] sm:$0xff]
        %v1931 = vld [vmem:[#allocation2 + $0x140] sm:$0xff]
        %v1932 = vld [vmem:[#allocation2 + $0x148] sm:$0xff]
        %v1933 = vld [vmem:[#allocation2 + $0x150] sm:$0xff]
        %v1934 = vld [vmem:[#allocation2 + $0x158] sm:$0xff]
        %v1935 = vld [vmem:[#allocation2 + $0x160] sm:$0xff]
        %v1936 = vld [vmem:[#allocation2 + $0x168] sm:$0xff]
        %v1937 = vld [vmem:[#allocation2 + $0x170] sm:$0xff]
        %v1938 = vld [vmem:[#allocation2 + $0x178] sm:$0xff]
        %v1939 = vld [vmem:[#allocation2 + $0x180] sm:$0xff]
        %v1940 = vld [vmem:[#allocation2 + $0x188] sm:$0xff]
        %v1941 = vld [vmem:[#allocation2 + $0x190] sm:$0xff]
        %v1942 = vld [vmem:[#allocation2 + $0x198] sm:$0xff]
        %v1943 = vld [vmem:[#allocation2 + $0x1a0] sm:$0xff]
        %v1944 = vld [vmem:[#allocation2 + $0x1a8] sm:$0xff]
        %v1945 = vld [vmem:[#allocation2 + $0x1b0] sm:$0xff]
        %v1946 = vld [vmem:[#allocation2 + $0x1b8] sm:$0xff]
        %v1947 = vld [vmem:[#allocation2 + $0x1c0] sm:$0xff]
        %v1948 = vld [vmem:[#allocation2 + $0x1c8] sm:$0xff]
        %v1949 = vld [vmem:[#allocation2 + $0x1d0] sm:$0xff]
        %v1950 = vld [vmem:[#allocation2 + $0x1d8] sm:$0xff]
        %v1951 = vld [vmem:[#allocation2 + $0x1e0] sm:$0xff]
        %v1952 = vld [vmem:[#allocation2 + $0x1e8] sm:$0xff]
        %v1953 = vld [vmem:[#allocation2 + $0x1f0] sm:$0xff]
        %v1954 = vld [vmem:[#allocation2 + $0x1f8] sm:$0xff]
        %v1955 = vld [vmem:[#allocation2 + $0x200] sm:$0xff]
        %v1956 = vld [vmem:[#allocation2 + $0x208] sm:$0xff]
        %v1957 = vld [vmem:[#allocation2 + $0x210] sm:$0xff]
        %v1958 = vld [vmem:[#allocation2 + $0x218] sm:$0xff]
        %v1959 = vld [vmem:[#allocation2 + $0x220] sm:$0xff]
        %v1960 = vld [vmem:[#allocation2 + $0x228] sm:$0xff]
        %v1961 = vld [vmem:[#allocation2 + $0x230] sm:$0xff]
        %v1962 = vld [vmem:[#allocation2 + $0x238] sm:$0xff]
        %v1963 = vld [vmem:[#allocation2 + $0x240] sm:$0xff]
        %v1964 = vld [vmem:[#allocation2 + $0x248] sm:$0xff]
        %v1965 = vld [vmem:[#allocation2 + $0x250] sm:$0xff]
        %v1966 = vld [vmem:[#allocation2 + $0x258] sm:$0xff]
        %v1967 = vld [vmem:[#allocation2 + $0x260] sm:$0xff]
        %v1968 = vld [vmem:[#allocation2 + $0x268] sm:$0xff]
        %v1969 = vld [vmem:[#allocation2 + $0x270] sm:$0xff]
        %v1970 = vld [vmem:[#allocation2 + $0x278] sm:$0xff]
        %v1971 = vld [vmem:[#allocation2 + $0x280] sm:$0xff]
        %v1972 = vld [vmem:[#allocation2 + $0x288] sm:$0xff]
        %v1973 = vld [vmem:[#allocation2 + $0x290] sm:$0xff]
        %v1974 = vld [vmem:[#allocation2 + $0x298] sm:$0xff]
        %v1975 = vld [vmem:[#allocation2 + $0x2a0] sm:$0xff]
        %v1976 = vld [vmem:[#allocation2 + $0x2a8] sm:$0xff]
        %v1977 = vld [vmem:[#allocation2 + $0x2b0] sm:$0xff]
        %v1978 = vld [vmem:[#allocation2 + $0x2b8] sm:$0xff]
        %v1979 = vld [vmem:[#allocation2 + $0x2c0] sm:$0xff]
        %v1980 = vld [vmem:[#allocation2 + $0x2c8] sm:$0xff]
        %v1981 = vld [vmem:[#allocation2 + $0x2d0] sm:$0xff]
        %v1982 = vld [vmem:[#allocation2 + $0x2d8] sm:$0xff]
        %v1983 = vld [vmem:[#allocation2 + $0x2e0] sm:$0xff]
        %v1984 = vld [vmem:[#allocation2 + $0x2e8] sm:$0xff]
        %v1985 = vld [vmem:[#allocation2 + $0x2f0] sm:$0xff]
        %v1986 = vld [vmem:[#allocation2 + $0x2f8] sm:$0xff]
        %v1987 = vld [vmem:[#allocation2 + $0x300] sm:$0xff]
        %v1988 = vld [vmem:[#allocation2 + $0x308] sm:$0xff]
        %v1989 = vld [vmem:[#allocation2 + $0x310] sm:$0xff]
        %v1990 = vld [vmem:[#allocation2 + $0x318] sm:$0xff]
        %v1991 = vld [vmem:[#allocation2 + $0x320] sm:$0xff]
        %v1992 = vld [vmem:[#allocation2 + $0x328] sm:$0xff]
        %v1993 = vld [vmem:[#allocation2 + $0x330] sm:$0xff]
        %v1994 = vld [vmem:[#allocation2 + $0x338] sm:$0xff]
        %v1995 = vld [vmem:[#allocation2 + $0x340] sm:$0xff]
        %v1996 = vld [vmem:[#allocation2 + $0x348] sm:$0xff]
        %v1997 = vld [vmem:[#allocation2 + $0x350] sm:$0xff]
        %v1998 = vld [vmem:[#allocation2 + $0x358] sm:$0xff]
        %v1999 = vld [vmem:[#allocation2 + $0x360] sm:$0xff]
        %v2000 = vld [vmem:[#allocation2 + $0x368] sm:$0xff]
        %v2001 = vld [vmem:[#allocation2 + $0x370] sm:$0xff]
        %v2002 = vld [vmem:[#allocation2 + $0x378] sm:$0xff]
        %v2003 = vld [vmem:[#allocation2 + $0x380] sm:$0xff]
        %v2004 = vld [vmem:[#allocation2 + $0x388] sm:$0xff]
        %v2005 = vld [vmem:[#allocation2 + $0x390] sm:$0xff]
        %v2006 = vld [vmem:[#allocation2 + $0x398] sm:$0xff]
        %v2007 = vld [vmem:[#allocation2 + $0x3a0] sm:$0xff]
        %v2008 = vld [vmem:[#allocation2 + $0x3a8] sm:$0xff]
        %v2009 = vld [vmem:[#allocation2 + $0x3b0] sm:$0xff]
        %v2010 = vld [vmem:[#allocation2 + $0x3b8] sm:$0xff]
        %v2011 = vld [vmem:[#allocation2 + $0x3c0] sm:$0xff]
        %v2012 = vld [vmem:[#allocation2 + $0x3c8] sm:$0xff]
        %v2013 = vld [vmem:[#allocation2 + $0x3d0] sm:$0xff]
        %v2014 = vld [vmem:[#allocation2 + $0x3d8] sm:$0xff]
        %v2015 = vld [vmem:[#allocation2 + $0x3e0] sm:$0xff]
        %v2016 = vld [vmem:[#allocation2 + $0x3e8] sm:$0xff]
        %v2017 = vld [vmem:[#allocation2 + $0x3f0] sm:$0xff]
        %v2018 = vld [vmem:[#allocation2 + $0x3f8] sm:$0xff]
        %v2019 = vlaneseq
        %v2020 = vshrl.u32 %v2019, 7
        %v2021 = vsub.s32 1, %v2020
        %v2022 = vrot.slane %v298, %v2021
        %v2023 = vlaneseq
        %v2024 = vshrl.u32 %v2023, 7
        %v2025 = vsub.s32 5, %v2024
        %v2026 = vrot.slane %v298, %v2025
        %v2027 = vlaneseq
        %v2028 = vshrl.u32 %v2027, 7
        %v2029 = vsub.s32 1, %v2028
        %v2030 = vrot.slane %v299, %v2029
        %v2031 = vlaneseq
        %v2032 = vshrl.u32 %v2031, 7
        %v2033 = vsub.s32 5, %v2032
        %v2034 = vrot.slane %v299, %v2033
        %v2039 = vlaneseq
        %v2040 = vshrl.u32 %v2039, 7
        %v2041 = vsub.s32 1, %v2040
        %v2042 = vrot.slane %v2022, %v2041
        %v2043 = vlaneseq
        %v2044 = vshrl.u32 %v2043, 7
        %v2045 = vsub.s32 1, %v2044
        %v2046 = vrot.slane %v2026, %v2045
        %v2047 = vlaneseq
        %v2048 = vshrl.u32 %v2047, 7
        %v2049 = vsub.s32 1, %v2048
        %v2050 = vrot.slane %v2030, %v2049
        %v2051 = vlaneseq
        %v2052 = vshrl.u32 %v2051, 7
        %v2053 = vsub.s32 1, %v2052
        %v2054 = vrot.slane %v2034, %v2053
        %v2183 = vunpack.c.l.b16 %v1891
        %v2184 = vunpack.c.h.b16 %v1891
        %v2185 = vunpack.c.l.b16 %v1892
        %v2186 = vunpack.c.h.b16 %v1892
        %v2187 = vunpack.c.l.b16 %v1893
        %v2188 = vunpack.c.h.b16 %v1893
        %v2189 = vunpack.c.l.b16 %v1894
        %v2190 = vunpack.c.h.b16 %v1894
        %v2191 = vunpack.c.l.b16 %v1895
        %v2192 = vunpack.c.h.b16 %v1895
        %v2193 = vunpack.c.l.b16 %v1896
        %v2194 = vunpack.c.h.b16 %v1896
        %v2195 = vunpack.c.l.b16 %v1897
        %v2196 = vunpack.c.h.b16 %v1897
        %v2197 = vunpack.c.l.b16 %v1898
        %v2198 = vunpack.c.h.b16 %v1898
        %v2199 = vunpack.c.l.b16 %v1899
        %v2200 = vunpack.c.h.b16 %v1899
        %v2201 = vunpack.c.l.b16 %v1900
        %v2202 = vunpack.c.h.b16 %v1900
        %v2203 = vunpack.c.l.b16 %v1901
        %v2204 = vunpack.c.h.b16 %v1901
        %v2205 = vunpack.c.l.b16 %v1902
        %v2206 = vunpack.c.h.b16 %v1902
        %v2207 = vunpack.c.l.b16 %v1903
        %v2208 = vunpack.c.h.b16 %v1903
        %v2209 = vunpack.c.l.b16 %v1904
        %v2210 = vunpack.c.h.b16 %v1904
        %v2211 = vunpack.c.l.b16 %v1905
        %v2212 = vunpack.c.h.b16 %v1905
        %v2213 = vunpack.c.l.b16 %v1906
        %v2214 = vunpack.c.h.b16 %v1906
        %v2215 = vunpack.c.l.b16 %v1907
        %v2216 = vunpack.c.h.b16 %v1907
        %v2217 = vunpack.c.l.b16 %v1908
        %v2218 = vunpack.c.h.b16 %v1908
        %v2219 = vunpack.c.l.b16 %v1909
        %v2220 = vunpack.c.h.b16 %v1909
        %v2221 = vunpack.c.l.b16 %v1910
        %v2222 = vunpack.c.h.b16 %v1910
        %v2223 = vunpack.c.l.b16 %v1911
        %v2224 = vunpack.c.h.b16 %v1911
        %v2225 = vunpack.c.l.b16 %v1912
        %v2226 = vunpack.c.h.b16 %v1912
        %v2227 = vunpack.c.l.b16 %v1913
        %v2228 = vunpack.c.h.b16 %v1913
        %v2229 = vunpack.c.l.b16 %v1914
        %v2230 = vunpack.c.h.b16 %v1914
        %v2231 = vunpack.c.l.b16 %v1915
        %v2232 = vunpack.c.h.b16 %v1915
        %v2233 = vunpack.c.l.b16 %v1916
        %v2234 = vunpack.c.h.b16 %v1916
        %v2235 = vunpack.c.l.b16 %v1917
        %v2236 = vunpack.c.h.b16 %v1917
        %v2237 = vunpack.c.l.b16 %v1918
        %v2238 = vunpack.c.h.b16 %v1918
        %v2239 = vunpack.c.l.b16 %v1919
        %v2240 = vunpack.c.h.b16 %v1919
        %v2241 = vunpack.c.l.b16 %v1920
        %v2242 = vunpack.c.h.b16 %v1920
        %v2243 = vunpack.c.l.b16 %v1921
        %v2244 = vunpack.c.h.b16 %v1921
        %v2245 = vunpack.c.l.b16 %v1922
        %v2246 = vunpack.c.h.b16 %v1922
        %v2247 = vunpack.c.l.b16 %v1923
        %v2248 = vunpack.c.h.b16 %v1923
        %v2249 = vunpack.c.l.b16 %v1924
        %v2250 = vunpack.c.h.b16 %v1924
        %v2251 = vunpack.c.l.b16 %v1925
        %v2252 = vunpack.c.h.b16 %v1925
        %v2253 = vunpack.c.l.b16 %v1926
        %v2254 = vunpack.c.h.b16 %v1926
        %v2255 = vunpack.c.l.b16 %v1927
        %v2256 = vunpack.c.h.b16 %v1927
        %v2257 = vunpack.c.l.b16 %v1928
        %v2258 = vunpack.c.h.b16 %v1928
        %v2259 = vunpack.c.l.b16 %v1929
        %v2260 = vunpack.c.h.b16 %v1929
        %v2261 = vunpack.c.l.b16 %v1930
        %v2262 = vunpack.c.h.b16 %v1930
        %v2263 = vunpack.c.l.b16 %v1931
        %v2264 = vunpack.c.h.b16 %v1931
        %v2265 = vunpack.c.l.b16 %v1932
        %v2266 = vunpack.c.h.b16 %v1932
        %v2267 = vunpack.c.l.b16 %v1933
        %v2268 = vunpack.c.h.b16 %v1933
        %v2269 = vunpack.c.l.b16 %v1934
        %v2270 = vunpack.c.h.b16 %v1934
        %v2271 = vunpack.c.l.b16 %v1935
        %v2272 = vunpack.c.h.b16 %v1935
        %v2273 = vunpack.c.l.b16 %v1936
        %v2274 = vunpack.c.h.b16 %v1936
        %v2275 = vunpack.c.l.b16 %v1937
        %v2276 = vunpack.c.h.b16 %v1937
        %v2277 = vunpack.c.l.b16 %v1938
        %v2278 = vunpack.c.h.b16 %v1938
        %v2279 = vunpack.c.l.b16 %v1939
        %v2280 = vunpack.c.h.b16 %v1939
        %v2281 = vunpack.c.l.b16 %v1940
        %v2282 = vunpack.c.h.b16 %v1940
        %v2283 = vunpack.c.l.b16 %v1941
        %v2284 = vunpack.c.h.b16 %v1941
        %v2285 = vunpack.c.l.b16 %v1942
        %v2286 = vunpack.c.h.b16 %v1942
        %v2287 = vunpack.c.l.b16 %v1943
        %v2288 = vunpack.c.h.b16 %v1943
        %v2289 = vunpack.c.l.b16 %v1944
        %v2290 = vunpack.c.h.b16 %v1944
        %v2291 = vunpack.c.l.b16 %v1945
        %v2292 = vunpack.c.h.b16 %v1945
        %v2293 = vunpack.c.l.b16 %v1946
        %v2294 = vunpack.c.h.b16 %v1946
        %v2295 = vunpack.c.l.b16 %v1947
        %v2296 = vunpack.c.h.b16 %v1947
        %v2297 = vunpack.c.l.b16 %v1948
        %v2298 = vunpack.c.h.b16 %v1948
        %v2299 = vunpack.c.l.b16 %v1949
        %v2300 = vunpack.c.h.b16 %v1949
        %v2301 = vunpack.c.l.b16 %v1950
        %v2302 = vunpack.c.h.b16 %v1950
        %v2303 = vunpack.c.l.b16 %v1951
        %v2304 = vunpack.c.h.b16 %v1951
        %v2305 = vunpack.c.l.b16 %v1952
        %v2306 = vunpack.c.h.b16 %v1952
        %v2307 = vunpack.c.l.b16 %v1953
        %v2308 = vunpack.c.h.b16 %v1953
        %v2309 = vunpack.c.l.b16 %v1954
        %v2310 = vunpack.c.h.b16 %v1954
        %v2311 = vunpack.c.l.b16 %v1955
        %v2312 = vunpack.c.h.b16 %v1955
        %v2313 = vunpack.c.l.b16 %v1956
        %v2314 = vunpack.c.h.b16 %v1956
        %v2315 = vunpack.c.l.b16 %v1957
        %v2316 = vunpack.c.h.b16 %v1957
        %v2317 = vunpack.c.l.b16 %v1958
        %v2318 = vunpack.c.h.b16 %v1958
        %v2319 = vunpack.c.l.b16 %v1959
        %v2320 = vunpack.c.h.b16 %v1959
        %v2321 = vunpack.c.l.b16 %v1960
        %v2322 = vunpack.c.h.b16 %v1960
        %v2323 = vunpack.c.l.b16 %v1961
        %v2324 = vunpack.c.h.b16 %v1961
        %v2325 = vunpack.c.l.b16 %v1962
        %v2326 = vunpack.c.h.b16 %v1962
        %v2327 = vunpack.c.l.b16 %v1963
        %v2328 = vunpack.c.h.b16 %v1963
        %v2329 = vunpack.c.l.b16 %v1964
        %v2330 = vunpack.c.h.b16 %v1964
        %v2331 = vunpack.c.l.b16 %v1965
        %v2332 = vunpack.c.h.b16 %v1965
        %v2333 = vunpack.c.l.b16 %v1966
        %v2334 = vunpack.c.h.b16 %v1966
        %v2335 = vunpack.c.l.b16 %v1967
        %v2336 = vunpack.c.h.b16 %v1967
        %v2337 = vunpack.c.l.b16 %v1968
        %v2338 = vunpack.c.h.b16 %v1968
        %v2339 = vunpack.c.l.b16 %v1969
        %v2340 = vunpack.c.h.b16 %v1969
        %v2341 = vunpack.c.l.b16 %v1970
        %v2342 = vunpack.c.h.b16 %v1970
        %v2343 = vunpack.c.l.b16 %v1971
        %v2344 = vunpack.c.h.b16 %v1971
        %v2345 = vunpack.c.l.b16 %v1972
        %v2346 = vunpack.c.h.b16 %v1972
        %v2347 = vunpack.c.l.b16 %v1973
        %v2348 = vunpack.c.h.b16 %v1973
        %v2349 = vunpack.c.l.b16 %v1974
        %v2350 = vunpack.c.h.b16 %v1974
        %v2351 = vunpack.c.l.b16 %v1975
        %v2352 = vunpack.c.h.b16 %v1975
        %v2353 = vunpack.c.l.b16 %v1976
        %v2354 = vunpack.c.h.b16 %v1976
        %v2355 = vunpack.c.l.b16 %v1977
        %v2356 = vunpack.c.h.b16 %v1977
        %v2357 = vunpack.c.l.b16 %v1978
        %v2358 = vunpack.c.h.b16 %v1978
        %v2359 = vunpack.c.l.b16 %v1979
        %v2360 = vunpack.c.h.b16 %v1979
        %v2361 = vunpack.c.l.b16 %v1980
        %v2362 = vunpack.c.h.b16 %v1980
        %v2363 = vunpack.c.l.b16 %v1981
        %v2364 = vunpack.c.h.b16 %v1981
        %v2365 = vunpack.c.l.b16 %v1982
        %v2366 = vunpack.c.h.b16 %v1982
        %v2367 = vunpack.c.l.b16 %v1983
        %v2368 = vunpack.c.h.b16 %v1983
        %v2369 = vunpack.c.l.b16 %v1984
        %v2370 = vunpack.c.h.b16 %v1984
        %v2371 = vunpack.c.l.b16 %v1985
        %v2372 = vunpack.c.h.b16 %v1985
        %v2373 = vunpack.c.l.b16 %v1986
        %v2374 = vunpack.c.h.b16 %v1986
        %v2375 = vunpack.c.l.b16 %v1987
        %v2376 = vunpack.c.h.b16 %v1987
        %v2377 = vunpack.c.l.b16 %v1988
        %v2378 = vunpack.c.h.b16 %v1988
        %v2379 = vunpack.c.l.b16 %v1989
        %v2380 = vunpack.c.h.b16 %v1989
        %v2381 = vunpack.c.l.b16 %v1990
        %v2382 = vunpack.c.h.b16 %v1990
        %v2383 = vunpack.c.l.b16 %v1991
        %v2384 = vunpack.c.h.b16 %v1991
        %v2385 = vunpack.c.l.b16 %v1992
        %v2386 = vunpack.c.h.b16 %v1992
        %v2387 = vunpack.c.l.b16 %v1993
        %v2388 = vunpack.c.h.b16 %v1993
        %v2389 = vunpack.c.l.b16 %v1994
        %v2390 = vunpack.c.h.b16 %v1994
        %v2391 = vunpack.c.l.b16 %v1995
        %v2392 = vunpack.c.h.b16 %v1995
        %v2393 = vunpack.c.l.b16 %v1996
        %v2394 = vunpack.c.h.b16 %v1996
        %v2395 = vunpack.c.l.b16 %v1997
        %v2396 = vunpack.c.h.b16 %v1997
        %v2397 = vunpack.c.l.b16 %v1998
        %v2398 = vunpack.c.h.b16 %v1998
        %v2399 = vunpack.c.l.b16 %v1999
        %v2400 = vunpack.c.h.b16 %v1999
        %v2401 = vunpack.c.l.b16 %v2000
        %v2402 = vunpack.c.h.b16 %v2000
        %v2403 = vunpack.c.l.b16 %v2001
        %v2404 = vunpack.c.h.b16 %v2001
        %v2405 = vunpack.c.l.b16 %v2002
        %v2406 = vunpack.c.h.b16 %v2002
        %v2407 = vunpack.c.l.b16 %v2003
        %v2408 = vunpack.c.h.b16 %v2003
        %v2409 = vunpack.c.l.b16 %v2004
        %v2410 = vunpack.c.h.b16 %v2004
        %v2411 = vunpack.c.l.b16 %v2005
        %v2412 = vunpack.c.h.b16 %v2005
        %v2413 = vunpack.c.l.b16 %v2006
        %v2414 = vunpack.c.h.b16 %v2006
        %v2415 = vunpack.c.l.b16 %v2007
        %v2416 = vunpack.c.h.b16 %v2007
        %v2417 = vunpack.c.l.b16 %v2008
        %v2418 = vunpack.c.h.b16 %v2008
        %v2419 = vunpack.c.l.b16 %v2009
        %v2420 = vunpack.c.h.b16 %v2009
        %v2421 = vunpack.c.l.b16 %v2010
        %v2422 = vunpack.c.h.b16 %v2010
        %v2423 = vunpack.c.l.b16 %v2011
        %v2424 = vunpack.c.h.b16 %v2011
        %v2425 = vunpack.c.l.b16 %v2012
        %v2426 = vunpack.c.h.b16 %v2012
        %v2427 = vunpack.c.l.b16 %v2013
        %v2428 = vunpack.c.h.b16 %v2013
        %v2429 = vunpack.c.l.b16 %v2014
        %v2430 = vunpack.c.h.b16 %v2014
        %v2431 = vunpack.c.l.b16 %v2015
        %v2432 = vunpack.c.h.b16 %v2015
        %v2433 = vunpack.c.l.b16 %v2016
        %v2434 = vunpack.c.h.b16 %v2016
        %v2435 = vunpack.c.l.b16 %v2017
        %v2436 = vunpack.c.h.b16 %v2017
        %v2437 = vunpack.c.l.b16 %v2018
        %v2438 = vunpack.c.h.b16 %v2018
        %v2439 = vpack.c.b16 %v2187, %v2183
        %v2440 = vpack.c.b16 %v2188, %v2184
        %v2441 = vpack.c.b16 %v2189, %v2185
        %v2442 = vpack.c.b16 %v2190, %v2186
        %v2443 = vpack.c.b16 %v2195, %v2191
        %v2444 = vpack.c.b16 %v2196, %v2192
        %v2445 = vpack.c.b16 %v2197, %v2193
        %v2446 = vpack.c.b16 %v2198, %v2194
        %v2447 = vpack.c.b16 %v2203, %v2199
        %v2448 = vpack.c.b16 %v2204, %v2200
        %v2449 = vpack.c.b16 %v2205, %v2201
        %v2450 = vpack.c.b16 %v2206, %v2202
        %v2451 = vpack.c.b16 %v2211, %v2207
        %v2452 = vpack.c.b16 %v2212, %v2208
        %v2453 = vpack.c.b16 %v2213, %v2209
        %v2454 = vpack.c.b16 %v2214, %v2210
        %v2455 = vpack.c.b16 %v2219, %v2215
        %v2456 = vpack.c.b16 %v2220, %v2216
        %v2457 = vpack.c.b16 %v2221, %v2217
        %v2458 = vpack.c.b16 %v2222, %v2218
        %v2459 = vpack.c.b16 %v2227, %v2223
        %v2460 = vpack.c.b16 %v2228, %v2224
        %v2461 = vpack.c.b16 %v2229, %v2225
        %v2462 = vpack.c.b16 %v2230, %v2226
        %v2463 = vpack.c.b16 %v2235, %v2231
        %v2464 = vpack.c.b16 %v2236, %v2232
        %v2465 = vpack.c.b16 %v2237, %v2233
        %v2466 = vpack.c.b16 %v2238, %v2234
        %v2467 = vpack.c.b16 %v2243, %v2239
        %v2468 = vpack.c.b16 %v2244, %v2240
        %v2469 = vpack.c.b16 %v2245, %v2241
        %v2470 = vpack.c.b16 %v2246, %v2242
        %v2471 = vpack.c.b16 %v2251, %v2247
        %v2472 = vpack.c.b16 %v2252, %v2248
        %v2473 = vpack.c.b16 %v2253, %v2249
        %v2474 = vpack.c.b16 %v2254, %v2250
        %v2475 = vpack.c.b16 %v2259, %v2255
        %v2476 = vpack.c.b16 %v2260, %v2256
        %v2477 = vpack.c.b16 %v2261, %v2257
        %v2478 = vpack.c.b16 %v2262, %v2258
        %v2479 = vpack.c.b16 %v2267, %v2263
        %v2480 = vpack.c.b16 %v2268, %v2264
        %v2481 = vpack.c.b16 %v2269, %v2265
        %v2482 = vpack.c.b16 %v2270, %v2266
        %v2483 = vpack.c.b16 %v2275, %v2271
        %v2484 = vpack.c.b16 %v2276, %v2272
        %v2485 = vpack.c.b16 %v2277, %v2273
        %v2486 = vpack.c.b16 %v2278, %v2274
        %v2487 = vpack.c.b16 %v2283, %v2279
        %v2488 = vpack.c.b16 %v2284, %v2280
        %v2489 = vpack.c.b16 %v2285, %v2281
        %v2490 = vpack.c.b16 %v2286, %v2282
        %v2491 = vpack.c.b16 %v2291, %v2287
        %v2492 = vpack.c.b16 %v2292, %v2288
        %v2493 = vpack.c.b16 %v2293, %v2289
        %v2494 = vpack.c.b16 %v2294, %v2290
        %v2495 = vpack.c.b16 %v2299, %v2295
        %v2496 = vpack.c.b16 %v2300, %v2296
        %v2497 = vpack.c.b16 %v2301, %v2297
        %v2498 = vpack.c.b16 %v2302, %v2298
        %v2499 = vpack.c.b16 %v2307, %v2303
        %v2500 = vpack.c.b16 %v2308, %v2304
        %v2501 = vpack.c.b16 %v2309, %v2305
        %v2502 = vpack.c.b16 %v2310, %v2306
        %v2503 = vpack.c.b16 %v2315, %v2311
        %v2504 = vpack.c.b16 %v2316, %v2312
        %v2505 = vpack.c.b16 %v2317, %v2313
        %v2506 = vpack.c.b16 %v2318, %v2314
        %v2507 = vpack.c.b16 %v2323, %v2319
        %v2508 = vpack.c.b16 %v2324, %v2320
        %v2509 = vpack.c.b16 %v2325, %v2321
        %v2510 = vpack.c.b16 %v2326, %v2322
        %v2511 = vpack.c.b16 %v2331, %v2327
        %v2512 = vpack.c.b16 %v2332, %v2328
        %v2513 = vpack.c.b16 %v2333, %v2329
        %v2514 = vpack.c.b16 %v2334, %v2330
        %v2515 = vpack.c.b16 %v2339, %v2335
        %v2516 = vpack.c.b16 %v2340, %v2336
        %v2517 = vpack.c.b16 %v2341, %v2337
        %v2518 = vpack.c.b16 %v2342, %v2338
        %v2519 = vpack.c.b16 %v2347, %v2343
        %v2520 = vpack.c.b16 %v2348, %v2344
        %v2521 = vpack.c.b16 %v2349, %v2345
        %v2522 = vpack.c.b16 %v2350, %v2346
        %v2523 = vpack.c.b16 %v2355, %v2351
        %v2524 = vpack.c.b16 %v2356, %v2352
        %v2525 = vpack.c.b16 %v2357, %v2353
        %v2526 = vpack.c.b16 %v2358, %v2354
        %v2527 = vpack.c.b16 %v2363, %v2359
        %v2528 = vpack.c.b16 %v2364, %v2360
        %v2529 = vpack.c.b16 %v2365, %v2361
        %v2530 = vpack.c.b16 %v2366, %v2362
        %v2531 = vpack.c.b16 %v2371, %v2367
        %v2532 = vpack.c.b16 %v2372, %v2368
        %v2533 = vpack.c.b16 %v2373, %v2369
        %v2534 = vpack.c.b16 %v2374, %v2370
        %v2535 = vpack.c.b16 %v2379, %v2375
        %v2536 = vpack.c.b16 %v2380, %v2376
        %v2537 = vpack.c.b16 %v2381, %v2377
        %v2538 = vpack.c.b16 %v2382, %v2378
        %v2539 = vpack.c.b16 %v2387, %v2383
        %v2540 = vpack.c.b16 %v2388, %v2384
        %v2541 = vpack.c.b16 %v2389, %v2385
        %v2542 = vpack.c.b16 %v2390, %v2386
        %v2543 = vpack.c.b16 %v2395, %v2391
        %v2544 = vpack.c.b16 %v2396, %v2392
        %v2545 = vpack.c.b16 %v2397, %v2393
        %v2546 = vpack.c.b16 %v2398, %v2394
        %v2547 = vpack.c.b16 %v2403, %v2399
        %v2548 = vpack.c.b16 %v2404, %v2400
        %v2549 = vpack.c.b16 %v2405, %v2401
        %v2550 = vpack.c.b16 %v2406, %v2402
        %v2551 = vpack.c.b16 %v2411, %v2407
        %v2552 = vpack.c.b16 %v2412, %v2408
        %v2553 = vpack.c.b16 %v2413, %v2409
        %v2554 = vpack.c.b16 %v2414, %v2410
        %v2555 = vpack.c.b16 %v2419, %v2415
        %v2556 = vpack.c.b16 %v2420, %v2416
        %v2557 = vpack.c.b16 %v2421, %v2417
        %v2558 = vpack.c.b16 %v2422, %v2418
        %v2559 = vpack.c.b16 %v2427, %v2423
        %v2560 = vpack.c.b16 %v2428, %v2424
        %v2561 = vpack.c.b16 %v2429, %v2425
        %v2562 = vpack.c.b16 %v2430, %v2426
        %v2563 = vpack.c.b16 %v2435, %v2431
        %v2564 = vpack.c.b16 %v2436, %v2432
        %v2565 = vpack.c.b16 %v2437, %v2433
        %v2566 = vpack.c.b16 %v2438, %v2434
        %2695 = vmatprep.subr.bf16.mxu0 %v2468
        %2696 = vmatpush1.bf16.msra.mxu0 %v2467
        %2697 = vmatprep.subr.bf16.mxu0 %v2464
        %2698 = vmatpush1.bf16.msra.mxu0 %v2463
        %2699 = vmatprep.subr.bf16.mxu0 %v2460
        %2700 = vmatpush1.bf16.msra.mxu0 %v2459
        %2701 = vmatprep.subr.bf16.mxu0 %v2456
        %2702 = vmatpush1.bf16.msra.mxu0 %v2455
        %2703 = vmatprep.subr.bf16.mxu0 %v2452
        %2704 = vmatpush1.bf16.msra.mxu0 %v2451
        %2705 = vmatprep.subr.bf16.mxu0 %v2448
        %2706 = vmatpush1.bf16.msra.mxu0 %v2447
        %2707 = vmatprep.subr.bf16.mxu0 %v2444
        %2708 = vmatpush1.bf16.msra.mxu0 %v2443
        %2709 = vmatprep.subr.bf16.mxu0 %v2440
        %2710 = vmatpush1.bf16.msra.mxu0 %v2439
        %2711 = vmatprep.subr.bf16.mxu0 %v2500
        %2712 = vmatpush2.bf16.msra.mxu0 %v2499
        %2713 = vmatprep.subr.bf16.mxu0 %v2496
        %2714 = vmatpush2.bf16.msra.mxu0 %v2495
        %2715 = vmatprep.subr.bf16.mxu0 %v2492
        %2716 = vmatpush2.bf16.msra.mxu0 %v2491
        %2717 = vmatprep.subr.bf16.mxu0 %v2488
        %2718 = vmatpush2.bf16.msra.mxu0 %v2487
        %2719 = vmatprep.subr.bf16.mxu0 %v2484
        %2720 = vmatpush2.bf16.msra.mxu0 %v2483
        %2721 = vmatprep.subr.bf16.mxu0 %v2480
        %2722 = vmatpush2.bf16.msra.mxu0 %v2479
        %2723 = vmatprep.subr.bf16.mxu0 %v2476
        %2724 = vmatpush2.bf16.msra.mxu0 %v2475
        %2725 = vmatprep.subr.bf16.mxu0 %v2472
        %2726 = vmatpush2.bf16.msra.mxu0 %v2471
        %2727 = vmatprep.mubr.bf16.mxu0 %v1860
        %2728 = vmatmul.mubr.bf16.gmra.mxu0 %v1859
        %v2729 = vpop.f32.mrf.mxu0
        %v2730 = vadd.f32 %v2042, %v2729
        %v2731 = vpop.f32.mrf.mxu0
        %v2732 = vadd.f32 %v2046, %v2731
        %v2733 = vpop.f32.mrf.mxu0
        %v2734 = vadd.f32 %v2042, %v2733
        %v2735 = vpop.f32.mrf.mxu0
        %v2736 = vadd.f32 %v2046, %v2735
        %2737 = vmatprep.mubr.bf16.mxu0 %v1864
        %2738 = vmatmul.mubr.bf16.gmra.mxu0 %v1863
        %v2739 = vpop.f32.mrf.mxu0
        %v2740 = vadd.f32 %v2042, %v2739
        %v2741 = vpop.f32.mrf.mxu0
        %v2742 = vadd.f32 %v2046, %v2741
        %v2743 = vpop.f32.mrf.mxu0
        %v2744 = vadd.f32 %v2042, %v2743
        %v2745 = vpop.f32.mrf.mxu0
        %v2746 = vadd.f32 %v2046, %v2745
        %2747 = vmatprep.mubr.bf16.mxu0 %v1868
        %2748 = vmatmul.mubr.bf16.gmra.mxu0 %v1867
        %v2749 = vpop.f32.mrf.mxu0
        %v2750 = vadd.f32 %v2042, %v2749
        %v2751 = vpop.f32.mrf.mxu0
        %v2752 = vadd.f32 %v2046, %v2751
        %v2753 = vpop.f32.mrf.mxu0
        %v2754 = vadd.f32 %v2042, %v2753
        %v2755 = vpop.f32.mrf.mxu0
        %v2756 = vadd.f32 %v2046, %v2755
        %2757 = vmatprep.mubr.bf16.mxu0 %v1872
        %2758 = vmatmul.mubr.bf16.gmra.mxu0 %v1871
        %v2759 = vpop.f32.mrf.mxu0
        %v2760 = vadd.f32 %v2042, %v2759
        %v2761 = vpop.f32.mrf.mxu0
        %v2762 = vadd.f32 %v2046, %v2761
        %v2763 = vpop.f32.mrf.mxu0
        %v2764 = vadd.f32 %v2042, %v2763
        %v2765 = vpop.f32.mrf.mxu0
        %v2766 = vadd.f32 %v2046, %v2765
        %2767 = vmatprep.mubr.bf16.mxu0 %v1876
        %2768 = vmatmul.mubr.bf16.gmra.mxu0 %v1875
        %v2769 = vpop.f32.mrf.mxu0
        %v2770 = vadd.f32 %v2042, %v2769
        %v2771 = vpop.f32.mrf.mxu0
        %v2772 = vadd.f32 %v2046, %v2771
        %v2773 = vpop.f32.mrf.mxu0
        %v2774 = vadd.f32 %v2042, %v2773
        %v2775 = vpop.f32.mrf.mxu0
        %v2776 = vadd.f32 %v2046, %v2775
        %2777 = vmatprep.mubr.bf16.mxu0 %v1880
        %2778 = vmatmul.mubr.bf16.gmra.mxu0 %v1879
        %v2779 = vpop.f32.mrf.mxu0
        %v2780 = vadd.f32 %v2042, %v2779
        %v2781 = vpop.f32.mrf.mxu0
        %v2782 = vadd.f32 %v2046, %v2781
        %v2783 = vpop.f32.mrf.mxu0
        %v2784 = vadd.f32 %v2042, %v2783
        %v2785 = vpop.f32.mrf.mxu0
        %v2786 = vadd.f32 %v2046, %v2785
        %2787 = vmatprep.mubr.bf16.mxu0 %v1884
        %2788 = vmatmul.mubr.bf16.gmra.mxu0 %v1883
        %v2789 = vpop.f32.mrf.mxu0
        %v2790 = vadd.f32 %v2042, %v2789
        %v2791 = vpop.f32.mrf.mxu0
        %v2792 = vadd.f32 %v2046, %v2791
        %v2793 = vpop.f32.mrf.mxu0
        %v2794 = vadd.f32 %v2042, %v2793
        %v2795 = vpop.f32.mrf.mxu0
        %v2796 = vadd.f32 %v2046, %v2795
        %2797 = vmatprep.mubr.bf16.mxu0 %v1888
        %2798 = vmatmul.mubr.bf16.gmra.mxu0 %v1887
        %v2799 = vpop.f32.mrf.mxu0
        %v2800 = vadd.f32 %v2042, %v2799
        %v2801 = vpop.f32.mrf.mxu0
        %v2802 = vadd.f32 %v2046, %v2801
        %v2803 = vpop.f32.mrf.mxu0
        %v2804 = vadd.f32 %v2042, %v2803
        %v2805 = vpop.f32.mrf.mxu0
        %v2806 = vadd.f32 %v2046, %v2805
        %2807 = vdwg.mxu0
        %2808 = vmatprep.subr.bf16.mxu0 %v2532
        %2809 = vmatpush1.bf16.msra.mxu0 %v2531
        %2810 = vmatprep.subr.bf16.mxu0 %v2528
        %2811 = vmatpush1.bf16.msra.mxu0 %v2527
        %2812 = vmatprep.subr.bf16.mxu0 %v2524
        %2813 = vmatpush1.bf16.msra.mxu0 %v2523
        %2814 = vmatprep.subr.bf16.mxu0 %v2520
        %2815 = vmatpush1.bf16.msra.mxu0 %v2519
        %2816 = vmatprep.subr.bf16.mxu0 %v2516
        %2817 = vmatpush1.bf16.msra.mxu0 %v2515
        %2818 = vmatprep.subr.bf16.mxu0 %v2512
        %2819 = vmatpush1.bf16.msra.mxu0 %v2511
        %2820 = vmatprep.subr.bf16.mxu0 %v2508
        %2821 = vmatpush1.bf16.msra.mxu0 %v2507
        %2822 = vmatprep.subr.bf16.mxu0 %v2504
        %2823 = vmatpush1.bf16.msra.mxu0 %v2503
        %2824 = vmatprep.subr.bf16.mxu0 %v2564
        %2825 = vmatpush2.bf16.msra.mxu0 %v2563
        %2826 = vmatprep.subr.bf16.mxu0 %v2560
        %2827 = vmatpush2.bf16.msra.mxu0 %v2559
        %2828 = vmatprep.subr.bf16.mxu0 %v2556
        %2829 = vmatpush2.bf16.msra.mxu0 %v2555
        %2830 = vmatprep.subr.bf16.mxu0 %v2552
        %2831 = vmatpush2.bf16.msra.mxu0 %v2551
        %2832 = vmatprep.subr.bf16.mxu0 %v2548
        %2833 = vmatpush2.bf16.msra.mxu0 %v2547
        %2834 = vmatprep.subr.bf16.mxu0 %v2544
        %2835 = vmatpush2.bf16.msra.mxu0 %v2543
        %2836 = vmatprep.subr.bf16.mxu0 %v2540
        %2837 = vmatpush2.bf16.msra.mxu0 %v2539
        %2838 = vmatprep.subr.bf16.mxu0 %v2536
        %2839 = vmatpush2.bf16.msra.mxu0 %v2535
        %2840 = vmatprep.mubr.bf16.mxu0 %v1862
        %2841 = vmatmul.mubr.bf16.gmra.mxu0 %v1861
        %v2842 = vpop.f32.mrf.mxu0
        %v2843 = vadd.f32 %v2730, %v2842
        %v2844 = vpop.f32.mrf.mxu0
        %v2845 = vadd.f32 %v2732, %v2844
        %v2846 = vpop.f32.mrf.mxu0
        %v2847 = vadd.f32 %v2734, %v2846
        %v2848 = vpop.f32.mrf.mxu0
        %v2849 = vadd.f32 %v2736, %v2848
        %2850 = vmatprep.mubr.bf16.mxu0 %v1866
        %2851 = vmatmul.mubr.bf16.gmra.mxu0 %v1865
        %v2852 = vpop.f32.mrf.mxu0
        %v2853 = vadd.f32 %v2740, %v2852
        %v2854 = vpop.f32.mrf.mxu0
        %v2855 = vadd.f32 %v2742, %v2854
        %v2856 = vpop.f32.mrf.mxu0
        %v2857 = vadd.f32 %v2744, %v2856
        %v2858 = vpop.f32.mrf.mxu0
        %v2859 = vadd.f32 %v2746, %v2858
        %2860 = vmatprep.mubr.bf16.mxu0 %v1870
        %2861 = vmatmul.mubr.bf16.gmra.mxu0 %v1869
        %v2862 = vpop.f32.mrf.mxu0
        %v2863 = vadd.f32 %v2750, %v2862
        %v2864 = vpop.f32.mrf.mxu0
        %v2865 = vadd.f32 %v2752, %v2864
        %v2866 = vpop.f32.mrf.mxu0
        %v2867 = vadd.f32 %v2754, %v2866
        %v2868 = vpop.f32.mrf.mxu0
        %v2869 = vadd.f32 %v2756, %v2868
        %2870 = vmatprep.mubr.bf16.mxu0 %v1874
        %2871 = vmatmul.mubr.bf16.gmra.mxu0 %v1873
        %v2872 = vpop.f32.mrf.mxu0
        %v2873 = vadd.f32 %v2760, %v2872
        %v2874 = vpop.f32.mrf.mxu0
        %v2875 = vadd.f32 %v2762, %v2874
        %v2876 = vpop.f32.mrf.mxu0
        %v2877 = vadd.f32 %v2764, %v2876
        %v2878 = vpop.f32.mrf.mxu0
        %v2879 = vadd.f32 %v2766, %v2878
        %2880 = vmatprep.mubr.bf16.mxu0 %v1878
        %2881 = vmatmul.mubr.bf16.gmra.mxu0 %v1877
        %v2882 = vpop.f32.mrf.mxu0
        %v2883 = vadd.f32 %v2770, %v2882
        %v2884 = vpop.f32.mrf.mxu0
        %v2885 = vadd.f32 %v2772, %v2884
        %v2886 = vpop.f32.mrf.mxu0
        %v2887 = vadd.f32 %v2774, %v2886
        %v2888 = vpop.f32.mrf.mxu0
        %v2889 = vadd.f32 %v2776, %v2888
        %2890 = vmatprep.mubr.bf16.mxu0 %v1882
        %2891 = vmatmul.mubr.bf16.gmra.mxu0 %v1881
        %v2892 = vpop.f32.mrf.mxu0
        %v2893 = vadd.f32 %v2780, %v2892
        %v2894 = vpop.f32.mrf.mxu0
        %v2895 = vadd.f32 %v2782, %v2894
        %v2896 = vpop.f32.mrf.mxu0
        %v2897 = vadd.f32 %v2784, %v2896
        %v2898 = vpop.f32.mrf.mxu0
        %v2899 = vadd.f32 %v2786, %v2898
        %2900 = vmatprep.mubr.bf16.mxu0 %v1886
        %2901 = vmatmul.mubr.bf16.gmra.mxu0 %v1885
        %v2902 = vpop.f32.mrf.mxu0
        %v2903 = vadd.f32 %v2790, %v2902
        %v2904 = vpop.f32.mrf.mxu0
        %v2905 = vadd.f32 %v2792, %v2904
        %v2906 = vpop.f32.mrf.mxu0
        %v2907 = vadd.f32 %v2794, %v2906
        %v2908 = vpop.f32.mrf.mxu0
        %v2909 = vadd.f32 %v2796, %v2908
        %2910 = vmatprep.mubr.bf16.mxu0 %v1890
        %2911 = vmatmul.mubr.bf16.gmra.mxu0 %v1889
        %v2912 = vpop.f32.mrf.mxu0
        %v2913 = vadd.f32 %v2800, %v2912
        %v2914 = vpop.f32.mrf.mxu0
        %v2915 = vadd.f32 %v2802, %v2914
        %v2916 = vpop.f32.mrf.mxu0
        %v2917 = vadd.f32 %v2804, %v2916
        %v2918 = vpop.f32.mrf.mxu0
        %v2919 = vadd.f32 %v2806, %v2918
        %2920 = vdwg.mxu0
        %2921 = vmatprep.subr.bf16.mxu0 %v2470
        %2922 = vmatpush1.bf16.msra.mxu0 %v2469
        %2923 = vmatprep.subr.bf16.mxu0 %v2466
        %2924 = vmatpush1.bf16.msra.mxu0 %v2465
        %2925 = vmatprep.subr.bf16.mxu0 %v2462
        %2926 = vmatpush1.bf16.msra.mxu0 %v2461
        %2927 = vmatprep.subr.bf16.mxu0 %v2458
        %2928 = vmatpush1.bf16.msra.mxu0 %v2457
        %2929 = vmatprep.subr.bf16.mxu0 %v2454
        %2930 = vmatpush1.bf16.msra.mxu0 %v2453
        %2931 = vmatprep.subr.bf16.mxu0 %v2450
        %2932 = vmatpush1.bf16.msra.mxu0 %v2449
        %2933 = vmatprep.subr.bf16.mxu0 %v2446
        %2934 = vmatpush1.bf16.msra.mxu0 %v2445
        %2935 = vmatprep.subr.bf16.mxu0 %v2442
        %2936 = vmatpush1.bf16.msra.mxu0 %v2441
        %2937 = vmatprep.subr.bf16.mxu0 %v2502
        %2938 = vmatpush2.bf16.msra.mxu0 %v2501
        %2939 = vmatprep.subr.bf16.mxu0 %v2498
        %2940 = vmatpush2.bf16.msra.mxu0 %v2497
        %2941 = vmatprep.subr.bf16.mxu0 %v2494
        %2942 = vmatpush2.bf16.msra.mxu0 %v2493
        %2943 = vmatprep.subr.bf16.mxu0 %v2490
        %2944 = vmatpush2.bf16.msra.mxu0 %v2489
        %2945 = vmatprep.subr.bf16.mxu0 %v2486
        %2946 = vmatpush2.bf16.msra.mxu0 %v2485
        %2947 = vmatprep.subr.bf16.mxu0 %v2482
        %2948 = vmatpush2.bf16.msra.mxu0 %v2481
        %2949 = vmatprep.subr.bf16.mxu0 %v2478
        %2950 = vmatpush2.bf16.msra.mxu0 %v2477
        %2951 = vmatprep.subr.bf16.mxu0 %v2474
        %2952 = vmatpush2.bf16.msra.mxu0 %v2473
        %2953 = vmatprep.mubr.bf16.mxu0 %v1860
        %2954 = vmatmul.mubr.bf16.gmra.mxu0 %v1859
        %v2955 = vpop.f32.mrf.mxu0
        %v2956 = vadd.f32 %v2050, %v2955
        %v2957 = vpop.f32.mrf.mxu0
        %v2958 = vadd.f32 %v2054, %v2957
        %v2959 = vpop.f32.mrf.mxu0
        %v2960 = vadd.f32 %v2050, %v2959
        %v2961 = vpop.f32.mrf.mxu0
        %v2962 = vadd.f32 %v2054, %v2961
        %2963 = vmatprep.mubr.bf16.mxu0 %v1864
        %2964 = vmatmul.mubr.bf16.gmra.mxu0 %v1863
        %v2965 = vpop.f32.mrf.mxu0
        %v2966 = vadd.f32 %v2050, %v2965
        %v2967 = vpop.f32.mrf.mxu0
        %v2968 = vadd.f32 %v2054, %v2967
        %v2969 = vpop.f32.mrf.mxu0
        %v2970 = vadd.f32 %v2050, %v2969
        %v2971 = vpop.f32.mrf.mxu0
        %v2972 = vadd.f32 %v2054, %v2971
        %2973 = vmatprep.mubr.bf16.mxu0 %v1868
        %2974 = vmatmul.mubr.bf16.gmra.mxu0 %v1867
        %v2975 = vpop.f32.mrf.mxu0
        %v2976 = vadd.f32 %v2050, %v2975
        %v2977 = vpop.f32.mrf.mxu0
        %v2978 = vadd.f32 %v2054, %v2977
        %v2979 = vpop.f32.mrf.mxu0
        %v2980 = vadd.f32 %v2050, %v2979
        %v2981 = vpop.f32.mrf.mxu0
        %v2982 = vadd.f32 %v2054, %v2981
        %2983 = vmatprep.mubr.bf16.mxu0 %v1872
        %2984 = vmatmul.mubr.bf16.gmra.mxu0 %v1871
        %v2985 = vpop.f32.mrf.mxu0
        %v2986 = vadd.f32 %v2050, %v2985
        %v2987 = vpop.f32.mrf.mxu0
        %v2988 = vadd.f32 %v2054, %v2987
        %v2989 = vpop.f32.mrf.mxu0
        %v2990 = vadd.f32 %v2050, %v2989
        %v2991 = vpop.f32.mrf.mxu0
        %v2992 = vadd.f32 %v2054, %v2991
        %2993 = vmatprep.mubr.bf16.mxu0 %v1876
        %2994 = vmatmul.mubr.bf16.gmra.mxu0 %v1875
        %v2995 = vpop.f32.mrf.mxu0
        %v2996 = vadd.f32 %v2050, %v2995
        %v2997 = vpop.f32.mrf.mxu0
        %v2998 = vadd.f32 %v2054, %v2997
        %v2999 = vpop.f32.mrf.mxu0
        %v3000 = vadd.f32 %v2050, %v2999
        %v3001 = vpop.f32.mrf.mxu0
        %v3002 = vadd.f32 %v2054, %v3001
        %3003 = vmatprep.mubr.bf16.mxu0 %v1880
        %3004 = vmatmul.mubr.bf16.gmra.mxu0 %v1879
        %v3005 = vpop.f32.mrf.mxu0
        %v3006 = vadd.f32 %v2050, %v3005
        %v3007 = vpop.f32.mrf.mxu0
        %v3008 = vadd.f32 %v2054, %v3007
        %v3009 = vpop.f32.mrf.mxu0
        %v3010 = vadd.f32 %v2050, %v3009
        %v3011 = vpop.f32.mrf.mxu0
        %v3012 = vadd.f32 %v2054, %v3011
        %3013 = vmatprep.mubr.bf16.mxu0 %v1884
        %3014 = vmatmul.mubr.bf16.gmra.mxu0 %v1883
        %v3015 = vpop.f32.mrf.mxu0
        %v3016 = vadd.f32 %v2050, %v3015
        %v3017 = vpop.f32.mrf.mxu0
        %v3018 = vadd.f32 %v2054, %v3017
        %v3019 = vpop.f32.mrf.mxu0
        %v3020 = vadd.f32 %v2050, %v3019
        %v3021 = vpop.f32.mrf.mxu0
        %v3022 = vadd.f32 %v2054, %v3021
        %3023 = vmatprep.mubr.bf16.mxu0 %v1888
        %3024 = vmatmul.mubr.bf16.gmra.mxu0 %v1887
        %v3025 = vpop.f32.mrf.mxu0
        %v3026 = vadd.f32 %v2050, %v3025
        %v3027 = vpop.f32.mrf.mxu0
        %v3028 = vadd.f32 %v2054, %v3027
        %v3029 = vpop.f32.mrf.mxu0
        %v3030 = vadd.f32 %v2050, %v3029
        %v3031 = vpop.f32.mrf.mxu0
        %v3032 = vadd.f32 %v2054, %v3031
        %3033 = vdwg.mxu0
        %3034 = vmatprep.subr.bf16.mxu0 %v2534
        %3035 = vmatpush1.bf16.msra.mxu0 %v2533
        %3036 = vmatprep.subr.bf16.mxu0 %v2530
        %3037 = vmatpush1.bf16.msra.mxu0 %v2529
        %3038 = vmatprep.subr.bf16.mxu0 %v2526
        %3039 = vmatpush1.bf16.msra.mxu0 %v2525
        %3040 = vmatprep.subr.bf16.mxu0 %v2522
        %3041 = vmatpush1.bf16.msra.mxu0 %v2521
        %3042 = vmatprep.subr.bf16.mxu0 %v2518
        %3043 = vmatpush1.bf16.msra.mxu0 %v2517
        %3044 = vmatprep.subr.bf16.mxu0 %v2514
        %3045 = vmatpush1.bf16.msra.mxu0 %v2513
        %3046 = vmatprep.subr.bf16.mxu0 %v2510
        %3047 = vmatpush1.bf16.msra.mxu0 %v2509
        %3048 = vmatprep.subr.bf16.mxu0 %v2506
        %3049 = vmatpush1.bf16.msra.mxu0 %v2505
        %3050 = vmatprep.subr.bf16.mxu0 %v2566
        %3051 = vmatpush2.bf16.msra.mxu0 %v2565
        %3052 = vmatprep.subr.bf16.mxu0 %v2562
        %3053 = vmatpush2.bf16.msra.mxu0 %v2561
        %3054 = vmatprep.subr.bf16.mxu0 %v2558
        %3055 = vmatpush2.bf16.msra.mxu0 %v2557
        %3056 = vmatprep.subr.bf16.mxu0 %v2554
        %3057 = vmatpush2.bf16.msra.mxu0 %v2553
        %3058 = vmatprep.subr.bf16.mxu0 %v2550
        %3059 = vmatpush2.bf16.msra.mxu0 %v2549
        %3060 = vmatprep.subr.bf16.mxu0 %v2546
        %3061 = vmatpush2.bf16.msra.mxu0 %v2545
        %3062 = vmatprep.subr.bf16.mxu0 %v2542
        %3063 = vmatpush2.bf16.msra.mxu0 %v2541
        %3064 = vmatprep.subr.bf16.mxu0 %v2538
        %3065 = vmatpush2.bf16.msra.mxu0 %v2537
        %3066 = vmatprep.mubr.bf16.mxu0 %v1862
        %3067 = vmatmul.mubr.bf16.gmra.mxu0 %v1861
        %v3068 = vpop.f32.mrf.mxu0
        %v3069 = vadd.f32 %v2956, %v3068
        %v3070 = vpop.f32.mrf.mxu0
        %v3071 = vadd.f32 %v2958, %v3070
        %v3072 = vpop.f32.mrf.mxu0
        %v3073 = vadd.f32 %v2960, %v3072
        %v3074 = vpop.f32.mrf.mxu0
        %v3075 = vadd.f32 %v2962, %v3074
        %3076 = vmatprep.mubr.bf16.mxu0 %v1866
        %3077 = vmatmul.mubr.bf16.gmra.mxu0 %v1865
        %v3078 = vpop.f32.mrf.mxu0
        %v3079 = vadd.f32 %v2966, %v3078
        %v3080 = vpop.f32.mrf.mxu0
        %v3081 = vadd.f32 %v2968, %v3080
        %v3082 = vpop.f32.mrf.mxu0
        %v3083 = vadd.f32 %v2970, %v3082
        %v3084 = vpop.f32.mrf.mxu0
        %v3085 = vadd.f32 %v2972, %v3084
        %3086 = vmatprep.mubr.bf16.mxu0 %v1870
        %3087 = vmatmul.mubr.bf16.gmra.mxu0 %v1869
        %v3088 = vpop.f32.mrf.mxu0
        %v3089 = vadd.f32 %v2976, %v3088
        %v3090 = vpop.f32.mrf.mxu0
        %v3091 = vadd.f32 %v2978, %v3090
        %v3092 = vpop.f32.mrf.mxu0
        %v3093 = vadd.f32 %v2980, %v3092
        %v3094 = vpop.f32.mrf.mxu0
        %v3095 = vadd.f32 %v2982, %v3094
        %3096 = vmatprep.mubr.bf16.mxu0 %v1874
        %3097 = vmatmul.mubr.bf16.gmra.mxu0 %v1873
        %v3098 = vpop.f32.mrf.mxu0
        %v3099 = vadd.f32 %v2986, %v3098
        %v3100 = vpop.f32.mrf.mxu0
        %v3101 = vadd.f32 %v2988, %v3100
        %v3102 = vpop.f32.mrf.mxu0
        %v3103 = vadd.f32 %v2990, %v3102
        %v3104 = vpop.f32.mrf.mxu0
        %v3105 = vadd.f32 %v2992, %v3104
        %3106 = vmatprep.mubr.bf16.mxu0 %v1878
        %3107 = vmatmul.mubr.bf16.gmra.mxu0 %v1877
        %v3108 = vpop.f32.mrf.mxu0
        %v3109 = vadd.f32 %v2996, %v3108
        %v3110 = vpop.f32.mrf.mxu0
        %v3111 = vadd.f32 %v2998, %v3110
        %v3112 = vpop.f32.mrf.mxu0
        %v3113 = vadd.f32 %v3000, %v3112
        %v3114 = vpop.f32.mrf.mxu0
        %v3115 = vadd.f32 %v3002, %v3114
        %3116 = vmatprep.mubr.bf16.mxu0 %v1882
        %3117 = vmatmul.mubr.bf16.gmra.mxu0 %v1881
        %v3118 = vpop.f32.mrf.mxu0
        %v3119 = vadd.f32 %v3006, %v3118
        %v3120 = vpop.f32.mrf.mxu0
        %v3121 = vadd.f32 %v3008, %v3120
        %v3122 = vpop.f32.mrf.mxu0
        %v3123 = vadd.f32 %v3010, %v3122
        %v3124 = vpop.f32.mrf.mxu0
        %v3125 = vadd.f32 %v3012, %v3124
        %3126 = vmatprep.mubr.bf16.mxu0 %v1886
        %3127 = vmatmul.mubr.bf16.gmra.mxu0 %v1885
        %v3128 = vpop.f32.mrf.mxu0
        %v3129 = vadd.f32 %v3016, %v3128
        %v3130 = vpop.f32.mrf.mxu0
        %v3131 = vadd.f32 %v3018, %v3130
        %v3132 = vpop.f32.mrf.mxu0
        %v3133 = vadd.f32 %v3020, %v3132
        %v3134 = vpop.f32.mrf.mxu0
        %v3135 = vadd.f32 %v3022, %v3134
        %3136 = vmatprep.mubr.bf16.mxu0 %v1890
        %3137 = vmatmul.mubr.bf16.gmra.mxu0 %v1889
        %v3138 = vpop.f32.mrf.mxu0
        %v3139 = vadd.f32 %v3026, %v3138
        %v3140 = vpop.f32.mrf.mxu0
        %v3141 = vadd.f32 %v3028, %v3140
        %v3142 = vpop.f32.mrf.mxu0
        %v3143 = vadd.f32 %v3030, %v3142
        %v3144 = vpop.f32.mrf.mxu0
        %v3145 = vadd.f32 %v3032, %v3144
        %3146 = vdwg.mxu0
        %vm3147 = vcmp.ge.f32.partialorder %v2843, 0.0
        %vm3148 = vcmp.ge.f32.partialorder %v2845, 0.0
        %vm3149 = vcmp.ge.f32.partialorder %v3069, 0.0
        %vm3150 = vcmp.ge.f32.partialorder %v3071, 0.0
        %vm3151 = vcmp.ge.f32.partialorder %v2847, 0.0
        %vm3152 = vcmp.ge.f32.partialorder %v2849, 0.0
        %vm3153 = vcmp.ge.f32.partialorder %v3073, 0.0
        %vm3154 = vcmp.ge.f32.partialorder %v3075, 0.0
        %vm3155 = vcmp.ge.f32.partialorder %v2853, 0.0
        %vm3156 = vcmp.ge.f32.partialorder %v2855, 0.0
        %vm3157 = vcmp.ge.f32.partialorder %v3079, 0.0
        %vm3158 = vcmp.ge.f32.partialorder %v3081, 0.0
        %vm3159 = vcmp.ge.f32.partialorder %v2857, 0.0
        %vm3160 = vcmp.ge.f32.partialorder %v2859, 0.0
        %vm3161 = vcmp.ge.f32.partialorder %v3083, 0.0
        %vm3162 = vcmp.ge.f32.partialorder %v3085, 0.0
        %vm3163 = vcmp.ge.f32.partialorder %v2863, 0.0
        %vm3164 = vcmp.ge.f32.partialorder %v2865, 0.0
        %vm3165 = vcmp.ge.f32.partialorder %v3089, 0.0
        %vm3166 = vcmp.ge.f32.partialorder %v3091, 0.0
        %vm3167 = vcmp.ge.f32.partialorder %v2867, 0.0
        %vm3168 = vcmp.ge.f32.partialorder %v2869, 0.0
        %vm3169 = vcmp.ge.f32.partialorder %v3093, 0.0
        %vm3170 = vcmp.ge.f32.partialorder %v3095, 0.0
        %vm3171 = vcmp.ge.f32.partialorder %v2873, 0.0
        %vm3172 = vcmp.ge.f32.partialorder %v2875, 0.0
        %vm3173 = vcmp.ge.f32.partialorder %v3099, 0.0
        %vm3174 = vcmp.ge.f32.partialorder %v3101, 0.0
        %vm3175 = vcmp.ge.f32.partialorder %v2877, 0.0
        %vm3176 = vcmp.ge.f32.partialorder %v2879, 0.0
        %vm3177 = vcmp.ge.f32.partialorder %v3103, 0.0
        %vm3178 = vcmp.ge.f32.partialorder %v3105, 0.0
        %vm3179 = vcmp.ge.f32.partialorder %v2883, 0.0
        %vm3180 = vcmp.ge.f32.partialorder %v2885, 0.0
        %vm3181 = vcmp.ge.f32.partialorder %v3109, 0.0
        %vm3182 = vcmp.ge.f32.partialorder %v3111, 0.0
        %vm3183 = vcmp.ge.f32.partialorder %v2887, 0.0
        %vm3184 = vcmp.ge.f32.partialorder %v2889, 0.0
        %vm3185 = vcmp.ge.f32.partialorder %v3113, 0.0
        %vm3186 = vcmp.ge.f32.partialorder %v3115, 0.0
        %vm3187 = vcmp.ge.f32.partialorder %v2893, 0.0
        %vm3188 = vcmp.ge.f32.partialorder %v2895, 0.0
        %vm3189 = vcmp.ge.f32.partialorder %v3119, 0.0
        %vm3190 = vcmp.ge.f32.partialorder %v3121, 0.0
        %vm3191 = vcmp.ge.f32.partialorder %v2897, 0.0
        %vm3192 = vcmp.ge.f32.partialorder %v2899, 0.0
        %vm3193 = vcmp.ge.f32.partialorder %v3123, 0.0
        %vm3194 = vcmp.ge.f32.partialorder %v3125, 0.0
        %vm3195 = vcmp.ge.f32.partialorder %v2903, 0.0
        %vm3196 = vcmp.ge.f32.partialorder %v2905, 0.0
        %vm3197 = vcmp.ge.f32.partialorder %v3129, 0.0
        %vm3198 = vcmp.ge.f32.partialorder %v3131, 0.0
        %vm3199 = vcmp.ge.f32.partialorder %v2907, 0.0
        %vm3200 = vcmp.ge.f32.partialorder %v2909, 0.0
        %vm3201 = vcmp.ge.f32.partialorder %v3133, 0.0
        %vm3202 = vcmp.ge.f32.partialorder %v3135, 0.0
        %vm3203 = vcmp.ge.f32.partialorder %v2913, 0.0
        %vm3204 = vcmp.ge.f32.partialorder %v2915, 0.0
        %vm3205 = vcmp.ge.f32.partialorder %v3139, 0.0
        %vm3206 = vcmp.ge.f32.partialorder %v3141, 0.0
        %vm3207 = vcmp.ge.f32.partialorder %v2917, 0.0
        %vm3208 = vcmp.ge.f32.partialorder %v2919, 0.0
        %vm3209 = vcmp.ge.f32.partialorder %v3143, 0.0
        %vm3210 = vcmp.ge.f32.partialorder %v3145, 0.0
        %v3211 = vmul.f32 %v2843, 0.2
        %v3212 = vmul.f32 %v2845, 0.2
        %v3213 = vmul.f32 %v3069, 0.2
        %v3214 = vmul.f32 %v3071, 0.2
        %v3215 = vmul.f32 %v2847, 0.2
        %v3216 = vmul.f32 %v2849, 0.2
        %v3217 = vmul.f32 %v3073, 0.2
        %v3218 = vmul.f32 %v3075, 0.2
        %v3219 = vmul.f32 %v2853, 0.2
        %v3220 = vmul.f32 %v2855, 0.2
        %v3221 = vmul.f32 %v3079, 0.2
        %v3222 = vmul.f32 %v3081, 0.2
        %v3223 = vmul.f32 %v2857, 0.2
        %v3224 = vmul.f32 %v2859, 0.2
        %v3225 = vmul.f32 %v3083, 0.2
        %v3226 = vmul.f32 %v3085, 0.2
        %v3227 = vmul.f32 %v2863, 0.2
        %v3228 = vmul.f32 %v2865, 0.2
        %v3229 = vmul.f32 %v3089, 0.2
        %v3230 = vmul.f32 %v3091, 0.2
        %v3231 = vmul.f32 %v2867, 0.2
        %v3232 = vmul.f32 %v2869, 0.2
        %v3233 = vmul.f32 %v3093, 0.2
        %v3234 = vmul.f32 %v3095, 0.2
        %v3235 = vmul.f32 %v2873, 0.2
        %v3236 = vmul.f32 %v2875, 0.2
        %v3237 = vmul.f32 %v3099, 0.2
        %v3238 = vmul.f32 %v3101, 0.2
        %v3239 = vmul.f32 %v2877, 0.2
        %v3240 = vmul.f32 %v2879, 0.2
        %v3241 = vmul.f32 %v3103, 0.2
        %v3242 = vmul.f32 %v3105, 0.2
        %v3243 = vmul.f32 %v2883, 0.2
        %v3244 = vmul.f32 %v2885, 0.2
        %v3245 = vmul.f32 %v3109, 0.2
        %v3246 = vmul.f32 %v3111, 0.2
        %v3247 = vmul.f32 %v2887, 0.2
        %v3248 = vmul.f32 %v2889, 0.2
        %v3249 = vmul.f32 %v3113, 0.2
        %v3250 = vmul.f32 %v3115, 0.2
        %v3251 = vmul.f32 %v2893, 0.2
        %v3252 = vmul.f32 %v2895, 0.2
        %v3253 = vmul.f32 %v3119, 0.2
        %v3254 = vmul.f32 %v3121, 0.2
        %v3255 = vmul.f32 %v2897, 0.2
        %v3256 = vmul.f32 %v2899, 0.2
        %v3257 = vmul.f32 %v3123, 0.2
        %v3258 = vmul.f32 %v3125, 0.2
        %v3259 = vmul.f32 %v2903, 0.2
        %v3260 = vmul.f32 %v2905, 0.2
        %v3261 = vmul.f32 %v3129, 0.2
        %v3262 = vmul.f32 %v3131, 0.2
        %v3263 = vmul.f32 %v2907, 0.2
        %v3264 = vmul.f32 %v2909, 0.2
        %v3265 = vmul.f32 %v3133, 0.2
        %v3266 = vmul.f32 %v3135, 0.2
        %v3267 = vmul.f32 %v2913, 0.2
        %v3268 = vmul.f32 %v2915, 0.2
        %v3269 = vmul.f32 %v3139, 0.2
        %v3270 = vmul.f32 %v3141, 0.2
        %v3271 = vmul.f32 %v2917, 0.2
        %v3272 = vmul.f32 %v2919, 0.2
        %v3273 = vmul.f32 %v3143, 0.2
        %v3274 = vmul.f32 %v3145, 0.2
        %v3275 = vsel %vm3147, %v2843, %v3211
        %v3276 = vsel %vm3148, %v2845, %v3212
        %v3277 = vsel %vm3149, %v3069, %v3213
        %v3278 = vsel %vm3150, %v3071, %v3214
        %v3279 = vsel %vm3151, %v2847, %v3215
        %v3280 = vsel %vm3152, %v2849, %v3216
        %v3281 = vsel %vm3153, %v3073, %v3217
        %v3282 = vsel %vm3154, %v3075, %v3218
        %v3283 = vsel %vm3155, %v2853, %v3219
        %v3284 = vsel %vm3156, %v2855, %v3220
        %v3285 = vsel %vm3157, %v3079, %v3221
        %v3286 = vsel %vm3158, %v3081, %v3222
        %v3287 = vsel %vm3159, %v2857, %v3223
        %v3288 = vsel %vm3160, %v2859, %v3224
        %v3289 = vsel %vm3161, %v3083, %v3225
        %v3290 = vsel %vm3162, %v3085, %v3226
        %v3291 = vsel %vm3163, %v2863, %v3227
        %v3292 = vsel %vm3164, %v2865, %v3228
        %v3293 = vsel %vm3165, %v3089, %v3229
        %v3294 = vsel %vm3166, %v3091, %v3230
        %v3295 = vsel %vm3167, %v2867, %v3231
        %v3296 = vsel %vm3168, %v2869, %v3232
        %v3297 = vsel %vm3169, %v3093, %v3233
        %v3298 = vsel %vm3170, %v3095, %v3234
        %v3299 = vsel %vm3171, %v2873, %v3235
        %v3300 = vsel %vm3172, %v2875, %v3236
        %v3301 = vsel %vm3173, %v3099, %v3237
        %v3302 = vsel %vm3174, %v3101, %v3238
        %v3303 = vsel %vm3175, %v2877, %v3239
        %v3304 = vsel %vm3176, %v2879, %v3240
        %v3305 = vsel %vm3177, %v3103, %v3241
        %v3306 = vsel %vm3178, %v3105, %v3242
        %v3307 = vsel %vm3179, %v2883, %v3243
        %v3308 = vsel %vm3180, %v2885, %v3244
        %v3309 = vsel %vm3181, %v3109, %v3245
        %v3310 = vsel %vm3182, %v3111, %v3246
        %v3311 = vsel %vm3183, %v2887, %v3247
        %v3312 = vsel %vm3184, %v2889, %v3248
        %v3313 = vsel %vm3185, %v3113, %v3249
        %v3314 = vsel %vm3186, %v3115, %v3250
        %v3315 = vsel %vm3187, %v2893, %v3251
        %v3316 = vsel %vm3188, %v2895, %v3252
        %v3317 = vsel %vm3189, %v3119, %v3253
        %v3318 = vsel %vm3190, %v3121, %v3254
        %v3319 = vsel %vm3191, %v2897, %v3255
        %v3320 = vsel %vm3192, %v2899, %v3256
        %v3321 = vsel %vm3193, %v3123, %v3257
        %v3322 = vsel %vm3194, %v3125, %v3258
        %v3323 = vsel %vm3195, %v2903, %v3259
        %v3324 = vsel %vm3196, %v2905, %v3260
        %v3325 = vsel %vm3197, %v3129, %v3261
        %v3326 = vsel %vm3198, %v3131, %v3262
        %v3327 = vsel %vm3199, %v2907, %v3263
        %v3328 = vsel %vm3200, %v2909, %v3264
        %v3329 = vsel %vm3201, %v3133, %v3265
        %v3330 = vsel %vm3202, %v3135, %v3266
        %v3331 = vsel %vm3203, %v2913, %v3267
        %v3332 = vsel %vm3204, %v2915, %v3268
        %v3333 = vsel %vm3205, %v3139, %v3269
        %v3334 = vsel %vm3206, %v3141, %v3270
        %v3335 = vsel %vm3207, %v2917, %v3271
        %v3336 = vsel %vm3208, %v2919, %v3272
        %v3337 = vsel %vm3209, %v3143, %v3273
        %v3338 = vsel %vm3210, %v3145, %v3274
        %v3339 = vmul.f32 %v3275, %v3275
        %v3340 = vmul.f32 %v3276, %v3276
        %v3341 = vmul.f32 %v3277, %v3277
        %v3342 = vmul.f32 %v3278, %v3278
        %v3343 = vmul.f32 %v3279, %v3279
        %v3344 = vmul.f32 %v3280, %v3280
        %v3345 = vmul.f32 %v3281, %v3281
        %v3346 = vmul.f32 %v3282, %v3282
        %v3347 = vmul.f32 %v3283, %v3283
        %v3348 = vmul.f32 %v3284, %v3284
        %v3349 = vmul.f32 %v3285, %v3285
        %v3350 = vmul.f32 %v3286, %v3286
        %v3351 = vmul.f32 %v3287, %v3287
        %v3352 = vmul.f32 %v3288, %v3288
        %v3353 = vmul.f32 %v3289, %v3289
        %v3354 = vmul.f32 %v3290, %v3290
        %v3355 = vmul.f32 %v3291, %v3291
        %v3356 = vmul.f32 %v3292, %v3292
        %v3357 = vmul.f32 %v3293, %v3293
        %v3358 = vmul.f32 %v3294, %v3294
        %v3359 = vmul.f32 %v3295, %v3295
        %v3360 = vmul.f32 %v3296, %v3296
        %v3361 = vmul.f32 %v3297, %v3297
        %v3362 = vmul.f32 %v3298, %v3298
        %v3363 = vmul.f32 %v3299, %v3299
        %v3364 = vmul.f32 %v3300, %v3300
        %v3365 = vmul.f32 %v3301, %v3301
        %v3366 = vmul.f32 %v3302, %v3302
        %v3367 = vmul.f32 %v3303, %v3303
        %v3368 = vmul.f32 %v3304, %v3304
        %v3369 = vmul.f32 %v3305, %v3305
        %v3370 = vmul.f32 %v3306, %v3306
        %v3371 = vmul.f32 %v3307, %v3307
        %v3372 = vmul.f32 %v3308, %v3308
        %v3373 = vmul.f32 %v3309, %v3309
        %v3374 = vmul.f32 %v3310, %v3310
        %v3375 = vmul.f32 %v3311, %v3311
        %v3376 = vmul.f32 %v3312, %v3312
        %v3377 = vmul.f32 %v3313, %v3313
        %v3378 = vmul.f32 %v3314, %v3314
        %v3379 = vmul.f32 %v3315, %v3315
        %v3380 = vmul.f32 %v3316, %v3316
        %v3381 = vmul.f32 %v3317, %v3317
        %v3382 = vmul.f32 %v3318, %v3318
        %v3383 = vmul.f32 %v3319, %v3319
        %v3384 = vmul.f32 %v3320, %v3320
        %v3385 = vmul.f32 %v3321, %v3321
        %v3386 = vmul.f32 %v3322, %v3322
        %v3387 = vmul.f32 %v3323, %v3323
        %v3388 = vmul.f32 %v3324, %v3324
        %v3389 = vmul.f32 %v3325, %v3325
        %v3390 = vmul.f32 %v3326, %v3326
        %v3391 = vmul.f32 %v3327, %v3327
        %v3392 = vmul.f32 %v3328, %v3328
        %v3393 = vmul.f32 %v3329, %v3329
        %v3394 = vmul.f32 %v3330, %v3330
        %v3395 = vmul.f32 %v3331, %v3331
        %v3396 = vmul.f32 %v3332, %v3332
        %v3397 = vmul.f32 %v3333, %v3333
        %v3398 = vmul.f32 %v3334, %v3334
        %v3399 = vmul.f32 %v3335, %v3335
        %v3400 = vmul.f32 %v3336, %v3336
        %v3401 = vmul.f32 %v3337, %v3337
        %v3402 = vmul.f32 %v3338, %v3338
        %3403 = vmatprep.subr.mxu0 0.0
        %3404 = vmatpush1.msra.mxu0 %v1061
        %3405 = vmatprep.subr.mxu0 0.0
        %3406 = vmatpush1.msra.mxu0 %v1060
        %3407 = vmatprep.subr.mxu0 0.0
        %3408 = vmatpush1.msra.mxu0 %v1059
        %3409 = vmatprep.subr.mxu0 0.0
        %3410 = vmatpush1.msra.mxu0 %v1058
        %3411 = vmatprep.subr.mxu0 0.0
        %3412 = vmatpush1.msra.mxu0 %v1057
        %3413 = vmatprep.subr.mxu0 0.0
        %3414 = vmatpush1.msra.mxu0 %v1056
        %3415 = vmatprep.subr.mxu0 0.0
        %3416 = vmatpush1.msra.mxu0 %v1055
        %3417 = vmatprep.subr.mxu0 0.0
        %3418 = vmatpush1.msra.mxu0 %v1054
        %3419 = vmatprep.subr.mxu0 0.0
        %3420 = vmatpush1.msra.mxu0 %v1053
        %3421 = vmatprep.subr.mxu0 0.0
        %3422 = vmatpush1.msra.mxu0 %v1052
        %3423 = vmatprep.subr.mxu0 0.0
        %3424 = vmatpush1.msra.mxu0 %v1051
        %3425 = vmatprep.subr.mxu0 0.0
        %3426 = vmatpush1.msra.mxu0 %v1050
        %3427 = vmatprep.subr.mxu0 0.0
        %3428 = vmatpush1.msra.mxu0 %v1049
        %3429 = vmatprep.subr.mxu0 0.0
        %3430 = vmatpush1.msra.mxu0 %v1048
        %3431 = vmatprep.subr.mxu0 0.0
        %3432 = vmatpush1.msra.mxu0 %v1047
        %3433 = vmatprep.subr.mxu0 0.0
        %3434 = vmatpush1.msra.mxu0 %v1046
        %3435 = vmatprep.subr.mxu0 0.0
        %3436 = vmatpush2.msra.mxu0 %v1077
        %3437 = vmatprep.subr.mxu0 0.0
        %3438 = vmatpush2.msra.mxu0 %v1076
        %3439 = vmatprep.subr.mxu0 0.0
        %3440 = vmatpush2.msra.mxu0 %v1075
        %3441 = vmatprep.subr.mxu0 0.0
        %3442 = vmatpush2.msra.mxu0 %v1074
        %3443 = vmatprep.subr.mxu0 0.0
        %3444 = vmatpush2.msra.mxu0 %v1073
        %3445 = vmatprep.subr.mxu0 0.0
        %3446 = vmatpush2.msra.mxu0 %v1072
        %3447 = vmatprep.subr.mxu0 0.0
        %3448 = vmatpush2.msra.mxu0 %v1071
        %3449 = vmatprep.subr.mxu0 0.0
        %3450 = vmatpush2.msra.mxu0 %v1070
        %3451 = vmatprep.subr.mxu0 0.0
        %3452 = vmatpush2.msra.mxu0 %v1069
        %3453 = vmatprep.subr.mxu0 0.0
        %3454 = vmatpush2.msra.mxu0 %v1068
        %3455 = vmatprep.subr.mxu0 0.0
        %3456 = vmatpush2.msra.mxu0 %v1067
        %3457 = vmatprep.subr.mxu0 0.0
        %3458 = vmatpush2.msra.mxu0 %v1066
        %3459 = vmatprep.subr.mxu0 0.0
        %3460 = vmatpush2.msra.mxu0 %v1065
        %3461 = vmatprep.subr.mxu0 0.0
        %3462 = vmatpush2.msra.mxu0 %v1064
        %3463 = vmatprep.subr.mxu0 0.0
        %3464 = vmatpush2.msra.mxu0 %v1063
        %3465 = vmatprep.subr.mxu0 0.0
        %3466 = vmatpush2.msra.mxu0 %v1062
        %3467 = vmatprep.mubr.f32.mxu0 %v3340
        %3468 = vmatmul.mubr.f32.gmra.mxu0 %v3339
        %v3469 = vpop.f32.mrf.mxu0
        %v3470 = vadd.f32 1e-08, %v3469
        %v3471 = vpop.f32.mrf.mxu0
        %3472 = vmatprep.mubr.f32.mxu0 %v3344
        %3473 = vmatmul.mubr.f32.gmra.mxu0 %v3343
        %v3474 = vpop.f32.mrf.mxu0
        %v3475 = vadd.f32 1e-08, %v3474
        %v3476 = vpop.f32.mrf.mxu0
        %3477 = vmatprep.mubr.f32.mxu0 %v3348
        %3478 = vmatmul.mubr.f32.gmra.mxu0 %v3347
        %v3479 = vpop.f32.mrf.mxu0
        %v3480 = vadd.f32 1e-08, %v3479
        %v3481 = vpop.f32.mrf.mxu0
        %3482 = vmatprep.mubr.f32.mxu0 %v3352
        %3483 = vmatmul.mubr.f32.gmra.mxu0 %v3351
        %v3484 = vpop.f32.mrf.mxu0
        %v3485 = vadd.f32 1e-08, %v3484
        %v3486 = vpop.f32.mrf.mxu0
        %3487 = vmatprep.mubr.f32.mxu0 %v3356
        %3488 = vmatmul.mubr.f32.gmra.mxu0 %v3355
        %v3489 = vpop.f32.mrf.mxu0
        %v3490 = vadd.f32 1e-08, %v3489
        %v3491 = vpop.f32.mrf.mxu0
        %3492 = vmatprep.mubr.f32.mxu0 %v3360
        %3493 = vmatmul.mubr.f32.gmra.mxu0 %v3359
        %v3494 = vpop.f32.mrf.mxu0
        %v3495 = vadd.f32 1e-08, %v3494
        %v3496 = vpop.f32.mrf.mxu0
        %3497 = vmatprep.mubr.f32.mxu0 %v3364
        %3498 = vmatmul.mubr.f32.gmra.mxu0 %v3363
        %v3499 = vpop.f32.mrf.mxu0
        %v3500 = vadd.f32 1e-08, %v3499
        %v3501 = vpop.f32.mrf.mxu0
        %3502 = vmatprep.mubr.f32.mxu0 %v3368
        %3503 = vmatmul.mubr.f32.gmra.mxu0 %v3367
        %v3504 = vpop.f32.mrf.mxu0
        %v3505 = vadd.f32 1e-08, %v3504
        %v3506 = vpop.f32.mrf.mxu0
        %3507 = vmatprep.mubr.f32.mxu0 %v3372
        %3508 = vmatmul.mubr.f32.gmra.mxu0 %v3371
        %v3509 = vpop.f32.mrf.mxu0
        %v3510 = vadd.f32 1e-08, %v3509
        %v3511 = vpop.f32.mrf.mxu0
        %3512 = vmatprep.mubr.f32.mxu0 %v3376
        %3513 = vmatmul.mubr.f32.gmra.mxu0 %v3375
        %v3514 = vpop.f32.mrf.mxu0
        %v3515 = vadd.f32 1e-08, %v3514
        %v3516 = vpop.f32.mrf.mxu0
        %3517 = vmatprep.mubr.f32.mxu0 %v3380
        %3518 = vmatmul.mubr.f32.gmra.mxu0 %v3379
        %v3519 = vpop.f32.mrf.mxu0
        %v3520 = vadd.f32 1e-08, %v3519
        %v3521 = vpop.f32.mrf.mxu0
        %3522 = vmatprep.mubr.f32.mxu0 %v3384
        %3523 = vmatmul.mubr.f32.gmra.mxu0 %v3383
        %v3524 = vpop.f32.mrf.mxu0
        %v3525 = vadd.f32 1e-08, %v3524
        %v3526 = vpop.f32.mrf.mxu0
        %3527 = vmatprep.mubr.f32.mxu0 %v3388
        %3528 = vmatmul.mubr.f32.gmra.mxu0 %v3387
        %v3529 = vpop.f32.mrf.mxu0
        %v3530 = vadd.f32 1e-08, %v3529
        %v3531 = vpop.f32.mrf.mxu0
        %3532 = vmatprep.mubr.f32.mxu0 %v3392
        %3533 = vmatmul.mubr.f32.gmra.mxu0 %v3391
        %v3534 = vpop.f32.mrf.mxu0
        %v3535 = vadd.f32 1e-08, %v3534
        %v3536 = vpop.f32.mrf.mxu0
        %3537 = vmatprep.mubr.f32.mxu0 %v3396
        %3538 = vmatmul.mubr.f32.gmra.mxu0 %v3395
        %v3539 = vpop.f32.mrf.mxu0
        %v3540 = vadd.f32 1e-08, %v3539
        %v3541 = vpop.f32.mrf.mxu0
        %3542 = vmatprep.mubr.f32.mxu0 %v3400
        %3543 = vmatmul.mubr.f32.gmra.mxu0 %v3399
        %v3544 = vpop.f32.mrf.mxu0
        %v3545 = vadd.f32 1e-08, %v3544
        %v3546 = vpop.f32.mrf.mxu0
        %3547 = vdwg.mxu0
        %3548 = vmatprep.subr.mxu0 0.0
        %3549 = vmatpush1.msra.mxu0 %v1093
        %3550 = vmatprep.subr.mxu0 0.0
        %3551 = vmatpush1.msra.mxu0 %v1092
        %3552 = vmatprep.subr.mxu0 0.0
        %3553 = vmatpush1.msra.mxu0 %v1091
        %3554 = vmatprep.subr.mxu0 0.0
        %3555 = vmatpush1.msra.mxu0 %v1090
        %3556 = vmatprep.subr.mxu0 0.0
        %3557 = vmatpush1.msra.mxu0 %v1089
        %3558 = vmatprep.subr.mxu0 0.0
        %3559 = vmatpush1.msra.mxu0 %v1088
        %3560 = vmatprep.subr.mxu0 0.0
        %3561 = vmatpush1.msra.mxu0 %v1087
        %3562 = vmatprep.subr.mxu0 0.0
        %3563 = vmatpush1.msra.mxu0 %v1086
        %3564 = vmatprep.subr.mxu0 0.0
        %3565 = vmatpush1.msra.mxu0 %v1085
        %3566 = vmatprep.subr.mxu0 0.0
        %3567 = vmatpush1.msra.mxu0 %v1084
        %3568 = vmatprep.subr.mxu0 0.0
        %3569 = vmatpush1.msra.mxu0 %v1083
        %3570 = vmatprep.subr.mxu0 0.0
        %3571 = vmatpush1.msra.mxu0 %v1082
        %3572 = vmatprep.subr.mxu0 0.0
        %3573 = vmatpush1.msra.mxu0 %v1081
        %3574 = vmatprep.subr.mxu0 0.0
        %3575 = vmatpush1.msra.mxu0 %v1080
        %3576 = vmatprep.subr.mxu0 0.0
        %3577 = vmatpush1.msra.mxu0 %v1079
        %3578 = vmatprep.subr.mxu0 0.0
        %3579 = vmatpush1.msra.mxu0 %v1078
        %3580 = vmatprep.subr.mxu0 0.0
        %3581 = vmatpush2.msra.mxu0 %v1109
        %3582 = vmatprep.subr.mxu0 0.0
        %3583 = vmatpush2.msra.mxu0 %v1108
        %3584 = vmatprep.subr.mxu0 0.0
        %3585 = vmatpush2.msra.mxu0 %v1107
        %3586 = vmatprep.subr.mxu0 0.0
        %3587 = vmatpush2.msra.mxu0 %v1106
        %3588 = vmatprep.subr.mxu0 0.0
        %3589 = vmatpush2.msra.mxu0 %v1105
        %3590 = vmatprep.subr.mxu0 0.0
        %3591 = vmatpush2.msra.mxu0 %v1104
        %3592 = vmatprep.subr.mxu0 0.0
        %3593 = vmatpush2.msra.mxu0 %v1103
        %3594 = vmatprep.subr.mxu0 0.0
        %3595 = vmatpush2.msra.mxu0 %v1102
        %3596 = vmatprep.subr.mxu0 0.0
        %3597 = vmatpush2.msra.mxu0 %v1101
        %3598 = vmatprep.subr.mxu0 0.0
        %3599 = vmatpush2.msra.mxu0 %v1100
        %3600 = vmatprep.subr.mxu0 0.0
        %3601 = vmatpush2.msra.mxu0 %v1099
        %3602 = vmatprep.subr.mxu0 0.0
        %3603 = vmatpush2.msra.mxu0 %v1098
        %3604 = vmatprep.subr.mxu0 0.0
        %3605 = vmatpush2.msra.mxu0 %v1097
        %3606 = vmatprep.subr.mxu0 0.0
        %3607 = vmatpush2.msra.mxu0 %v1096
        %3608 = vmatprep.subr.mxu0 0.0
        %3609 = vmatpush2.msra.mxu0 %v1095
        %3610 = vmatprep.subr.mxu0 0.0
        %3611 = vmatpush2.msra.mxu0 %v1094
        %3612 = vmatprep.mubr.f32.mxu0 %v3342
        %3613 = vmatmul.mubr.f32.gmra.mxu0 %v3341
        %v3614 = vpop.f32.mrf.mxu0
        %v3615 = vadd.f32 %v3470, %v3614
        %v3616 = vpop.f32.mrf.mxu0
        %3617 = vmatprep.mubr.f32.mxu0 %v3346
        %3618 = vmatmul.mubr.f32.gmra.mxu0 %v3345
        %v3619 = vpop.f32.mrf.mxu0
        %v3620 = vadd.f32 %v3475, %v3619
        %v3621 = vpop.f32.mrf.mxu0
        %3622 = vmatprep.mubr.f32.mxu0 %v3350
        %3623 = vmatmul.mubr.f32.gmra.mxu0 %v3349
        %v3624 = vpop.f32.mrf.mxu0
        %v3625 = vadd.f32 %v3480, %v3624
        %v3626 = vpop.f32.mrf.mxu0
        %3627 = vmatprep.mubr.f32.mxu0 %v3354
        %3628 = vmatmul.mubr.f32.gmra.mxu0 %v3353
        %v3629 = vpop.f32.mrf.mxu0
        %v3630 = vadd.f32 %v3485, %v3629
        %v3631 = vpop.f32.mrf.mxu0
        %3632 = vmatprep.mubr.f32.mxu0 %v3358
        %3633 = vmatmul.mubr.f32.gmra.mxu0 %v3357
        %v3634 = vpop.f32.mrf.mxu0
        %v3635 = vadd.f32 %v3490, %v3634
        %v3636 = vpop.f32.mrf.mxu0
        %3637 = vmatprep.mubr.f32.mxu0 %v3362
        %3638 = vmatmul.mubr.f32.gmra.mxu0 %v3361
        %v3639 = vpop.f32.mrf.mxu0
        %v3640 = vadd.f32 %v3495, %v3639
        %v3641 = vpop.f32.mrf.mxu0
        %3642 = vmatprep.mubr.f32.mxu0 %v3366
        %3643 = vmatmul.mubr.f32.gmra.mxu0 %v3365
        %v3644 = vpop.f32.mrf.mxu0
        %v3645 = vadd.f32 %v3500, %v3644
        %v3646 = vpop.f32.mrf.mxu0
        %3647 = vmatprep.mubr.f32.mxu0 %v3370
        %3648 = vmatmul.mubr.f32.gmra.mxu0 %v3369
        %v3649 = vpop.f32.mrf.mxu0
        %v3650 = vadd.f32 %v3505, %v3649
        %v3651 = vpop.f32.mrf.mxu0
        %3652 = vmatprep.mubr.f32.mxu0 %v3374
        %3653 = vmatmul.mubr.f32.gmra.mxu0 %v3373
        %v3654 = vpop.f32.mrf.mxu0
        %v3655 = vadd.f32 %v3510, %v3654
        %v3656 = vpop.f32.mrf.mxu0
        %3657 = vmatprep.mubr.f32.mxu0 %v3378
        %3658 = vmatmul.mubr.f32.gmra.mxu0 %v3377
        %v3659 = vpop.f32.mrf.mxu0
        %v3660 = vadd.f32 %v3515, %v3659
        %v3661 = vpop.f32.mrf.mxu0
        %3662 = vmatprep.mubr.f32.mxu0 %v3382
        %3663 = vmatmul.mubr.f32.gmra.mxu0 %v3381
        %v3664 = vpop.f32.mrf.mxu0
        %v3665 = vadd.f32 %v3520, %v3664
        %v3666 = vpop.f32.mrf.mxu0
        %3667 = vmatprep.mubr.f32.mxu0 %v3386
        %3668 = vmatmul.mubr.f32.gmra.mxu0 %v3385
        %v3669 = vpop.f32.mrf.mxu0
        %v3670 = vadd.f32 %v3525, %v3669
        %v3671 = vpop.f32.mrf.mxu0
        %3672 = vmatprep.mubr.f32.mxu0 %v3390
        %3673 = vmatmul.mubr.f32.gmra.mxu0 %v3389
        %v3674 = vpop.f32.mrf.mxu0
        %v3675 = vadd.f32 %v3530, %v3674
        %v3676 = vpop.f32.mrf.mxu0
        %3677 = vmatprep.mubr.f32.mxu0 %v3394
        %3678 = vmatmul.mubr.f32.gmra.mxu0 %v3393
        %v3679 = vpop.f32.mrf.mxu0
        %v3680 = vadd.f32 %v3535, %v3679
        %v3681 = vpop.f32.mrf.mxu0
        %3682 = vmatprep.mubr.f32.mxu0 %v3398
        %3683 = vmatmul.mubr.f32.gmra.mxu0 %v3397
        %v3684 = vpop.f32.mrf.mxu0
        %v3685 = vadd.f32 %v3540, %v3684
        %v3686 = vpop.f32.mrf.mxu0
        %3687 = vmatprep.mubr.f32.mxu0 %v3402
        %3688 = vmatmul.mubr.f32.gmra.mxu0 %v3401
        %v3689 = vpop.f32.mrf.mxu0
        %v3690 = vadd.f32 %v3545, %v3689
        %v3691 = vpop.f32.mrf.mxu0
        %3692 = vdwg.mxu0
        %v3693 = vrsqrt.pop %v3615
        %v3694 = vrsqrt.pop %v3620
        %v3695 = vrsqrt.pop %v3625
        %v3696 = vrsqrt.pop %v3630
        %v3697 = vrsqrt.pop %v3635
        %v3698 = vrsqrt.pop %v3640
        %v3699 = vrsqrt.pop %v3645
        %v3700 = vrsqrt.pop %v3650
        %v3701 = vrsqrt.pop %v3655
        %v3702 = vrsqrt.pop %v3660
        %v3703 = vrsqrt.pop %v3665
        %v3704 = vrsqrt.pop %v3670
        %v3705 = vrsqrt.pop %v3675
        %v3706 = vrsqrt.pop %v3680
        %v3707 = vrsqrt.pop %v3685
        %v3708 = vrsqrt.pop %v3690
        %v3710 = vsel %vm1424, %v3693, 0
        %v3713 = vsel %vm1424, %v3694, 0
        %v3716 = vsel %vm1424, %v3695, 0
        %v3719 = vsel %vm1424, %v3696, 0
        %v3722 = vsel %vm1424, %v3697, 0
        %v3725 = vsel %vm1424, %v3698, 0
        %v3728 = vsel %vm1424, %v3699, 0
        %v3731 = vsel %vm1424, %v3700, 0
        %v3734 = vsel %vm1424, %v3701, 0
        %v3737 = vsel %vm1424, %v3702, 0
        %v3740 = vsel %vm1424, %v3703, 0
        %v3743 = vsel %vm1424, %v3704, 0
        %v3746 = vsel %vm1424, %v3705, 0
        %v3749 = vsel %vm1424, %v3706, 0
        %v3752 = vsel %vm1424, %v3707, 0
        %v3755 = vsel %vm1424, %v3708, 0
        %3757 = vmatprep.subr.mxu0 0.0
        %3758 = vmatpush1.msra.mxu0 0.0
        %3759 = vmatprep.subr.mxu0 0.0
        %3760 = vmatpush1.msra.mxu0 0.0
        %3761 = vmatprep.subr.mxu0 0.0
        %3762 = vmatpush1.msra.mxu0 0.0
        %3763 = vmatprep.subr.mxu0 0.0
        %3764 = vmatpush1.msra.mxu0 0.0
        %3765 = vmatprep.subr.mxu0 0.0
        %3766 = vmatpush1.msra.mxu0 0.0
        %3767 = vmatprep.subr.mxu0 0.0
        %3768 = vmatpush1.msra.mxu0 0.0
        %3769 = vmatprep.subr.mxu0 0.0
        %3770 = vmatpush1.msra.mxu0 0.0
        %3771 = vmatprep.subr.mxu0 0.0
        %3772 = vmatpush1.msra.mxu0 0.0
        %3773 = vmatprep.subr.mxu0 0.0
        %3774 = vmatpush1.msra.mxu0 0.0
        %3775 = vmatprep.subr.mxu0 0.0
        %3776 = vmatpush1.msra.mxu0 0.0
        %3777 = vmatprep.subr.mxu0 0.0
        %3778 = vmatpush1.msra.mxu0 0.0
        %3779 = vmatprep.subr.mxu0 0.0
        %3780 = vmatpush1.msra.mxu0 0.0
        %3781 = vmatprep.subr.mxu0 0.0
        %3782 = vmatpush1.msra.mxu0 0.0
        %3783 = vmatprep.subr.mxu0 0.0
        %3784 = vmatpush1.msra.mxu0 0.0
        %3785 = vmatprep.subr.mxu0 %v1421
        %3786 = vmatpush1.msra.mxu0 %v1420
        %3787 = vmatprep.subr.mxu0 %v1417
        %3788 = vmatpush1.msra.mxu0 %v1416
        %3789 = vmatprep.subr.mxu0 0.0
        %3790 = vmatpush2.msra.mxu0 0.0
        %3791 = vmatprep.subr.mxu0 0.0
        %3792 = vmatpush2.msra.mxu0 0.0
        %3793 = vmatprep.subr.mxu0 0.0
        %3794 = vmatpush2.msra.mxu0 0.0
        %3795 = vmatprep.subr.mxu0 0.0
        %3796 = vmatpush2.msra.mxu0 0.0
        %3797 = vmatprep.subr.mxu0 0.0
        %3798 = vmatpush2.msra.mxu0 0.0
        %3799 = vmatprep.subr.mxu0 0.0
        %3800 = vmatpush2.msra.mxu0 0.0
        %3801 = vmatprep.subr.mxu0 0.0
        %3802 = vmatpush2.msra.mxu0 0.0
        %3803 = vmatprep.subr.mxu0 0.0
        %3804 = vmatpush2.msra.mxu0 0.0
        %3805 = vmatprep.subr.mxu0 0.0
        %3806 = vmatpush2.msra.mxu0 0.0
        %3807 = vmatprep.subr.mxu0 0.0
        %3808 = vmatpush2.msra.mxu0 0.0
        %3809 = vmatprep.subr.mxu0 0.0
        %3810 = vmatpush2.msra.mxu0 0.0
        %3811 = vmatprep.subr.mxu0 0.0
        %3812 = vmatpush2.msra.mxu0 0.0
        %3813 = vmatprep.subr.mxu0 0.0
        %3814 = vmatpush2.msra.mxu0 0.0
        %3815 = vmatprep.subr.mxu0 0.0
        %3816 = vmatpush2.msra.mxu0 0.0
        %3817 = vmatprep.subr.mxu0 0.0
        %3818 = vmatpush2.msra.mxu0 0.0
        %3819 = vmatprep.subr.mxu0 0.0
        %3820 = vmatpush2.msra.mxu0 0.0
        %3821 = vmatprep.mubr.f32.mxu0 0.0
        %3822 = vmatmul.mubr.f32.gmra.mxu0 %v3710
        %v3823 = vpop.f32.mrf.mxu0
        %v3824 = vadd.f32 0.0, %v3823
        %v3825 = vpop.f32.mrf.mxu0
        %v3826 = vadd.f32 0.0, %v3825
        %3827 = vmatprep.mubr.f32.mxu0 0.0
        %3828 = vmatmul.mubr.f32.gmra.mxu0 %v3713
        %v3829 = vpop.f32.mrf.mxu0
        %v3830 = vadd.f32 0.0, %v3829
        %v3831 = vpop.f32.mrf.mxu0
        %v3832 = vadd.f32 0.0, %v3831
        %3833 = vmatprep.mubr.f32.mxu0 0.0
        %3834 = vmatmul.mubr.f32.gmra.mxu0 %v3716
        %v3835 = vpop.f32.mrf.mxu0
        %v3836 = vadd.f32 0.0, %v3835
        %v3837 = vpop.f32.mrf.mxu0
        %v3838 = vadd.f32 0.0, %v3837
        %3839 = vmatprep.mubr.f32.mxu0 0.0
        %3840 = vmatmul.mubr.f32.gmra.mxu0 %v3719
        %v3841 = vpop.f32.mrf.mxu0
        %v3842 = vadd.f32 0.0, %v3841
        %v3843 = vpop.f32.mrf.mxu0
        %v3844 = vadd.f32 0.0, %v3843
        %3845 = vmatprep.mubr.f32.mxu0 0.0
        %3846 = vmatmul.mubr.f32.gmra.mxu0 %v3722
        %v3847 = vpop.f32.mrf.mxu0
        %v3848 = vadd.f32 0.0, %v3847
        %v3849 = vpop.f32.mrf.mxu0
        %v3850 = vadd.f32 0.0, %v3849
        %3851 = vmatprep.mubr.f32.mxu0 0.0
        %3852 = vmatmul.mubr.f32.gmra.mxu0 %v3725
        %v3853 = vpop.f32.mrf.mxu0
        %v3854 = vadd.f32 0.0, %v3853
        %v3855 = vpop.f32.mrf.mxu0
        %v3856 = vadd.f32 0.0, %v3855
        %3857 = vmatprep.mubr.f32.mxu0 0.0
        %3858 = vmatmul.mubr.f32.gmra.mxu0 %v3728
        %v3859 = vpop.f32.mrf.mxu0
        %v3860 = vadd.f32 0.0, %v3859
        %v3861 = vpop.f32.mrf.mxu0
        %v3862 = vadd.f32 0.0, %v3861
        %3863 = vmatprep.mubr.f32.mxu0 0.0
        %3864 = vmatmul.mubr.f32.gmra.mxu0 %v3731
        %v3865 = vpop.f32.mrf.mxu0
        %v3866 = vadd.f32 0.0, %v3865
        %v3867 = vpop.f32.mrf.mxu0
        %v3868 = vadd.f32 0.0, %v3867
        %3869 = vmatprep.mubr.f32.mxu0 0.0
        %3870 = vmatmul.mubr.f32.gmra.mxu0 %v3734
        %v3871 = vpop.f32.mrf.mxu0
        %v3872 = vadd.f32 0.0, %v3871
        %v3873 = vpop.f32.mrf.mxu0
        %v3874 = vadd.f32 0.0, %v3873
        %3875 = vmatprep.mubr.f32.mxu0 0.0
        %3876 = vmatmul.mubr.f32.gmra.mxu0 %v3737
        %v3877 = vpop.f32.mrf.mxu0
        %v3878 = vadd.f32 0.0, %v3877
        %v3879 = vpop.f32.mrf.mxu0
        %v3880 = vadd.f32 0.0, %v3879
        %3881 = vmatprep.mubr.f32.mxu0 0.0
        %3882 = vmatmul.mubr.f32.gmra.mxu0 %v3740
        %v3883 = vpop.f32.mrf.mxu0
        %v3884 = vadd.f32 0.0, %v3883
        %v3885 = vpop.f32.mrf.mxu0
        %v3886 = vadd.f32 0.0, %v3885
        %3887 = vmatprep.mubr.f32.mxu0 0.0
        %3888 = vmatmul.mubr.f32.gmra.mxu0 %v3743
        %v3889 = vpop.f32.mrf.mxu0
        %v3890 = vadd.f32 0.0, %v3889
        %v3891 = vpop.f32.mrf.mxu0
        %v3892 = vadd.f32 0.0, %v3891
        %3893 = vmatprep.mubr.f32.mxu0 0.0
        %3894 = vmatmul.mubr.f32.gmra.mxu0 %v3746
        %v3895 = vpop.f32.mrf.mxu0
        %v3896 = vadd.f32 0.0, %v3895
        %v3897 = vpop.f32.mrf.mxu0
        %v3898 = vadd.f32 0.0, %v3897
        %3899 = vmatprep.mubr.f32.mxu0 0.0
        %3900 = vmatmul.mubr.f32.gmra.mxu0 %v3749
        %v3901 = vpop.f32.mrf.mxu0
        %v3902 = vadd.f32 0.0, %v3901
        %v3903 = vpop.f32.mrf.mxu0
        %v3904 = vadd.f32 0.0, %v3903
        %3905 = vmatprep.mubr.f32.mxu0 0.0
        %3906 = vmatmul.mubr.f32.gmra.mxu0 %v3752
        %v3907 = vpop.f32.mrf.mxu0
        %v3908 = vadd.f32 0.0, %v3907
        %v3909 = vpop.f32.mrf.mxu0
        %v3910 = vadd.f32 0.0, %v3909
        %3911 = vmatprep.mubr.f32.mxu0 0.0
        %3912 = vmatmul.mubr.f32.gmra.mxu0 %v3755
        %v3913 = vpop.f32.mrf.mxu0
        %v3914 = vadd.f32 0.0, %v3913
        %v3915 = vpop.f32.mrf.mxu0
        %v3916 = vadd.f32 0.0, %v3915
        %3917 = vdwg.mxu0
        %3918 = vmatprep.subr.mxu0 0.0
        %3919 = vmatpush1.msra.mxu0 0.0
        %3920 = vmatprep.subr.mxu0 0.0
        %3921 = vmatpush1.msra.mxu0 0.0
        %3922 = vmatprep.subr.mxu0 0.0
        %3923 = vmatpush1.msra.mxu0 0.0
        %3924 = vmatprep.subr.mxu0 0.0
        %3925 = vmatpush1.msra.mxu0 0.0
        %3926 = vmatprep.subr.mxu0 0.0
        %3927 = vmatpush1.msra.mxu0 0.0
        %3928 = vmatprep.subr.mxu0 0.0
        %3929 = vmatpush1.msra.mxu0 0.0
        %3930 = vmatprep.subr.mxu0 0.0
        %3931 = vmatpush1.msra.mxu0 0.0
        %3932 = vmatprep.subr.mxu0 0.0
        %3933 = vmatpush1.msra.mxu0 0.0
        %3934 = vmatprep.subr.mxu0 0.0
        %3935 = vmatpush1.msra.mxu0 0.0
        %3936 = vmatprep.subr.mxu0 0.0
        %3937 = vmatpush1.msra.mxu0 0.0
        %3938 = vmatprep.subr.mxu0 0.0
        %3939 = vmatpush1.msra.mxu0 0.0
        %3940 = vmatprep.subr.mxu0 0.0
        %3941 = vmatpush1.msra.mxu0 0.0
        %3942 = vmatprep.subr.mxu0 0.0
        %3943 = vmatpush1.msra.mxu0 0.0
        %3944 = vmatprep.subr.mxu0 0.0
        %3945 = vmatpush1.msra.mxu0 0.0
        %3946 = vmatprep.subr.mxu0 %v1423
        %3947 = vmatpush1.msra.mxu0 %v1422
        %3948 = vmatprep.subr.mxu0 %v1419
        %3949 = vmatpush1.msra.mxu0 %v1418
        %3950 = vmatprep.subr.mxu0 0.0
        %3951 = vmatpush2.msra.mxu0 0.0
        %3952 = vmatprep.subr.mxu0 0.0
        %3953 = vmatpush2.msra.mxu0 0.0
        %3954 = vmatprep.subr.mxu0 0.0
        %3955 = vmatpush2.msra.mxu0 0.0
        %3956 = vmatprep.subr.mxu0 0.0
        %3957 = vmatpush2.msra.mxu0 0.0
        %3958 = vmatprep.subr.mxu0 0.0
        %3959 = vmatpush2.msra.mxu0 0.0
        %3960 = vmatprep.subr.mxu0 0.0
        %3961 = vmatpush2.msra.mxu0 0.0
        %3962 = vmatprep.subr.mxu0 0.0
        %3963 = vmatpush2.msra.mxu0 0.0
        %3964 = vmatprep.subr.mxu0 0.0
        %3965 = vmatpush2.msra.mxu0 0.0
        %3966 = vmatprep.subr.mxu0 0.0
        %3967 = vmatpush2.msra.mxu0 0.0
        %3968 = vmatprep.subr.mxu0 0.0
        %3969 = vmatpush2.msra.mxu0 0.0
        %3970 = vmatprep.subr.mxu0 0.0
        %3971 = vmatpush2.msra.mxu0 0.0
        %3972 = vmatprep.subr.mxu0 0.0
        %3973 = vmatpush2.msra.mxu0 0.0
        %3974 = vmatprep.subr.mxu0 0.0
        %3975 = vmatpush2.msra.mxu0 0.0
        %3976 = vmatprep.subr.mxu0 0.0
        %3977 = vmatpush2.msra.mxu0 0.0
        %3978 = vmatprep.subr.mxu0 0.0
        %3979 = vmatpush2.msra.mxu0 0.0
        %3980 = vmatprep.subr.mxu0 0.0
        %3981 = vmatpush2.msra.mxu0 0.0
        %3982 = vmatprep.mubr.f32.mxu0 0.0
        %3983 = vmatmul.mubr.f32.gmra.mxu0 %v3710
        %v3984 = vpop.f32.mrf.mxu0
        %v3985 = vadd.f32 0.0, %v3984
        %v3986 = vpop.f32.mrf.mxu0
        %v3987 = vadd.f32 0.0, %v3986
        %3988 = vmatprep.mubr.f32.mxu0 0.0
        %3989 = vmatmul.mubr.f32.gmra.mxu0 %v3713
        %v3990 = vpop.f32.mrf.mxu0
        %v3991 = vadd.f32 0.0, %v3990
        %v3992 = vpop.f32.mrf.mxu0
        %v3993 = vadd.f32 0.0, %v3992
        %3994 = vmatprep.mubr.f32.mxu0 0.0
        %3995 = vmatmul.mubr.f32.gmra.mxu0 %v3716
        %v3996 = vpop.f32.mrf.mxu0
        %v3997 = vadd.f32 0.0, %v3996
        %v3998 = vpop.f32.mrf.mxu0
        %v3999 = vadd.f32 0.0, %v3998
        %4000 = vmatprep.mubr.f32.mxu0 0.0
        %4001 = vmatmul.mubr.f32.gmra.mxu0 %v3719
        %v4002 = vpop.f32.mrf.mxu0
        %v4003 = vadd.f32 0.0, %v4002
        %v4004 = vpop.f32.mrf.mxu0
        %v4005 = vadd.f32 0.0, %v4004
        %4006 = vmatprep.mubr.f32.mxu0 0.0
        %4007 = vmatmul.mubr.f32.gmra.mxu0 %v3722
        %v4008 = vpop.f32.mrf.mxu0
        %v4009 = vadd.f32 0.0, %v4008
        %v4010 = vpop.f32.mrf.mxu0
        %v4011 = vadd.f32 0.0, %v4010
        %4012 = vmatprep.mubr.f32.mxu0 0.0
        %4013 = vmatmul.mubr.f32.gmra.mxu0 %v3725
        %v4014 = vpop.f32.mrf.mxu0
        %v4015 = vadd.f32 0.0, %v4014
        %v4016 = vpop.f32.mrf.mxu0
        %v4017 = vadd.f32 0.0, %v4016
        %4018 = vmatprep.mubr.f32.mxu0 0.0
        %4019 = vmatmul.mubr.f32.gmra.mxu0 %v3728
        %v4020 = vpop.f32.mrf.mxu0
        %v4021 = vadd.f32 0.0, %v4020
        %v4022 = vpop.f32.mrf.mxu0
        %v4023 = vadd.f32 0.0, %v4022
        %4024 = vmatprep.mubr.f32.mxu0 0.0
        %4025 = vmatmul.mubr.f32.gmra.mxu0 %v3731
        %v4026 = vpop.f32.mrf.mxu0
        %v4027 = vadd.f32 0.0, %v4026
        %v4028 = vpop.f32.mrf.mxu0
        %v4029 = vadd.f32 0.0, %v4028
        %4030 = vmatprep.mubr.f32.mxu0 0.0
        %4031 = vmatmul.mubr.f32.gmra.mxu0 %v3734
        %v4032 = vpop.f32.mrf.mxu0
        %v4033 = vadd.f32 0.0, %v4032
        %v4034 = vpop.f32.mrf.mxu0
        %v4035 = vadd.f32 0.0, %v4034
        %4036 = vmatprep.mubr.f32.mxu0 0.0
        %4037 = vmatmul.mubr.f32.gmra.mxu0 %v3737
        %v4038 = vpop.f32.mrf.mxu0
        %v4039 = vadd.f32 0.0, %v4038
        %v4040 = vpop.f32.mrf.mxu0
        %v4041 = vadd.f32 0.0, %v4040
        %4042 = vmatprep.mubr.f32.mxu0 0.0
        %4043 = vmatmul.mubr.f32.gmra.mxu0 %v3740
        %v4044 = vpop.f32.mrf.mxu0
        %v4045 = vadd.f32 0.0, %v4044
        %v4046 = vpop.f32.mrf.mxu0
        %v4047 = vadd.f32 0.0, %v4046
        %4048 = vmatprep.mubr.f32.mxu0 0.0
        %4049 = vmatmul.mubr.f32.gmra.mxu0 %v3743
        %v4050 = vpop.f32.mrf.mxu0
        %v4051 = vadd.f32 0.0, %v4050
        %v4052 = vpop.f32.mrf.mxu0
        %v4053 = vadd.f32 0.0, %v4052
        %4054 = vmatprep.mubr.f32.mxu0 0.0
        %4055 = vmatmul.mubr.f32.gmra.mxu0 %v3746
        %v4056 = vpop.f32.mrf.mxu0
        %v4057 = vadd.f32 0.0, %v4056
        %v4058 = vpop.f32.mrf.mxu0
        %v4059 = vadd.f32 0.0, %v4058
        %4060 = vmatprep.mubr.f32.mxu0 0.0
        %4061 = vmatmul.mubr.f32.gmra.mxu0 %v3749
        %v4062 = vpop.f32.mrf.mxu0
        %v4063 = vadd.f32 0.0, %v4062
        %v4064 = vpop.f32.mrf.mxu0
        %v4065 = vadd.f32 0.0, %v4064
        %4066 = vmatprep.mubr.f32.mxu0 0.0
        %4067 = vmatmul.mubr.f32.gmra.mxu0 %v3752
        %v4068 = vpop.f32.mrf.mxu0
        %v4069 = vadd.f32 0.0, %v4068
        %v4070 = vpop.f32.mrf.mxu0
        %v4071 = vadd.f32 0.0, %v4070
        %4072 = vmatprep.mubr.f32.mxu0 0.0
        %4073 = vmatmul.mubr.f32.gmra.mxu0 %v3755
        %v4074 = vpop.f32.mrf.mxu0
        %v4075 = vadd.f32 0.0, %v4074
        %v4076 = vpop.f32.mrf.mxu0
        %v4077 = vadd.f32 0.0, %v4076
        %4078 = vdwg.mxu0
        %v4079 = vmul.f32 %v3275, %v3824
        %v4080 = vmul.f32 %v3276, %v3826
        %v4081 = vmul.f32 %v3277, %v3985
        %v4082 = vmul.f32 %v3278, %v3987
        %v4083 = vmul.f32 %v3279, %v3830
        %v4084 = vmul.f32 %v3280, %v3832
        %v4085 = vmul.f32 %v3281, %v3991
        %v4086 = vmul.f32 %v3282, %v3993
        %v4087 = vmul.f32 %v3283, %v3836
        %v4088 = vmul.f32 %v3284, %v3838
        %v4089 = vmul.f32 %v3285, %v3997
        %v4090 = vmul.f32 %v3286, %v3999
        %v4091 = vmul.f32 %v3287, %v3842
        %v4092 = vmul.f32 %v3288, %v3844
        %v4093 = vmul.f32 %v3289, %v4003
        %v4094 = vmul.f32 %v3290, %v4005
        %v4095 = vmul.f32 %v3291, %v3848
        %v4096 = vmul.f32 %v3292, %v3850
        %v4097 = vmul.f32 %v3293, %v4009
        %v4098 = vmul.f32 %v3294, %v4011
        %v4099 = vmul.f32 %v3295, %v3854
        %v4100 = vmul.f32 %v3296, %v3856
        %v4101 = vmul.f32 %v3297, %v4015
        %v4102 = vmul.f32 %v3298, %v4017
        %v4103 = vmul.f32 %v3299, %v3860
        %v4104 = vmul.f32 %v3300, %v3862
        %v4105 = vmul.f32 %v3301, %v4021
        %v4106 = vmul.f32 %v3302, %v4023
        %v4107 = vmul.f32 %v3303, %v3866
        %v4108 = vmul.f32 %v3304, %v3868
        %v4109 = vmul.f32 %v3305, %v4027
        %v4110 = vmul.f32 %v3306, %v4029
        %v4111 = vmul.f32 %v3307, %v3872
        %v4112 = vmul.f32 %v3308, %v3874
        %v4113 = vmul.f32 %v3309, %v4033
        %v4114 = vmul.f32 %v3310, %v4035
        %v4115 = vmul.f32 %v3311, %v3878
        %v4116 = vmul.f32 %v3312, %v3880
        %v4117 = vmul.f32 %v3313, %v4039
        %v4118 = vmul.f32 %v3314, %v4041
        %v4119 = vmul.f32 %v3315, %v3884
        %v4120 = vmul.f32 %v3316, %v3886
        %v4121 = vmul.f32 %v3317, %v4045
        %v4122 = vmul.f32 %v3318, %v4047
        %v4123 = vmul.f32 %v3319, %v3890
        %v4124 = vmul.f32 %v3320, %v3892
        %v4125 = vmul.f32 %v3321, %v4051
        %v4126 = vmul.f32 %v3322, %v4053
        %v4127 = vmul.f32 %v3323, %v3896
        %v4128 = vmul.f32 %v3324, %v3898
        %v4129 = vmul.f32 %v3325, %v4057
        %v4130 = vmul.f32 %v3326, %v4059
        %v4131 = vmul.f32 %v3327, %v3902
        %v4132 = vmul.f32 %v3328, %v3904
        %v4133 = vmul.f32 %v3329, %v4063
        %v4134 = vmul.f32 %v3330, %v4065
        %v4135 = vmul.f32 %v3331, %v3908
        %v4136 = vmul.f32 %v3332, %v3910
        %v4137 = vmul.f32 %v3333, %v4069
        %v4138 = vmul.f32 %v3334, %v4071
        %v4139 = vmul.f32 %v3335, %v3914
        %v4140 = vmul.f32 %v3336, %v3916
        %v4141 = vmul.f32 %v3337, %v4075
        %v4142 = vmul.f32 %v3338, %v4077
        %v4143 = vpack.c.bf16 %v4083, %v4079
        %v4144 = vpack.c.bf16 %v4084, %v4080
        %v4145 = vpack.c.bf16 %v4085, %v4081
        %v4146 = vpack.c.bf16 %v4086, %v4082
        %v4147 = vpack.c.bf16 %v4091, %v4087
        %v4148 = vpack.c.bf16 %v4092, %v4088
        %v4149 = vpack.c.bf16 %v4093, %v4089
        %v4150 = vpack.c.bf16 %v4094, %v4090
        %v4151 = vpack.c.bf16 %v4099, %v4095
        %v4152 = vpack.c.bf16 %v4100, %v4096
        %v4153 = vpack.c.bf16 %v4101, %v4097
        %v4154 = vpack.c.bf16 %v4102, %v4098
        %v4155 = vpack.c.bf16 %v4107, %v4103
        %v4156 = vpack.c.bf16 %v4108, %v4104
        %v4157 = vpack.c.bf16 %v4109, %v4105
        %v4158 = vpack.c.bf16 %v4110, %v4106
        %v4159 = vpack.c.bf16 %v4115, %v4111
        %v4160 = vpack.c.bf16 %v4116, %v4112
        %v4161 = vpack.c.bf16 %v4117, %v4113
        %v4162 = vpack.c.bf16 %v4118, %v4114
        %v4163 = vpack.c.bf16 %v4123, %v4119
        %v4164 = vpack.c.bf16 %v4124, %v4120
        %v4165 = vpack.c.bf16 %v4125, %v4121
        %v4166 = vpack.c.bf16 %v4126, %v4122
        %v4167 = vpack.c.bf16 %v4131, %v4127
        %v4168 = vpack.c.bf16 %v4132, %v4128
        %v4169 = vpack.c.bf16 %v4133, %v4129
        %v4170 = vpack.c.bf16 %v4134, %v4130
        %v4171 = vpack.c.bf16 %v4139, %v4135
        %v4172 = vpack.c.bf16 %v4140, %v4136
        %v4173 = vpack.c.bf16 %v4141, %v4137
        %v4174 = vpack.c.bf16 %v4142, %v4138
        %v4175 = vld [vmem:[%s6] sm:$0xf]
        %v4176 = vld [vmem:[%s6 + $0x4] sm:$0xf]
        %v4177 = vld [vmem:[%s6 + $0x8] sm:$0xf]
        %v4178 = vld [vmem:[%s6 + $0xc] sm:$0xf]
        %v4179 = vld [vmem:[%s6 + $0x10] sm:$0xf]
        %v4180 = vld [vmem:[%s6 + $0x14] sm:$0xf]
        %v4181 = vld [vmem:[%s6 + $0x18] sm:$0xf]
        %v4182 = vld [vmem:[%s6 + $0x1c] sm:$0xf]
        %v4183 = vld [vmem:[%s6 + $0x20] sm:$0xf]
        %v4184 = vld [vmem:[%s6 + $0x24] sm:$0xf]
        %v4185 = vld [vmem:[%s6 + $0x28] sm:$0xf]
        %v4186 = vld [vmem:[%s6 + $0x2c] sm:$0xf]
        %v4187 = vld [vmem:[%s6 + $0x30] sm:$0xf]
        %v4188 = vld [vmem:[%s6 + $0x34] sm:$0xf]
        %v4189 = vld [vmem:[%s6 + $0x38] sm:$0xf]
        %v4190 = vld [vmem:[%s6 + $0x3c] sm:$0xf]
        %v4191 = vld [vmem:[%s6 + $0x40] sm:$0xf]
        %v4192 = vld [vmem:[%s6 + $0x44] sm:$0xf]
        %v4193 = vld [vmem:[%s6 + $0x48] sm:$0xf]
        %v4194 = vld [vmem:[%s6 + $0x4c] sm:$0xf]
        %v4195 = vld [vmem:[%s6 + $0x50] sm:$0xf]
        %v4196 = vld [vmem:[%s6 + $0x54] sm:$0xf]
        %v4197 = vld [vmem:[%s6 + $0x58] sm:$0xf]
        %v4198 = vld [vmem:[%s6 + $0x5c] sm:$0xf]
        %v4199 = vld [vmem:[%s6 + $0x60] sm:$0xf]
        %v4200 = vld [vmem:[%s6 + $0x64] sm:$0xf]
        %v4201 = vld [vmem:[%s6 + $0x68] sm:$0xf]
        %v4202 = vld [vmem:[%s6 + $0x6c] sm:$0xf]
        %v4203 = vld [vmem:[%s6 + $0x70] sm:$0xf]
        %v4204 = vld [vmem:[%s6 + $0x74] sm:$0xf]
        %v4205 = vld [vmem:[%s6 + $0x78] sm:$0xf]
        %v4206 = vld [vmem:[%s6 + $0x7c] sm:$0xf]
        %v4207 = vld [vmem:[%s6 + $0x80] sm:$0xf]
        %v4208 = vld [vmem:[%s6 + $0x84] sm:$0xf]
        %v4209 = vld [vmem:[%s6 + $0x88] sm:$0xf]
        %v4210 = vld [vmem:[%s6 + $0x8c] sm:$0xf]
        %v4211 = vld [vmem:[%s6 + $0x90] sm:$0xf]
        %v4212 = vld [vmem:[%s6 + $0x94] sm:$0xf]
        %v4213 = vld [vmem:[%s6 + $0x98] sm:$0xf]
        %v4214 = vld [vmem:[%s6 + $0x9c] sm:$0xf]
        %v4215 = vld [vmem:[%s6 + $0xa0] sm:$0xf]
        %v4216 = vld [vmem:[%s6 + $0xa4] sm:$0xf]
        %v4217 = vld [vmem:[%s6 + $0xa8] sm:$0xf]
        %v4218 = vld [vmem:[%s6 + $0xac] sm:$0xf]
        %v4219 = vld [vmem:[%s6 + $0xb0] sm:$0xf]
        %v4220 = vld [vmem:[%s6 + $0xb4] sm:$0xf]
        %v4221 = vld [vmem:[%s6 + $0xb8] sm:$0xf]
        %v4222 = vld [vmem:[%s6 + $0xbc] sm:$0xf]
        %v4223 = vld [vmem:[%s6 + $0xc0] sm:$0xf]
        %v4224 = vld [vmem:[%s6 + $0xc4] sm:$0xf]
        %v4225 = vld [vmem:[%s6 + $0xc8] sm:$0xf]
        %v4226 = vld [vmem:[%s6 + $0xcc] sm:$0xf]
        %v4227 = vld [vmem:[%s6 + $0xd0] sm:$0xf]
        %v4228 = vld [vmem:[%s6 + $0xd4] sm:$0xf]
        %v4229 = vld [vmem:[%s6 + $0xd8] sm:$0xf]
        %v4230 = vld [vmem:[%s6 + $0xdc] sm:$0xf]
        %v4231 = vld [vmem:[%s6 + $0xe0] sm:$0xf]
        %v4232 = vld [vmem:[%s6 + $0xe4] sm:$0xf]
        %v4233 = vld [vmem:[%s6 + $0xe8] sm:$0xf]
        %v4234 = vld [vmem:[%s6 + $0xec] sm:$0xf]
        %v4235 = vld [vmem:[%s6 + $0xf0] sm:$0xf]
        %v4236 = vld [vmem:[%s6 + $0xf4] sm:$0xf]
        %v4237 = vld [vmem:[%s6 + $0xf8] sm:$0xf]
        %v4238 = vld [vmem:[%s6 + $0xfc] sm:$0xf]
        %v4239 = vlaneseq
        %v4240 = vshrl.u32 %v4239, 7
        %v4241 = vsub.s32 2, %v4240
        %v4242 = vrot.slane %v298, %v4241
        %v4307 = vunpack.c.l.b16 %v4175
        %v4308 = vunpack.c.l.b16 %v4176
        %v4309 = vunpack.c.l.b16 %v4177
        %v4310 = vunpack.c.l.b16 %v4178
        %v4311 = vunpack.c.l.b16 %v4179
        %v4312 = vunpack.c.l.b16 %v4180
        %v4313 = vunpack.c.l.b16 %v4181
        %v4314 = vunpack.c.l.b16 %v4182
        %v4315 = vunpack.c.l.b16 %v4183
        %v4316 = vunpack.c.l.b16 %v4184
        %v4317 = vunpack.c.l.b16 %v4185
        %v4318 = vunpack.c.l.b16 %v4186
        %v4319 = vunpack.c.l.b16 %v4187
        %v4320 = vunpack.c.l.b16 %v4188
        %v4321 = vunpack.c.l.b16 %v4189
        %v4322 = vunpack.c.l.b16 %v4190
        %v4323 = vunpack.c.l.b16 %v4191
        %v4324 = vunpack.c.l.b16 %v4192
        %v4325 = vunpack.c.l.b16 %v4193
        %v4326 = vunpack.c.l.b16 %v4194
        %v4327 = vunpack.c.l.b16 %v4195
        %v4328 = vunpack.c.l.b16 %v4196
        %v4329 = vunpack.c.l.b16 %v4197
        %v4330 = vunpack.c.l.b16 %v4198
        %v4331 = vunpack.c.l.b16 %v4199
        %v4332 = vunpack.c.l.b16 %v4200
        %v4333 = vunpack.c.l.b16 %v4201
        %v4334 = vunpack.c.l.b16 %v4202
        %v4335 = vunpack.c.l.b16 %v4203
        %v4336 = vunpack.c.l.b16 %v4204
        %v4337 = vunpack.c.l.b16 %v4205
        %v4338 = vunpack.c.l.b16 %v4206
        %v4339 = vunpack.c.l.b16 %v4207
        %v4340 = vunpack.c.l.b16 %v4208
        %v4341 = vunpack.c.l.b16 %v4209
        %v4342 = vunpack.c.l.b16 %v4210
        %v4343 = vunpack.c.l.b16 %v4211
        %v4344 = vunpack.c.l.b16 %v4212
        %v4345 = vunpack.c.l.b16 %v4213
        %v4346 = vunpack.c.l.b16 %v4214
        %v4347 = vunpack.c.l.b16 %v4215
        %v4348 = vunpack.c.l.b16 %v4216
        %v4349 = vunpack.c.l.b16 %v4217
        %v4350 = vunpack.c.l.b16 %v4218
        %v4351 = vunpack.c.l.b16 %v4219
        %v4352 = vunpack.c.l.b16 %v4220
        %v4353 = vunpack.c.l.b16 %v4221
        %v4354 = vunpack.c.l.b16 %v4222
        %v4355 = vunpack.c.l.b16 %v4223
        %v4356 = vunpack.c.l.b16 %v4224
        %v4357 = vunpack.c.l.b16 %v4225
        %v4358 = vunpack.c.l.b16 %v4226
        %v4359 = vunpack.c.l.b16 %v4227
        %v4360 = vunpack.c.l.b16 %v4228
        %v4361 = vunpack.c.l.b16 %v4229
        %v4362 = vunpack.c.l.b16 %v4230
        %v4363 = vunpack.c.l.b16 %v4231
        %v4364 = vunpack.c.l.b16 %v4232
        %v4365 = vunpack.c.l.b16 %v4233
        %v4366 = vunpack.c.l.b16 %v4234
        %v4367 = vunpack.c.l.b16 %v4235
        %v4368 = vunpack.c.l.b16 %v4236
        %v4369 = vunpack.c.l.b16 %v4237
        %v4370 = vunpack.c.l.b16 %v4238
        %v4371 = vpack.c.b16 %v4308, %v4307
        %v4372 = vpack.c.b16 %v4310, %v4309
        %v4373 = vpack.c.b16 %v4312, %v4311
        %v4374 = vpack.c.b16 %v4314, %v4313
        %v4375 = vpack.c.b16 %v4316, %v4315
        %v4376 = vpack.c.b16 %v4318, %v4317
        %v4377 = vpack.c.b16 %v4320, %v4319
        %v4378 = vpack.c.b16 %v4322, %v4321
        %v4379 = vpack.c.b16 %v4324, %v4323
        %v4380 = vpack.c.b16 %v4326, %v4325
        %v4381 = vpack.c.b16 %v4328, %v4327
        %v4382 = vpack.c.b16 %v4330, %v4329
        %v4383 = vpack.c.b16 %v4332, %v4331
        %v4384 = vpack.c.b16 %v4334, %v4333
        %v4385 = vpack.c.b16 %v4336, %v4335
        %v4386 = vpack.c.b16 %v4338, %v4337
        %v4387 = vpack.c.b16 %v4340, %v4339
        %v4388 = vpack.c.b16 %v4342, %v4341
        %v4389 = vpack.c.b16 %v4344, %v4343
        %v4390 = vpack.c.b16 %v4346, %v4345
        %v4391 = vpack.c.b16 %v4348, %v4347
        %v4392 = vpack.c.b16 %v4350, %v4349
        %v4393 = vpack.c.b16 %v4352, %v4351
        %v4394 = vpack.c.b16 %v4354, %v4353
        %v4395 = vpack.c.b16 %v4356, %v4355
        %v4396 = vpack.c.b16 %v4358, %v4357
        %v4397 = vpack.c.b16 %v4360, %v4359
        %v4398 = vpack.c.b16 %v4362, %v4361
        %v4399 = vpack.c.b16 %v4364, %v4363
        %v4400 = vpack.c.b16 %v4366, %v4365
        %v4401 = vpack.c.b16 %v4368, %v4367
        %v4402 = vpack.c.b16 %v4370, %v4369
        %4435 = vmatprep.subr.bf16.mxu0 0
        %4436 = vmatpush1.bf16.msra.mxu0 %v4378
        %4437 = vmatprep.subr.bf16.mxu0 0
        %4438 = vmatpush1.bf16.msra.mxu0 %v4377
        %4439 = vmatprep.subr.bf16.mxu0 0
        %4440 = vmatpush1.bf16.msra.mxu0 %v4376
        %4441 = vmatprep.subr.bf16.mxu0 0
        %4442 = vmatpush1.bf16.msra.mxu0 %v4375
        %4443 = vmatprep.subr.bf16.mxu0 0
        %4444 = vmatpush1.bf16.msra.mxu0 %v4374
        %4445 = vmatprep.subr.bf16.mxu0 0
        %4446 = vmatpush1.bf16.msra.mxu0 %v4373
        %4447 = vmatprep.subr.bf16.mxu0 0
        %4448 = vmatpush1.bf16.msra.mxu0 %v4372
        %4449 = vmatprep.subr.bf16.mxu0 0
        %4450 = vmatpush1.bf16.msra.mxu0 %v4371
        %4451 = vmatprep.subr.bf16.mxu0 0
        %4452 = vmatpush2.bf16.msra.mxu0 %v4386
        %4453 = vmatprep.subr.bf16.mxu0 0
        %4454 = vmatpush2.bf16.msra.mxu0 %v4385
        %4455 = vmatprep.subr.bf16.mxu0 0
        %4456 = vmatpush2.bf16.msra.mxu0 %v4384
        %4457 = vmatprep.subr.bf16.mxu0 0
        %4458 = vmatpush2.bf16.msra.mxu0 %v4383
        %4459 = vmatprep.subr.bf16.mxu0 0
        %4460 = vmatpush2.bf16.msra.mxu0 %v4382
        %4461 = vmatprep.subr.bf16.mxu0 0
        %4462 = vmatpush2.bf16.msra.mxu0 %v4381
        %4463 = vmatprep.subr.bf16.mxu0 0
        %4464 = vmatpush2.bf16.msra.mxu0 %v4380
        %4465 = vmatprep.subr.bf16.mxu0 0
        %4466 = vmatpush2.bf16.msra.mxu0 %v4379
        %4467 = vmatprep.mubr.bf16.mxu0 %v4144
        %4468 = vmatmul.mubr.bf16.gmra.mxu0 %v4143
        %v4469 = vpop.f32.mrf.mxu0
        %v4470 = vadd.f32 %v4242, %v4469
        %v4471 = vpop.f32.mrf.mxu0
        %v4472 = vpop.f32.mrf.mxu0
        %v4473 = vadd.f32 %v4242, %v4472
        %v4474 = vpop.f32.mrf.mxu0
        %4475 = vmatprep.mubr.bf16.mxu0 %v4148
        %4476 = vmatmul.mubr.bf16.gmra.mxu0 %v4147
        %v4477 = vpop.f32.mrf.mxu0
        %v4478 = vadd.f32 %v4242, %v4477
        %v4479 = vpop.f32.mrf.mxu0
        %v4480 = vpop.f32.mrf.mxu0
        %v4481 = vadd.f32 %v4242, %v4480
        %v4482 = vpop.f32.mrf.mxu0
        %4483 = vmatprep.mubr.bf16.mxu0 %v4152
        %4484 = vmatmul.mubr.bf16.gmra.mxu0 %v4151
        %v4485 = vpop.f32.mrf.mxu0
        %v4486 = vadd.f32 %v4242, %v4485
        %v4487 = vpop.f32.mrf.mxu0
        %v4488 = vpop.f32.mrf.mxu0
        %v4489 = vadd.f32 %v4242, %v4488
        %v4490 = vpop.f32.mrf.mxu0
        %4491 = vmatprep.mubr.bf16.mxu0 %v4156
        %4492 = vmatmul.mubr.bf16.gmra.mxu0 %v4155
        %v4493 = vpop.f32.mrf.mxu0
        %v4494 = vadd.f32 %v4242, %v4493
        %v4495 = vpop.f32.mrf.mxu0
        %v4496 = vpop.f32.mrf.mxu0
        %v4497 = vadd.f32 %v4242, %v4496
        %v4498 = vpop.f32.mrf.mxu0
        %4499 = vmatprep.mubr.bf16.mxu0 %v4160
        %4500 = vmatmul.mubr.bf16.gmra.mxu0 %v4159
        %v4501 = vpop.f32.mrf.mxu0
        %v4502 = vadd.f32 %v4242, %v4501
        %v4503 = vpop.f32.mrf.mxu0
        %v4504 = vpop.f32.mrf.mxu0
        %v4505 = vadd.f32 %v4242, %v4504
        %v4506 = vpop.f32.mrf.mxu0
        %4507 = vmatprep.mubr.bf16.mxu0 %v4164
        %4508 = vmatmul.mubr.bf16.gmra.mxu0 %v4163
        %v4509 = vpop.f32.mrf.mxu0
        %v4510 = vadd.f32 %v4242, %v4509
        %v4511 = vpop.f32.mrf.mxu0
        %v4512 = vpop.f32.mrf.mxu0
        %v4513 = vadd.f32 %v4242, %v4512
        %v4514 = vpop.f32.mrf.mxu0
        %4515 = vmatprep.mubr.bf16.mxu0 %v4168
        %4516 = vmatmul.mubr.bf16.gmra.mxu0 %v4167
        %v4517 = vpop.f32.mrf.mxu0
        %v4518 = vadd.f32 %v4242, %v4517
        %v4519 = vpop.f32.mrf.mxu0
        %v4520 = vpop.f32.mrf.mxu0
        %v4521 = vadd.f32 %v4242, %v4520
        %v4522 = vpop.f32.mrf.mxu0
        %4523 = vmatprep.mubr.bf16.mxu0 %v4172
        %4524 = vmatmul.mubr.bf16.gmra.mxu0 %v4171
        %v4525 = vpop.f32.mrf.mxu0
        %v4526 = vadd.f32 %v4242, %v4525
        %v4527 = vpop.f32.mrf.mxu0
        %v4528 = vpop.f32.mrf.mxu0
        %v4529 = vadd.f32 %v4242, %v4528
        %v4530 = vpop.f32.mrf.mxu0
        %4531 = vdwg.mxu0
        %4532 = vmatprep.subr.bf16.mxu0 0
        %4533 = vmatpush1.bf16.msra.mxu0 %v4394
        %4534 = vmatprep.subr.bf16.mxu0 0
        %4535 = vmatpush1.bf16.msra.mxu0 %v4393
        %4536 = vmatprep.subr.bf16.mxu0 0
        %4537 = vmatpush1.bf16.msra.mxu0 %v4392
        %4538 = vmatprep.subr.bf16.mxu0 0
        %4539 = vmatpush1.bf16.msra.mxu0 %v4391
        %4540 = vmatprep.subr.bf16.mxu0 0
        %4541 = vmatpush1.bf16.msra.mxu0 %v4390
        %4542 = vmatprep.subr.bf16.mxu0 0
        %4543 = vmatpush1.bf16.msra.mxu0 %v4389
        %4544 = vmatprep.subr.bf16.mxu0 0
        %4545 = vmatpush1.bf16.msra.mxu0 %v4388
        %4546 = vmatprep.subr.bf16.mxu0 0
        %4547 = vmatpush1.bf16.msra.mxu0 %v4387
        %4548 = vmatprep.subr.bf16.mxu0 0
        %4549 = vmatpush2.bf16.msra.mxu0 %v4402
        %4550 = vmatprep.subr.bf16.mxu0 0
        %4551 = vmatpush2.bf16.msra.mxu0 %v4401
        %4552 = vmatprep.subr.bf16.mxu0 0
        %4553 = vmatpush2.bf16.msra.mxu0 %v4400
        %4554 = vmatprep.subr.bf16.mxu0 0
        %4555 = vmatpush2.bf16.msra.mxu0 %v4399
        %4556 = vmatprep.subr.bf16.mxu0 0
        %4557 = vmatpush2.bf16.msra.mxu0 %v4398
        %4558 = vmatprep.subr.bf16.mxu0 0
        %4559 = vmatpush2.bf16.msra.mxu0 %v4397
        %4560 = vmatprep.subr.bf16.mxu0 0
        %4561 = vmatpush2.bf16.msra.mxu0 %v4396
        %4562 = vmatprep.subr.bf16.mxu0 0
        %4563 = vmatpush2.bf16.msra.mxu0 %v4395
        %4564 = vmatprep.mubr.bf16.mxu0 %v4146
        %4565 = vmatmul.mubr.bf16.gmra.mxu0 %v4145
        %v4566 = vpop.f32.mrf.mxu0
        %v4567 = vadd.f32 %v4470, %v4566
        %v4568 = vpop.f32.mrf.mxu0
        %v4569 = vpop.f32.mrf.mxu0
        %v4570 = vadd.f32 %v4473, %v4569
        %v4571 = vpop.f32.mrf.mxu0
        %4572 = vmatprep.mubr.bf16.mxu0 %v4150
        %4573 = vmatmul.mubr.bf16.gmra.mxu0 %v4149
        %v4574 = vpop.f32.mrf.mxu0
        %v4575 = vadd.f32 %v4478, %v4574
        %v4576 = vpop.f32.mrf.mxu0
        %v4577 = vpop.f32.mrf.mxu0
        %v4578 = vadd.f32 %v4481, %v4577
        %v4579 = vpop.f32.mrf.mxu0
        %4580 = vmatprep.mubr.bf16.mxu0 %v4154
        %4581 = vmatmul.mubr.bf16.gmra.mxu0 %v4153
        %v4582 = vpop.f32.mrf.mxu0
        %v4583 = vadd.f32 %v4486, %v4582
        %v4584 = vpop.f32.mrf.mxu0
        %v4585 = vpop.f32.mrf.mxu0
        %v4586 = vadd.f32 %v4489, %v4585
        %v4587 = vpop.f32.mrf.mxu0
        %4588 = vmatprep.mubr.bf16.mxu0 %v4158
        %4589 = vmatmul.mubr.bf16.gmra.mxu0 %v4157
        %v4590 = vpop.f32.mrf.mxu0
        %v4591 = vadd.f32 %v4494, %v4590
        %v4592 = vpop.f32.mrf.mxu0
        %v4593 = vpop.f32.mrf.mxu0
        %v4594 = vadd.f32 %v4497, %v4593
        %v4595 = vpop.f32.mrf.mxu0
        %4596 = vmatprep.mubr.bf16.mxu0 %v4162
        %4597 = vmatmul.mubr.bf16.gmra.mxu0 %v4161
        %v4598 = vpop.f32.mrf.mxu0
        %v4599 = vadd.f32 %v4502, %v4598
        %v4600 = vpop.f32.mrf.mxu0
        %v4601 = vpop.f32.mrf.mxu0
        %v4602 = vadd.f32 %v4505, %v4601
        %v4603 = vpop.f32.mrf.mxu0
        %4604 = vmatprep.mubr.bf16.mxu0 %v4166
        %4605 = vmatmul.mubr.bf16.gmra.mxu0 %v4165
        %v4606 = vpop.f32.mrf.mxu0
        %v4607 = vadd.f32 %v4510, %v4606
        %v4608 = vpop.f32.mrf.mxu0
        %v4609 = vpop.f32.mrf.mxu0
        %v4610 = vadd.f32 %v4513, %v4609
        %v4611 = vpop.f32.mrf.mxu0
        %4612 = vmatprep.mubr.bf16.mxu0 %v4170
        %4613 = vmatmul.mubr.bf16.gmra.mxu0 %v4169
        %v4614 = vpop.f32.mrf.mxu0
        %v4615 = vadd.f32 %v4518, %v4614
        %v4616 = vpop.f32.mrf.mxu0
        %v4617 = vpop.f32.mrf.mxu0
        %v4618 = vadd.f32 %v4521, %v4617
        %v4619 = vpop.f32.mrf.mxu0
        %4620 = vmatprep.mubr.bf16.mxu0 %v4174
        %4621 = vmatmul.mubr.bf16.gmra.mxu0 %v4173
        %v4622 = vpop.f32.mrf.mxu0
        %v4623 = vadd.f32 %v4526, %v4622
        %v4624 = vpop.f32.mrf.mxu0
        %v4625 = vpop.f32.mrf.mxu0
        %v4626 = vadd.f32 %v4529, %v4625
        %v4627 = vpop.f32.mrf.mxu0
        %4628 = vdwg.mxu0
        %4629 = vst [vmem:[%s295] sm:$0xff] %v4567
        %4630 = vst [vmem:[%s295 + $0x8] sm:$0xff] %v4570
        %4631 = vst [vmem:[%s295 + $0x10] sm:$0xff] %v4575
        %4632 = vst [vmem:[%s295 + $0x18] sm:$0xff] %v4578
        %4633 = vst [vmem:[%s295 + $0x20] sm:$0xff] %v4583
        %4634 = vst [vmem:[%s295 + $0x28] sm:$0xff] %v4586
        %4635 = vst [vmem:[%s295 + $0x30] sm:$0xff] %v4591
        %4636 = vst [vmem:[%s295 + $0x38] sm:$0xff] %v4594
        %4637 = vst [vmem:[%s295 + $0x40] sm:$0xff] %v4599
        %4638 = vst [vmem:[%s295 + $0x48] sm:$0xff] %v4602
        %4639 = vst [vmem:[%s295 + $0x50] sm:$0xff] %v4607
        %4640 = vst [vmem:[%s295 + $0x58] sm:$0xff] %v4610
        %4641 = vst [vmem:[%s295 + $0x60] sm:$0xff] %v4615
        %4642 = vst [vmem:[%s295 + $0x68] sm:$0xff] %v4618
        %4643 = vst [vmem:[%s295 + $0x70] sm:$0xff] %v4623
        %4644 = vst [vmem:[%s295 + $0x78] sm:$0xff] %v4626
        %s4645 = smul.u32 16, %s19
        %p4646 = scmp.lt.s32.totalorder %s4645, 31
        %s4647 = scalar_select %p4646, %s4645, 31
        %s4648 = smul.addr %s4647, 8
        %s4649 = scalar_lea.vmem %s7, %s4648
        // Predicated region
        $region53: #{gnet_forward.1} parent=47 // pred_check
          %p4650 = pneg %p189
        $region54: #{gnet_forward.1} parent=47 // pred_check_branch
          %4652 = sbr.rel (%p4650) target = $region56
        $region55: #{gnet_forward.1} parent=47 // pred_region
          %s4653 = smul.u32 16, %s19
        $region56: #{gnet_forward.1} parent=47 // pred_fallthru
          _
      $region48: #{gnet_forward.1} parent=5 // pred_fallthru
        _
      %p4654 = scmp.le.s32.totalorder 2, %s14
      // Predicated region
      $region57: #{gnet_forward.1} parent=5 // pred_check
        %p4655 = pneg %p4654
      $region58: #{gnet_forward.1} parent=5 // pred_check_branch
        %4657 = sbr.rel (%p4655) target = $region60
      $region59: #{gnet_forward.1} parent=5 // pred_region
        %s4658 = ssub.s32 %s14, 2
        // Predicated region
        $region61: #{gnet_forward.1} parent=59 // pred_check
          %p4659 = pneg %p195
        $region62: #{gnet_forward.1} parent=59 // pred_check_branch
          %4661 = sbr.rel (%p4659) target = $region64
        $region63: #{gnet_forward.1} parent=59 // pred_region
          %s4662 = smul.u32 16, %s20
          %p4663 = scmp.lt.s32.totalorder %s4662, 31
          %s4664 = scalar_select %p4663, %s4662, 31
          %s4665 = smul.addr %s4664, 8
          %s4666 = scalar_lea.vmem %s7, %s4665
        $region64: #{gnet_forward.1} parent=59 // pred_fallthru
          _
      $region60: #{gnet_forward.1} parent=5 // pred_fallthru
        _
    $region6: #{gnet_forward.1} parent=1 // loop_footer
      %s18 = sadd.s32 1, %s14
    $region7: #{gnet_forward.1} parent=1 // loop_footer_branch
      %13 = sbr.rel target = $region3
    $region8: #{gnet_forward.1} parent=1 // loop_exit
      _
    %4667 = vsyncpa [#allocation3], 1
    %s4668 = scalar_lea.sflag [#allocation3], 1
    %4669 = vsyncpa %s4668, 1

</llo_original>
